<compile_context>
chip_gen: v6e
topology: v6e:2x2x1
jax: 0.10.0
libtpu: 0.0.40
codegen_flags: <defaults>
</compile_context>

<pallas_src>
import numpy as np
import jax
import jax.numpy as jnp
from jax.experimental import pallas as pl
from jax.experimental.pallas import tpu as pltpu


# GeneratorBlock([1,3,9]) + GeneratorBlock([1,1,1])  (self.feature)
FEATURE_DILATIONS = (1, 3, 9, 1, 1, 1)
# GeneratorBlock([1,3,9]) + GeneratorBlock([1,3,9]) + GeneratorBlock([1,1])  (self.main)
MAIN_DILATIONS = (1, 3, 9, 1, 3, 9, 1, 1)
KSIZE = 3            # conv kernel size inside GeneratorBlocks
NEG_SLOPE = 0.2      # leaky_relu slope


def _round_up(x, m):
    return ((x + m - 1) // m) * m


def _leaky(x):
    return jnp.where(x >= 0.0, x, NEG_SLOPE * x)


def _make_forward_kernel(channels, fb_taps, l_out, out_pad, samp_w, lead):
    """Fused forward kernel (one batch element per grid step)."""

    def dilated_layer(x, wcat, d, xcat_scr):
        # x: (C, L) value.  wcat: (C, 3C) with taps stacked along contraction.
        # Conv1d(C, C, 3, dilation=d, padding=3*d//2)[..., :L] + residual + leaky.
        # Only the boundary columns of each tap band are zeroed (perf feedback:
        # no full-slab zero-fill); the data region is fully rewritten each layer.
        C, L = x.shape
        pad = KSIZE * d // 2
        for j in range(KSIZE):
            s = pad - j * d                     # right-shift of tap j
            band = j * C
            if s >= L or -s >= L:               # degenerate: whole band out of range
                xcat_scr[band:band + C, 0:L] = jnp.zeros((C, L), jnp.float32)
            elif s > 0:
                xcat_scr[band:band + C, 0:s] = jnp.zeros((C, s), jnp.float32)
                xcat_scr[band:band + C, s:L] = x[:, :L - s]
            elif s < 0:
                xcat_scr[band:band + C, 0:L + s] = x[:, -s:]
                xcat_scr[band:band + C, L + s:L] = jnp.zeros((C, -s), jnp.float32)
            else:
                xcat_scr[band:band + C, 0:L] = x
        t = jnp.dot(wcat, xcat_scr[:, :L], preferred_element_type=jnp.float32)
        return _leaky(x + t)

    def kernel(x_ref, w_emb_ref, w_feat_ref, w_main_ref, up_ref, wc_ref,
               scale_ref, o_ref, xcat_scr, epad_scr):
        # The constant zero boundary columns of the padded-activation slab never
        # change across grid steps; zero them once (the [lead, lead+l_out) data
        # region is fully rewritten every step).
        @pl.when(pl.program_id(0) == 0)
        def _init_epad():
            if lead > 0:
                epad_scr[:, 0:lead] = jnp.zeros((channels, lead), jnp.float32)
            tail = samp_w - lead - l_out
            if tail > 0:
                epad_scr[:, lead + l_out:samp_w] = jnp.zeros((channels, tail),
                                                             jnp.float32)

        x = x_ref[0]                                              # (c_sl, l_in)

        # embedding 1x1 conv + leaky_relu
        e = _leaky(jnp.dot(w_emb_ref[...], x,
                           preferred_element_type=jnp.float32))   # (C, l_in)

        # "feature" GeneratorBlocks at length l_in
        for li, d in enumerate(FEATURE_DILATIONS):
            e = dilated_layer(e, w_feat_ref[li], d, xcat_scr)

        # nearest upsample (x scale_factor) as a matmul with a 0/1 matrix.
        # TODO(synk): for very large target sizes replace with an in-kernel
        # broadcast/strided-store upsample to drop the (l_in, l_out) matrix.
        e = jnp.dot(e, up_ref[...], preferred_element_type=jnp.float32)  # (C, l_out)

        # "main" GeneratorBlocks at length l_out
        for li, d in enumerate(MAIN_DILATIONS):
            e = dilated_layer(e, w_main_ref[li], d, xcat_scr)

        # to_samples (1x1 conv, padding=1) and the filter-bank transposed conv
        # are both linear with nothing between them -> prefused on the host into
        # Wc (fb_taps, channels).  One matmul on the zero-padded activations plus
        # a K-row diagonal reduce produces the output samples.
        epad_scr[:, lead:lead + l_out] = e
        g = jnp.dot(wc_ref[...], epad_scr[...],
                    preferred_element_type=jnp.float32)           # (K, samp_w)
        # Diagonal reduce: acc[o] = sum_k g[k, k + o].  fb_taps is small; for very
        # large out_pad this should be chunked / accumulated in VMEM instead.
        acc = g[0:1, 0:out_pad]
        for k in range(1, fb_taps):
            acc = acc + g[k:k + 1, k:k + out_pad]

        o_ref[0] = acc * jnp.abs(scale_ref[0])                    # (1, out_pad), lane dense

    return kernel


def _build_pallas_forward(batch, channels, c_sl, fb_taps, l_in, l_out,
                          out_pad, samp_w, lead, n_feat, n_main):
    kernel = _make_forward_kernel(channels, fb_taps, l_out, out_pad, samp_w, lead)

    # Scoped-VMEM budget: double-buffered blocks + scratch, with headroom, kept
    # under v7x's 64 MiB physical VMEM.
    block_bytes = 4 * (c_sl * l_in + channels * c_sl
                       + n_feat * channels * KSIZE * channels
                       + n_main * channels * KSIZE * channels
                       + l_in * l_out + fb_taps * channels + out_pad)
    scratch_bytes = 4 * (KSIZE * channels * _round_up(l_out, 128)
                         + channels * samp_w)
    vmem_limit = int(min(48 * 2**20,
                         max(32 * 2**20, 4 * (2 * block_bytes + scratch_bytes))))

    grid_spec = pltpu.PrefetchScalarGridSpec(
        num_scalar_prefetch=0,
        grid=(batch,),
        in_specs=[
            pl.BlockSpec((1, c_sl, l_in), lambda b: (b, 0, 0)),              # sliced input
            pl.BlockSpec((channels, c_sl), lambda b: (0, 0)),                # embedding w
            pl.BlockSpec((n_feat, channels, KSIZE * channels), lambda b: (0, 0, 0)),
            pl.BlockSpec((n_main, channels, KSIZE * channels), lambda b: (0, 0, 0)),
            pl.BlockSpec((l_in, l_out), lambda b: (0, 0)),                   # upsample matrix
            pl.BlockSpec((fb_taps, channels), lambda b: (0, 0)),             # fused Wc
            pl.BlockSpec(memory_space=pltpu.MemorySpace.SMEM),               # |scale| scalar
        ],
        out_specs=pl.BlockSpec((1, 1, out_pad), lambda b: (b, 0, 0)),
        scratch_shapes=[
            pltpu.VMEM((KSIZE * channels, l_out), jnp.float32),  # stacked shifted taps
            pltpu.VMEM((channels, samp_w), jnp.float32),         # zero-padded activations
        ],
    )
    return pl.pallas_call(
        kernel,
        grid_spec=grid_spec,
        out_shape=jax.ShapeDtypeStruct((batch, 1, out_pad), jnp.float32),
        compiler_params=pltpu.CompilerParams(
            dimension_semantics=("parallel",),
            vmem_limit_bytes=vmem_limit),
    )


class FilterBank:
    """Minimal stand-in for zounds' FilterBank: holds (n_filters, 1, taps) weights."""

    def __init__(self, filter_bank):
        self.filter_bank = filter_bank


class DilatedChannelGenerator:
    """JAX/Pallas port of featuresynth DilatedChannelGenerator (forward only)."""

    def __init__(self, input_size, target_size, in_channels, channels, fb, sl,
                 bandpass, *, key):
        self.bandpass = bandpass
        self.sl = sl
        self.channels = channels
        self.in_channels = in_channels
        self.target_size = target_size
        self.input_size = input_size
        self.scale_factor = target_size // input_size
        self.fb = [fb]

        c_sl = sl.stop - sl.start
        c_fb, _, fb_taps = fb.filter_bank.shape
        self.c_sl, self.c_fb, self.fb_taps = c_sl, c_fb, fb_taps
        self.l_out = input_size * self.scale_factor
        self.out_pad = _round_up(max(self.l_out, self.target_size), 128)
        self.samp_w = _round_up(self.out_pad + fb_taps, 128)
        # zeros to the left of the activation window inside the tconv slab:
        #   (K - 1 - K//2) correlation edge pad  +  1 zero column from padding=1
        self.lead = fb_taps - fb_taps // 2

        # ---- parameters (PyTorch conv layouts), deterministic init -------------
        def normal(k, shape, std=0.02):
            return std * jax.random.normal(k, shape, jnp.float32)

        keys = iter(jax.random.split(key, 4 + len(FEATURE_DILATIONS) + len(MAIN_DILATIONS)))
        self.params = {
            "embedding": normal(next(keys), (channels, c_sl, 1)),
            "feature": [normal(next(keys), (channels, channels, KSIZE))
                        for _ in FEATURE_DILATIONS],
            "main": [normal(next(keys), (channels, channels, KSIZE))
                     for _ in MAIN_DILATIONS],
            "to_samples": normal(next(keys), (c_fb, channels, 1)),
            "scale": jnp.full((1,), 1e-4, jnp.float32),
        }

        # ---- hoisted per-forward weight preprocessing ---------------------------
        def stack_taps(ws):
            w = jnp.stack(ws, 0)                                  # (n, C, C, 3)
            return jnp.transpose(w, (0, 1, 3, 2)).reshape(len(ws), channels,
                                                          KSIZE * channels)

        self._w_emb = self.params["embedding"][:, :, 0]           # (C, c_sl)
        self._w_feat = stack_taps(self.params["feature"])         # (6, C, 3C)
        self._w_main = stack_taps(self.params["main"])            # (8, C, 3C)
        # Algebraic fusion of `to_samples` (1x1 conv) with the flipped/transposed
        # filter bank:  Wc = flip(fb)[:,0,:].T @ W_ts  -> (fb_taps, channels).
        w_ts = self.params["to_samples"][:, :, 0]                 # (Cfb, C)
        w_fb_flipT = jnp.flip(fb.filter_bank[:, 0, :].astype(jnp.float32), axis=1).T
        self._wc = jnp.dot(w_fb_flipT, w_ts)                      # (K, C)
        self._scale = self.params["scale"].reshape(1)             # SMEM scalar
        up = (np.arange(self.l_out)[None, :] // self.scale_factor
              == np.arange(input_size)[:, None]).astype(np.float32)
        self._up = jnp.asarray(up)                                # (l_in, l_out)

        self._pallas_forward = None
        self._batch = None

    def _get_pallas(self, batch):
        if self._pallas_forward is None or self._batch != batch:
            self._batch = batch
            self._pallas_forward = _build_pallas_forward(
                batch, self.channels, self.c_sl, self.fb_taps,
                self.input_size, self.l_out, self.out_pad, self.samp_w, self.lead,
                len(FEATURE_DILATIONS), len(MAIN_DILATIONS))
        return self._pallas_forward

    def forward(self, x):
        batch = x.shape[0]
        xs = x.reshape(batch, -1, self.input_size)[:, self.sl, :].astype(jnp.float32)
        fwd = self._get_pallas(batch)
        out = fwd(xs, self._w_emb, self._w_feat, self._w_main, self._up,
                  self._wc, self._scale)
        return out[..., :self.target_size]


# --------------------------- float64 numpy reference ---------------------------

def _np_leaky(x):
    return np.where(x >= 0, x, NEG_SLOPE * x)


def _np_dilated_layer(x, w, d):
    """Conv1d(k=3, dilation=d, padding=3*d//2) truncated to L, residual, leaky."""
    C, L = x.shape
    pad = KSIZE * d // 2
    t = np.zeros((w.shape[0], L), np.float64)
    for o in range(L):
        for j in range(KSIZE):
            ti = o - pad + j * d
            if 0 <= ti < L:
                t[:, o] += w[:, :, j] @ x[:, ti]
    return _np_leaky(x + t)


def _np_conv_transpose1d(p, w, padding):
    """F.conv_transpose1d(p, w, stride=1, padding=padding); p:(C,L), w:(C,1,K)."""
    C, L = p.shape
    K = w.shape[2]
    out_len = (L - 1) - 2 * padding + K
    y = np.zeros((out_len,), np.float64)
    for o in range(out_len):
        for c in range(C):
            for k in range(K):
                t = o + padding - k
                if 0 <= t < L:
                    y[o] += p[c, t] * w[c, 0, k]
    return y


def ref_forward(gen, x):
    x = np.asarray(x, np.float64)
    B = x.shape[0]
    xs = x.reshape(B, -1, gen.input_size)[:, gen.sl, :]
    w_emb = np.asarray(gen.params["embedding"], np.float64)[:, :, 0]
    feat_ws = [np.asarray(w, np.float64) for w in gen.params["feature"]]
    main_ws = [np.asarray(w, np.float64) for w in gen.params["main"]]
    w_ts = np.asarray(gen.params["to_samples"], np.float64)[:, :, 0]
    fb_w = np.asarray(gen.fb[0].filter_bank, np.float64)
    scale = abs(float(np.asarray(gen.params["scale"])[0]))
    K = fb_w.shape[2]

    outs = []
    for b in range(B):
        e = _np_leaky(w_emb @ xs[b])
        for w, d in zip(feat_ws, FEATURE_DILATIONS):
            e = _np_dilated_layer(e, w, d)
        e = np.repeat(e, gen.scale_factor, axis=-1)             # nearest upsample
        for w, d in zip(main_ws, MAIN_DILATIONS):
            e = _np_dilated_layer(e, w, d)
        core = w_ts @ e                                         # to_samples (k=1)
        zero = np.zeros((core.shape[0], 1))
        samples = np.concatenate([zero, core, zero], axis=1)    # padding=1
        y = _np_conv_transpose1d(samples, fb_w, K // 2) * scale
        outs.append(y[:gen.target_size])
    return np.stack(outs, 0)[:, None, :].astype(np.float32)


if __name__ == "__main__":
    key = jax.random.PRNGKey(0)
    key, k_fb, k_x, k_gen = jax.random.split(key, 4)

    # Small but representative config.
    batch = 2
    input_size = 16
    target_size = 64                 # scale_factor = 4
    in_channels = 8                  # channels of the latent before `sl` slicing
    channels = 32
    sl = slice(2, 8)                 # 6 channels into the embedding layer
    n_filters, fb_taps = 8, 8        # even number of taps, like zounds' filter banks

    fb = FilterBank(jax.random.normal(k_fb, (n_filters, 1, fb_taps), jnp.float32))
    gen = DilatedChannelGenerator(input_size, target_size, in_channels, channels,
                                  fb, sl, bandpass=None, key=k_gen)

    x = jax.random.normal(k_x, (batch, in_channels, input_size), jnp.float32)
    out = gen.forward(x)
    out = jax.block_until_ready(out)
    assert out.shape == (batch, 1, target_size), out.shape

    want = ref_forward(gen, np.asarray(x))
    np.testing.assert_allclose(np.asarray(out), want, rtol=2e-3, atol=1e-7)

    print("KERNEL_OK")
</pallas_src>

<mosaic_0001>
module attributes {stable_mosaic.version = 11 : i64} {
  func.func @kernel(%arg0: i32, %arg1: memref<1x6x16xf32, #tpu.memory_space<vmem>>, %arg2: memref<32x6xf32, #tpu.memory_space<vmem>>, %arg3: memref<6x32x96xf32, #tpu.memory_space<vmem>>, %arg4: memref<8x32x96xf32, #tpu.memory_space<vmem>>, %arg5: memref<16x64xf32, #tpu.memory_space<vmem>>, %arg6: memref<8x32xf32, #tpu.memory_space<vmem>>, %arg7: memref<1xf32, #tpu.memory_space<smem>>, %arg8: memref<1x1x128xf32, #tpu.memory_space<vmem>>, %arg9: memref<96x64xf32, #tpu.memory_space<vmem>>, %arg10: memref<32x256xf32, #tpu.memory_space<vmem>>) attributes {dimension_semantics = [#tpu.dimension_semantics<parallel>], iteration_bounds = array<i64: 2>, scalar_prefetch = 0 : i64, scratch_operands = 2 : i64, tpu.core_type = #tpu.core_type<tc>, window_params = [{transform_indices = @transform_0, window_bounds = array<i64: 1, 6, 16>}, {pipeline_mode = #tpu.pipeline_mode<synchronous>, transform_indices = @transform_1, window_bounds = array<i64: 32, 6>}, {pipeline_mode = #tpu.pipeline_mode<synchronous>, transform_indices = @transform_2, window_bounds = array<i64: 6, 32, 96>}, {pipeline_mode = #tpu.pipeline_mode<synchronous>, transform_indices = @transform_3, window_bounds = array<i64: 8, 32, 96>}, {pipeline_mode = #tpu.pipeline_mode<synchronous>, transform_indices = @transform_4, window_bounds = array<i64: 16, 64>}, {pipeline_mode = #tpu.pipeline_mode<synchronous>, transform_indices = @transform_5, window_bounds = array<i64: 8, 32>}, {transform_indices = @transform_6, window_bounds = array<i64: 1>}, {transform_indices = @transform_7, window_bounds = array<i64: 1, 1, 128>}]} {
    %c0_i32 = arith.constant 0 : i32
    %0 = arith.cmpi eq, %arg0, %c0_i32 : i32
    %1 = arith.extui %0 : i1 to i32
    %c0_i32_0 = arith.constant 0 : i32
    %2 = arith.cmpi ne, %1, %c0_i32_0 : i32
    scf.if %2 {
      %cst_303 = arith.constant 0.000000e+00 : f32
      %324 = vector.broadcast %cst_303 : f32 to vector<32x4xf32>
      %c0_304 = arith.constant 0 : index
      %c0_305 = arith.constant 0 : index
      %325 = vector.load %arg10[%c0_304, %c0_305] : memref<32x256xf32, #tpu.memory_space<vmem>>, vector<32x4xf32>
      tpu.vector_store %arg10[%c0_304, %c0_305], %324 {strides = array<i32>} : memref<32x256xf32, #tpu.memory_space<vmem>>, vector<32x4xf32>,
      %cst_306 = arith.constant 0.000000e+00 : f32
      %326 = vector.broadcast %cst_306 : f32 to vector<32x188xf32>
      %c0_307 = arith.constant 0 : index
      %c68 = arith.constant 68 : index
      %327 = vector.load %arg10[%c0_307, %c68] : memref<32x256xf32, #tpu.memory_space<vmem>>, vector<32x188xf32>
      tpu.vector_store %arg10[%c0_307, %c68], %326 {strides = array<i32>} : memref<32x256xf32, #tpu.memory_space<vmem>>, vector<32x188xf32>,
    } else {
    }
    %c0 = arith.constant 0 : index
    %c0_1 = arith.constant 0 : index
    %c0_2 = arith.constant 0 : index
    %3 = vector.load %arg1[%c0, %c0_1, %c0_2] : memref<1x6x16xf32, #tpu.memory_space<vmem>>, vector<1x6x16xf32>
    %4 = vector.shape_cast %3 : vector<1x6x16xf32> to vector<6x16xf32>
    %c0_3 = arith.constant 0 : index
    %c0_4 = arith.constant 0 : index
    %5 = vector.load %arg2[%c0_3, %c0_4] : memref<32x6xf32, #tpu.memory_space<vmem>>, vector<32x6xf32>
    %cst = arith.constant dense<0.000000e+00> : vector<32x16xf32>
    %6 = tpu.matmul %5, %4, %cst {dimension_numbers = #tpu.dot_dimension_numbers<[1], [0], [0], [1], [0, 0, 1, 1], [], []>} : vector<32x6xf32>, vector<6x16xf32>, vector<32x16xf32> -> vector<32x16xf32>
    %cst_5 = arith.constant 0.000000e+00 : f32
    %7 = vector.broadcast %cst_5 : f32 to vector<32x16xf32>
    %8 = arith.cmpf oge, %6, %7 : vector<32x16xf32>
    %cst_6 = arith.constant 2.000000e-01 : f32
    %9 = vector.broadcast %cst_6 : f32 to vector<32x16xf32>
    %10 = arith.mulf %9, %6 : vector<32x16xf32>
    %11 = arith.select %8, %6, %10 : vector<32x16xi1>, vector<32x16xf32>
    %c0_7 = arith.constant 0 : index
    %c0_8 = arith.constant 0 : index
    %c0_9 = arith.constant 0 : index
    %12 = vector.load %arg3[%c0_7, %c0_8, %c0_9] : memref<6x32x96xf32, #tpu.memory_space<vmem>>, vector<1x32x96xf32>
    %13 = vector.shape_cast %12 : vector<1x32x96xf32> to vector<32x96xf32>
    %cst_10 = arith.constant 0.000000e+00 : f32
    %14 = vector.broadcast %cst_10 : f32 to vector<32x1xf32>
    %c0_11 = arith.constant 0 : index
    %c0_12 = arith.constant 0 : index
    %15 = vector.load %arg9[%c0_11, %c0_12] : memref<96x64xf32, #tpu.memory_space<vmem>>, vector<32x1xf32>
    tpu.vector_store %arg9[%c0_11, %c0_12], %14 {strides = array<i32>} : memref<96x64xf32, #tpu.memory_space<vmem>>, vector<32x1xf32>,
    %16 = vector.extract_strided_slice %11 {offsets = [0, 0], sizes = [32, 15], strides = [1, 1]} : vector<32x16xf32> to vector<32x15xf32>
    %c0_13 = arith.constant 0 : index
    %c1 = arith.constant 1 : index
    %17 = vector.load %arg9[%c0_13, %c1] : memref<96x64xf32, #tpu.memory_space<vmem>>, vector<32x15xf32>
    tpu.vector_store %arg9[%c0_13, %c1], %16 {strides = array<i32>} : memref<96x64xf32, #tpu.memory_space<vmem>>, vector<32x15xf32>,
    %c32 = arith.constant 32 : index
    %c0_14 = arith.constant 0 : index
    %18 = vector.load %arg9[%c32, %c0_14] : memref<96x64xf32, #tpu.memory_space<vmem>>, vector<32x16xf32>
    tpu.vector_store %arg9[%c32, %c0_14], %11 {strides = array<i32>} : memref<96x64xf32, #tpu.memory_space<vmem>>, vector<32x16xf32>,
    %19 = vector.extract_strided_slice %11 {offsets = [0, 1], sizes = [32, 15], strides = [1, 1]} : vector<32x16xf32> to vector<32x15xf32>
    %c64 = arith.constant 64 : index
    %c0_15 = arith.constant 0 : index
    %20 = vector.load %arg9[%c64, %c0_15] : memref<96x64xf32, #tpu.memory_space<vmem>>, vector<32x15xf32>
    tpu.vector_store %arg9[%c64, %c0_15], %19 {strides = array<i32>} : memref<96x64xf32, #tpu.memory_space<vmem>>, vector<32x15xf32>,
    %cst_16 = arith.constant 0.000000e+00 : f32
    %21 = vector.broadcast %cst_16 : f32 to vector<32x1xf32>
    %c64_17 = arith.constant 64 : index
    %c15 = arith.constant 15 : index
    %22 = vector.load %arg9[%c64_17, %c15] : memref<96x64xf32, #tpu.memory_space<vmem>>, vector<32x1xf32>
    tpu.vector_store %arg9[%c64_17, %c15], %21 {strides = array<i32>} : memref<96x64xf32, #tpu.memory_space<vmem>>, vector<32x1xf32>,
    %c0_18 = arith.constant 0 : index
    %c0_19 = arith.constant 0 : index
    %23 = vector.load %arg9[%c0_18, %c0_19] : memref<96x64xf32, #tpu.memory_space<vmem>>, vector<96x16xf32>
    %cst_20 = arith.constant dense<0.000000e+00> : vector<32x16xf32>
    %24 = tpu.matmul %13, %23, %cst_20 {dimension_numbers = #tpu.dot_dimension_numbers<[1], [0], [0], [1], [0, 0, 1, 1], [], []>} : vector<32x96xf32>, vector<96x16xf32>, vector<32x16xf32> -> vector<32x16xf32>
    %25 = arith.addf %11, %24 : vector<32x16xf32>
    %cst_21 = arith.constant 0.000000e+00 : f32
    %26 = vector.broadcast %cst_21 : f32 to vector<32x16xf32>
    %27 = arith.cmpf oge, %25, %26 : vector<32x16xf32>
    %cst_22 = arith.constant 2.000000e-01 : f32
    %28 = vector.broadcast %cst_22 : f32 to vector<32x16xf32>
    %29 = arith.mulf %28, %25 : vector<32x16xf32>
    %30 = arith.select %27, %25, %29 : vector<32x16xi1>, vector<32x16xf32>
    %c1_23 = arith.constant 1 : index
    %c0_24 = arith.constant 0 : index
    %c0_25 = arith.constant 0 : index
    %31 = vector.load %arg3[%c1_23, %c0_24, %c0_25] : memref<6x32x96xf32, #tpu.memory_space<vmem>>, vector<1x32x96xf32>
    %32 = vector.shape_cast %31 : vector<1x32x96xf32> to vector<32x96xf32>
    %cst_26 = arith.constant 0.000000e+00 : f32
    %33 = vector.broadcast %cst_26 : f32 to vector<32x4xf32>
    %c0_27 = arith.constant 0 : index
    %c0_28 = arith.constant 0 : index
    %34 = vector.load %arg9[%c0_27, %c0_28] : memref<96x64xf32, #tpu.memory_space<vmem>>, vector<32x4xf32>
    tpu.vector_store %arg9[%c0_27, %c0_28], %33 {strides = array<i32>} : memref<96x64xf32, #tpu.memory_space<vmem>>, vector<32x4xf32>,
    %35 = vector.extract_strided_slice %30 {offsets = [0, 0], sizes = [32, 12], strides = [1, 1]} : vector<32x16xf32> to vector<32x12xf32>
    %c0_29 = arith.constant 0 : index
    %c4 = arith.constant 4 : index
    %36 = vector.load %arg9[%c0_29, %c4] : memref<96x64xf32, #tpu.memory_space<vmem>>, vector<32x12xf32>
    tpu.vector_store %arg9[%c0_29, %c4], %35 {strides = array<i32>} : memref<96x64xf32, #tpu.memory_space<vmem>>, vector<32x12xf32>,
    %cst_30 = arith.constant 0.000000e+00 : f32
    %37 = vector.broadcast %cst_30 : f32 to vector<32x1xf32>
    %c32_31 = arith.constant 32 : index
    %c0_32 = arith.constant 0 : index
    %38 = vector.load %arg9[%c32_31, %c0_32] : memref<96x64xf32, #tpu.memory_space<vmem>>, vector<32x1xf32>
    tpu.vector_store %arg9[%c32_31, %c0_32], %37 {strides = array<i32>} : memref<96x64xf32, #tpu.memory_space<vmem>>, vector<32x1xf32>,
    %39 = vector.extract_strided_slice %30 {offsets = [0, 0], sizes = [32, 15], strides = [1, 1]} : vector<32x16xf32> to vector<32x15xf32>
    %c32_33 = arith.constant 32 : index
    %c1_34 = arith.constant 1 : index
    %40 = vector.load %arg9[%c32_33, %c1_34] : memref<96x64xf32, #tpu.memory_space<vmem>>, vector<32x15xf32>
    tpu.vector_store %arg9[%c32_33, %c1_34], %39 {strides = array<i32>} : memref<96x64xf32, #tpu.memory_space<vmem>>, vector<32x15xf32>,
    %41 = vector.extract_strided_slice %30 {offsets = [0, 2], sizes = [32, 14], strides = [1, 1]} : vector<32x16xf32> to vector<32x14xf32>
    %c64_35 = arith.constant 64 : index
    %c0_36 = arith.constant 0 : index
    %42 = vector.load %arg9[%c64_35, %c0_36] : memref<96x64xf32, #tpu.memory_space<vmem>>, vector<32x14xf32>
    tpu.vector_store %arg9[%c64_35, %c0_36], %41 {strides = array<i32>} : memref<96x64xf32, #tpu.memory_space<vmem>>, vector<32x14xf32>,
    %cst_37 = arith.constant 0.000000e+00 : f32
    %43 = vector.broadcast %cst_37 : f32 to vector<32x2xf32>
    %c64_38 = arith.constant 64 : index
    %c14 = arith.constant 14 : index
    %44 = vector.load %arg9[%c64_38, %c14] : memref<96x64xf32, #tpu.memory_space<vmem>>, vector<32x2xf32>
    tpu.vector_store %arg9[%c64_38, %c14], %43 {strides = array<i32>} : memref<96x64xf32, #tpu.memory_space<vmem>>, vector<32x2xf32>,
    %c0_39 = arith.constant 0 : index
    %c0_40 = arith.constant 0 : index
    %45 = vector.load %arg9[%c0_39, %c0_40] : memref<96x64xf32, #tpu.memory_space<vmem>>, vector<96x16xf32>
    %cst_41 = arith.constant dense<0.000000e+00> : vector<32x16xf32>
    %46 = tpu.matmul %32, %45, %cst_41 {dimension_numbers = #tpu.dot_dimension_numbers<[1], [0], [0], [1], [0, 0, 1, 1], [], []>} : vector<32x96xf32>, vector<96x16xf32>, vector<32x16xf32> -> vector<32x16xf32>
    %47 = arith.addf %30, %46 : vector<32x16xf32>
    %cst_42 = arith.constant 0.000000e+00 : f32
    %48 = vector.broadcast %cst_42 : f32 to vector<32x16xf32>
    %49 = arith.cmpf oge, %47, %48 : vector<32x16xf32>
    %cst_43 = arith.constant 2.000000e-01 : f32
    %50 = vector.broadcast %cst_43 : f32 to vector<32x16xf32>
    %51 = arith.mulf %50, %47 : vector<32x16xf32>
    %52 = arith.select %49, %47, %51 : vector<32x16xi1>, vector<32x16xf32>
    %c2 = arith.constant 2 : index
    %c0_44 = arith.constant 0 : index
    %c0_45 = arith.constant 0 : index
    %53 = vector.load %arg3[%c2, %c0_44, %c0_45] : memref<6x32x96xf32, #tpu.memory_space<vmem>>, vector<1x32x96xf32>
    %54 = vector.shape_cast %53 : vector<1x32x96xf32> to vector<32x96xf32>
    %cst_46 = arith.constant 0.000000e+00 : f32
    %55 = vector.broadcast %cst_46 : f32 to vector<32x13xf32>
    %c0_47 = arith.constant 0 : index
    %c0_48 = arith.constant 0 : index
    %56 = vector.load %arg9[%c0_47, %c0_48] : memref<96x64xf32, #tpu.memory_space<vmem>>, vector<32x13xf32>
    tpu.vector_store %arg9[%c0_47, %c0_48], %55 {strides = array<i32>} : memref<96x64xf32, #tpu.memory_space<vmem>>, vector<32x13xf32>,
    %57 = vector.extract_strided_slice %52 {offsets = [0, 0], sizes = [32, 3], strides = [1, 1]} : vector<32x16xf32> to vector<32x3xf32>
    %c0_49 = arith.constant 0 : index
    %c13 = arith.constant 13 : index
    %58 = vector.load %arg9[%c0_49, %c13] : memref<96x64xf32, #tpu.memory_space<vmem>>, vector<32x3xf32>
    tpu.vector_store %arg9[%c0_49, %c13], %57 {strides = array<i32>} : memref<96x64xf32, #tpu.memory_space<vmem>>, vector<32x3xf32>,
    %cst_50 = arith.constant 0.000000e+00 : f32
    %59 = vector.broadcast %cst_50 : f32 to vector<32x4xf32>
    %c32_51 = arith.constant 32 : index
    %c0_52 = arith.constant 0 : index
    %60 = vector.load %arg9[%c32_51, %c0_52] : memref<96x64xf32, #tpu.memory_space<vmem>>, vector<32x4xf32>
    tpu.vector_store %arg9[%c32_51, %c0_52], %59 {strides = array<i32>} : memref<96x64xf32, #tpu.memory_space<vmem>>, vector<32x4xf32>,
    %61 = vector.extract_strided_slice %52 {offsets = [0, 0], sizes = [32, 12], strides = [1, 1]} : vector<32x16xf32> to vector<32x12xf32>
    %c32_53 = arith.constant 32 : index
    %c4_54 = arith.constant 4 : index
    %62 = vector.load %arg9[%c32_53, %c4_54] : memref<96x64xf32, #tpu.memory_space<vmem>>, vector<32x12xf32>
    tpu.vector_store %arg9[%c32_53, %c4_54], %61 {strides = array<i32>} : memref<96x64xf32, #tpu.memory_space<vmem>>, vector<32x12xf32>,
    %63 = vector.extract_strided_slice %52 {offsets = [0, 5], sizes = [32, 11], strides = [1, 1]} : vector<32x16xf32> to vector<32x11xf32>
    %c64_55 = arith.constant 64 : index
    %c0_56 = arith.constant 0 : index
    %64 = vector.load %arg9[%c64_55, %c0_56] : memref<96x64xf32, #tpu.memory_space<vmem>>, vector<32x11xf32>
    tpu.vector_store %arg9[%c64_55, %c0_56], %63 {strides = array<i32>} : memref<96x64xf32, #tpu.memory_space<vmem>>, vector<32x11xf32>,
    %cst_57 = arith.constant 0.000000e+00 : f32
    %65 = vector.broadcast %cst_57 : f32 to vector<32x5xf32>
    %c64_58 = arith.constant 64 : index
    %c11 = arith.constant 11 : index
    %66 = vector.load %arg9[%c64_58, %c11] : memref<96x64xf32, #tpu.memory_space<vmem>>, vector<32x5xf32>
    tpu.vector_store %arg9[%c64_58, %c11], %65 {strides = array<i32>} : memref<96x64xf32, #tpu.memory_space<vmem>>, vector<32x5xf32>,
    %c0_59 = arith.constant 0 : index
    %c0_60 = arith.constant 0 : index
    %67 = vector.load %arg9[%c0_59, %c0_60] : memref<96x64xf32, #tpu.memory_space<vmem>>, vector<96x16xf32>
    %cst_61 = arith.constant dense<0.000000e+00> : vector<32x16xf32>
    %68 = tpu.matmul %54, %67, %cst_61 {dimension_numbers = #tpu.dot_dimension_numbers<[1], [0], [0], [1], [0, 0, 1, 1], [], []>} : vector<32x96xf32>, vector<96x16xf32>, vector<32x16xf32> -> vector<32x16xf32>
    %69 = arith.addf %52, %68 : vector<32x16xf32>
    %cst_62 = arith.constant 0.000000e+00 : f32
    %70 = vector.broadcast %cst_62 : f32 to vector<32x16xf32>
    %71 = arith.cmpf oge, %69, %70 : vector<32x16xf32>
    %cst_63 = arith.constant 2.000000e-01 : f32
    %72 = vector.broadcast %cst_63 : f32 to vector<32x16xf32>
    %73 = arith.mulf %72, %69 : vector<32x16xf32>
    %74 = arith.select %71, %69, %73 : vector<32x16xi1>, vector<32x16xf32>
    %c3 = arith.constant 3 : index
    %c0_64 = arith.constant 0 : index
    %c0_65 = arith.constant 0 : index
    %75 = vector.load %arg3[%c3, %c0_64, %c0_65] : memref<6x32x96xf32, #tpu.memory_space<vmem>>, vector<1x32x96xf32>
    %76 = vector.shape_cast %75 : vector<1x32x96xf32> to vector<32x96xf32>
    %cst_66 = arith.constant 0.000000e+00 : f32
    %77 = vector.broadcast %cst_66 : f32 to vector<32x1xf32>
    %c0_67 = arith.constant 0 : index
    %c0_68 = arith.constant 0 : index
    %78 = vector.load %arg9[%c0_67, %c0_68] : memref<96x64xf32, #tpu.memory_space<vmem>>, vector<32x1xf32>
    tpu.vector_store %arg9[%c0_67, %c0_68], %77 {strides = array<i32>} : memref<96x64xf32, #tpu.memory_space<vmem>>, vector<32x1xf32>,
    %79 = vector.extract_strided_slice %74 {offsets = [0, 0], sizes = [32, 15], strides = [1, 1]} : vector<32x16xf32> to vector<32x15xf32>
    %c0_69 = arith.constant 0 : index
    %c1_70 = arith.constant 1 : index
    %80 = vector.load %arg9[%c0_69, %c1_70] : memref<96x64xf32, #tpu.memory_space<vmem>>, vector<32x15xf32>
    tpu.vector_store %arg9[%c0_69, %c1_70], %79 {strides = array<i32>} : memref<96x64xf32, #tpu.memory_space<vmem>>, vector<32x15xf32>,
    %c32_71 = arith.constant 32 : index
    %c0_72 = arith.constant 0 : index
    %81 = vector.load %arg9[%c32_71, %c0_72] : memref<96x64xf32, #tpu.memory_space<vmem>>, vector<32x16xf32>
    tpu.vector_store %arg9[%c32_71, %c0_72], %74 {strides = array<i32>} : memref<96x64xf32, #tpu.memory_space<vmem>>, vector<32x16xf32>,
    %82 = vector.extract_strided_slice %74 {offsets = [0, 1], sizes = [32, 15], strides = [1, 1]} : vector<32x16xf32> to vector<32x15xf32>
    %c64_73 = arith.constant 64 : index
    %c0_74 = arith.constant 0 : index
    %83 = vector.load %arg9[%c64_73, %c0_74] : memref<96x64xf32, #tpu.memory_space<vmem>>, vector<32x15xf32>
    tpu.vector_store %arg9[%c64_73, %c0_74], %82 {strides = array<i32>} : memref<96x64xf32, #tpu.memory_space<vmem>>, vector<32x15xf32>,
    %cst_75 = arith.constant 0.000000e+00 : f32
    %84 = vector.broadcast %cst_75 : f32 to vector<32x1xf32>
    %c64_76 = arith.constant 64 : index
    %c15_77 = arith.constant 15 : index
    %85 = vector.load %arg9[%c64_76, %c15_77] : memref<96x64xf32, #tpu.memory_space<vmem>>, vector<32x1xf32>
    tpu.vector_store %arg9[%c64_76, %c15_77], %84 {strides = array<i32>} : memref<96x64xf32, #tpu.memory_space<vmem>>, vector<32x1xf32>,
    %c0_78 = arith.constant 0 : index
    %c0_79 = arith.constant 0 : index
    %86 = vector.load %arg9[%c0_78, %c0_79] : memref<96x64xf32, #tpu.memory_space<vmem>>, vector<96x16xf32>
    %cst_80 = arith.constant dense<0.000000e+00> : vector<32x16xf32>
    %87 = tpu.matmul %76, %86, %cst_80 {dimension_numbers = #tpu.dot_dimension_numbers<[1], [0], [0], [1], [0, 0, 1, 1], [], []>} : vector<32x96xf32>, vector<96x16xf32>, vector<32x16xf32> -> vector<32x16xf32>
    %88 = arith.addf %74, %87 : vector<32x16xf32>
    %cst_81 = arith.constant 0.000000e+00 : f32
    %89 = vector.broadcast %cst_81 : f32 to vector<32x16xf32>
    %90 = arith.cmpf oge, %88, %89 : vector<32x16xf32>
    %cst_82 = arith.constant 2.000000e-01 : f32
    %91 = vector.broadcast %cst_82 : f32 to vector<32x16xf32>
    %92 = arith.mulf %91, %88 : vector<32x16xf32>
    %93 = arith.select %90, %88, %92 : vector<32x16xi1>, vector<32x16xf32>
    %c4_83 = arith.constant 4 : index
    %c0_84 = arith.constant 0 : index
    %c0_85 = arith.constant 0 : index
    %94 = vector.load %arg3[%c4_83, %c0_84, %c0_85] : memref<6x32x96xf32, #tpu.memory_space<vmem>>, vector<1x32x96xf32>
    %95 = vector.shape_cast %94 : vector<1x32x96xf32> to vector<32x96xf32>
    %cst_86 = arith.constant 0.000000e+00 : f32
    %96 = vector.broadcast %cst_86 : f32 to vector<32x1xf32>
    %c0_87 = arith.constant 0 : index
    %c0_88 = arith.constant 0 : index
    %97 = vector.load %arg9[%c0_87, %c0_88] : memref<96x64xf32, #tpu.memory_space<vmem>>, vector<32x1xf32>
    tpu.vector_store %arg9[%c0_87, %c0_88], %96 {strides = array<i32>} : memref<96x64xf32, #tpu.memory_space<vmem>>, vector<32x1xf32>,
    %98 = vector.extract_strided_slice %93 {offsets = [0, 0], sizes = [32, 15], strides = [1, 1]} : vector<32x16xf32> to vector<32x15xf32>
    %c0_89 = arith.constant 0 : index
    %c1_90 = arith.constant 1 : index
    %99 = vector.load %arg9[%c0_89, %c1_90] : memref<96x64xf32, #tpu.memory_space<vmem>>, vector<32x15xf32>
    tpu.vector_store %arg9[%c0_89, %c1_90], %98 {strides = array<i32>} : memref<96x64xf32, #tpu.memory_space<vmem>>, vector<32x15xf32>,
    %c32_91 = arith.constant 32 : index
    %c0_92 = arith.constant 0 : index
    %100 = vector.load %arg9[%c32_91, %c0_92] : memref<96x64xf32, #tpu.memory_space<vmem>>, vector<32x16xf32>
    tpu.vector_store %arg9[%c32_91, %c0_92], %93 {strides = array<i32>} : memref<96x64xf32, #tpu.memory_space<vmem>>, vector<32x16xf32>,
    %101 = vector.extract_strided_slice %93 {offsets = [0, 1], sizes = [32, 15], strides = [1, 1]} : vector<32x16xf32> to vector<32x15xf32>
    %c64_93 = arith.constant 64 : index
    %c0_94 = arith.constant 0 : index
    %102 = vector.load %arg9[%c64_93, %c0_94] : memref<96x64xf32, #tpu.memory_space<vmem>>, vector<32x15xf32>
    tpu.vector_store %arg9[%c64_93, %c0_94], %101 {strides = array<i32>} : memref<96x64xf32, #tpu.memory_space<vmem>>, vector<32x15xf32>,
    %cst_95 = arith.constant 0.000000e+00 : f32
    %103 = vector.broadcast %cst_95 : f32 to vector<32x1xf32>
    %c64_96 = arith.constant 64 : index
    %c15_97 = arith.constant 15 : index
    %104 = vector.load %arg9[%c64_96, %c15_97] : memref<96x64xf32, #tpu.memory_space<vmem>>, vector<32x1xf32>
    tpu.vector_store %arg9[%c64_96, %c15_97], %103 {strides = array<i32>} : memref<96x64xf32, #tpu.memory_space<vmem>>, vector<32x1xf32>,
    %c0_98 = arith.constant 0 : index
    %c0_99 = arith.constant 0 : index
    %105 = vector.load %arg9[%c0_98, %c0_99] : memref<96x64xf32, #tpu.memory_space<vmem>>, vector<96x16xf32>
    %cst_100 = arith.constant dense<0.000000e+00> : vector<32x16xf32>
    %106 = tpu.matmul %95, %105, %cst_100 {dimension_numbers = #tpu.dot_dimension_numbers<[1], [0], [0], [1], [0, 0, 1, 1], [], []>} : vector<32x96xf32>, vector<96x16xf32>, vector<32x16xf32> -> vector<32x16xf32>
    %107 = arith.addf %93, %106 : vector<32x16xf32>
    %cst_101 = arith.constant 0.000000e+00 : f32
    %108 = vector.broadcast %cst_101 : f32 to vector<32x16xf32>
    %109 = arith.cmpf oge, %107, %108 : vector<32x16xf32>
    %cst_102 = arith.constant 2.000000e-01 : f32
    %110 = vector.broadcast %cst_102 : f32 to vector<32x16xf32>
    %111 = arith.mulf %110, %107 : vector<32x16xf32>
    %112 = arith.select %109, %107, %111 : vector<32x16xi1>, vector<32x16xf32>
    %c5 = arith.constant 5 : index
    %c0_103 = arith.constant 0 : index
    %c0_104 = arith.constant 0 : index
    %113 = vector.load %arg3[%c5, %c0_103, %c0_104] : memref<6x32x96xf32, #tpu.memory_space<vmem>>, vector<1x32x96xf32>
    %114 = vector.shape_cast %113 : vector<1x32x96xf32> to vector<32x96xf32>
    %cst_105 = arith.constant 0.000000e+00 : f32
    %115 = vector.broadcast %cst_105 : f32 to vector<32x1xf32>
    %c0_106 = arith.constant 0 : index
    %c0_107 = arith.constant 0 : index
    %116 = vector.load %arg9[%c0_106, %c0_107] : memref<96x64xf32, #tpu.memory_space<vmem>>, vector<32x1xf32>
    tpu.vector_store %arg9[%c0_106, %c0_107], %115 {strides = array<i32>} : memref<96x64xf32, #tpu.memory_space<vmem>>, vector<32x1xf32>,
    %117 = vector.extract_strided_slice %112 {offsets = [0, 0], sizes = [32, 15], strides = [1, 1]} : vector<32x16xf32> to vector<32x15xf32>
    %c0_108 = arith.constant 0 : index
    %c1_109 = arith.constant 1 : index
    %118 = vector.load %arg9[%c0_108, %c1_109] : memref<96x64xf32, #tpu.memory_space<vmem>>, vector<32x15xf32>
    tpu.vector_store %arg9[%c0_108, %c1_109], %117 {strides = array<i32>} : memref<96x64xf32, #tpu.memory_space<vmem>>, vector<32x15xf32>,
    %c32_110 = arith.constant 32 : index
    %c0_111 = arith.constant 0 : index
    %119 = vector.load %arg9[%c32_110, %c0_111] : memref<96x64xf32, #tpu.memory_space<vmem>>, vector<32x16xf32>
    tpu.vector_store %arg9[%c32_110, %c0_111], %112 {strides = array<i32>} : memref<96x64xf32, #tpu.memory_space<vmem>>, vector<32x16xf32>,
    %120 = vector.extract_strided_slice %112 {offsets = [0, 1], sizes = [32, 15], strides = [1, 1]} : vector<32x16xf32> to vector<32x15xf32>
    %c64_112 = arith.constant 64 : index
    %c0_113 = arith.constant 0 : index
    %121 = vector.load %arg9[%c64_112, %c0_113] : memref<96x64xf32, #tpu.memory_space<vmem>>, vector<32x15xf32>
    tpu.vector_store %arg9[%c64_112, %c0_113], %120 {strides = array<i32>} : memref<96x64xf32, #tpu.memory_space<vmem>>, vector<32x15xf32>,
    %cst_114 = arith.constant 0.000000e+00 : f32
    %122 = vector.broadcast %cst_114 : f32 to vector<32x1xf32>
    %c64_115 = arith.constant 64 : index
    %c15_116 = arith.constant 15 : index
    %123 = vector.load %arg9[%c64_115, %c15_116] : memref<96x64xf32, #tpu.memory_space<vmem>>, vector<32x1xf32>
    tpu.vector_store %arg9[%c64_115, %c15_116], %122 {strides = array<i32>} : memref<96x64xf32, #tpu.memory_space<vmem>>, vector<32x1xf32>,
    %c0_117 = arith.constant 0 : index
    %c0_118 = arith.constant 0 : index
    %124 = vector.load %arg9[%c0_117, %c0_118] : memref<96x64xf32, #tpu.memory_space<vmem>>, vector<96x16xf32>
    %cst_119 = arith.constant dense<0.000000e+00> : vector<32x16xf32>
    %125 = tpu.matmul %114, %124, %cst_119 {dimension_numbers = #tpu.dot_dimension_numbers<[1], [0], [0], [1], [0, 0, 1, 1], [], []>} : vector<32x96xf32>, vector<96x16xf32>, vector<32x16xf32> -> vector<32x16xf32>
    %126 = arith.addf %112, %125 : vector<32x16xf32>
    %cst_120 = arith.constant 0.000000e+00 : f32
    %127 = vector.broadcast %cst_120 : f32 to vector<32x16xf32>
    %128 = arith.cmpf oge, %126, %127 : vector<32x16xf32>
    %cst_121 = arith.constant 2.000000e-01 : f32
    %129 = vector.broadcast %cst_121 : f32 to vector<32x16xf32>
    %130 = arith.mulf %129, %126 : vector<32x16xf32>
    %131 = arith.select %128, %126, %130 : vector<32x16xi1>, vector<32x16xf32>
    %c0_122 = arith.constant 0 : index
    %c0_123 = arith.constant 0 : index
    %132 = vector.load %arg5[%c0_122, %c0_123] : memref<16x64xf32, #tpu.memory_space<vmem>>, vector<16x64xf32>
    %cst_124 = arith.constant dense<0.000000e+00> : vector<32x64xf32>
    %133 = tpu.matmul %131, %132, %cst_124 {dimension_numbers = #tpu.dot_dimension_numbers<[1], [0], [0], [1], [0, 0, 1, 1], [], []>} : vector<32x16xf32>, vector<16x64xf32>, vector<32x64xf32> -> vector<32x64xf32>
    %c0_125 = arith.constant 0 : index
    %c0_126 = arith.constant 0 : index
    %c0_127 = arith.constant 0 : index
    %134 = vector.load %arg4[%c0_125, %c0_126, %c0_127] : memref<8x32x96xf32, #tpu.memory_space<vmem>>, vector<1x32x96xf32>
    %135 = vector.shape_cast %134 : vector<1x32x96xf32> to vector<32x96xf32>
    %cst_128 = arith.constant 0.000000e+00 : f32
    %136 = vector.broadcast %cst_128 : f32 to vector<32x1xf32>
    %c0_129 = arith.constant 0 : index
    %c0_130 = arith.constant 0 : index
    %137 = vector.load %arg9[%c0_129, %c0_130] : memref<96x64xf32, #tpu.memory_space<vmem>>, vector<32x1xf32>
    tpu.vector_store %arg9[%c0_129, %c0_130], %136 {strides = array<i32>} : memref<96x64xf32, #tpu.memory_space<vmem>>, vector<32x1xf32>,
    %138 = vector.extract_strided_slice %133 {offsets = [0, 0], sizes = [32, 63], strides = [1, 1]} : vector<32x64xf32> to vector<32x63xf32>
    %c0_131 = arith.constant 0 : index
    %c1_132 = arith.constant 1 : index
    %139 = vector.load %arg9[%c0_131, %c1_132] : memref<96x64xf32, #tpu.memory_space<vmem>>, vector<32x63xf32>
    tpu.vector_store %arg9[%c0_131, %c1_132], %138 {strides = array<i32>} : memref<96x64xf32, #tpu.memory_space<vmem>>, vector<32x63xf32>,
    %c32_133 = arith.constant 32 : index
    %c0_134 = arith.constant 0 : index
    %140 = vector.load %arg9[%c32_133, %c0_134] : memref<96x64xf32, #tpu.memory_space<vmem>>, vector<32x64xf32>
    tpu.vector_store %arg9[%c32_133, %c0_134], %133 {strides = array<i32>} : memref<96x64xf32, #tpu.memory_space<vmem>>, vector<32x64xf32>,
    %141 = vector.extract_strided_slice %133 {offsets = [0, 1], sizes = [32, 63], strides = [1, 1]} : vector<32x64xf32> to vector<32x63xf32>
    %c64_135 = arith.constant 64 : index
    %c0_136 = arith.constant 0 : index
    %142 = vector.load %arg9[%c64_135, %c0_136] : memref<96x64xf32, #tpu.memory_space<vmem>>, vector<32x63xf32>
    tpu.vector_store %arg9[%c64_135, %c0_136], %141 {strides = array<i32>} : memref<96x64xf32, #tpu.memory_space<vmem>>, vector<32x63xf32>,
    %cst_137 = arith.constant 0.000000e+00 : f32
    %143 = vector.broadcast %cst_137 : f32 to vector<32x1xf32>
    %c64_138 = arith.constant 64 : index
    %c63 = arith.constant 63 : index
    %144 = vector.load %arg9[%c64_138, %c63] : memref<96x64xf32, #tpu.memory_space<vmem>>, vector<32x1xf32>
    tpu.vector_store %arg9[%c64_138, %c63], %143 {strides = array<i32>} : memref<96x64xf32, #tpu.memory_space<vmem>>, vector<32x1xf32>,
    %c0_139 = arith.constant 0 : index
    %c0_140 = arith.constant 0 : index
    %145 = vector.load %arg9[%c0_139, %c0_140] : memref<96x64xf32, #tpu.memory_space<vmem>>, vector<96x64xf32>
    %cst_141 = arith.constant dense<0.000000e+00> : vector<32x64xf32>
    %146 = tpu.matmul %135, %145, %cst_141 {dimension_numbers = #tpu.dot_dimension_numbers<[1], [0], [0], [1], [0, 0, 1, 1], [], []>} : vector<32x96xf32>, vector<96x64xf32>, vector<32x64xf32> -> vector<32x64xf32>
    %147 = arith.addf %133, %146 : vector<32x64xf32>
    %cst_142 = arith.constant 0.000000e+00 : f32
    %148 = vector.broadcast %cst_142 : f32 to vector<32x64xf32>
    %149 = arith.cmpf oge, %147, %148 : vector<32x64xf32>
    %cst_143 = arith.constant 2.000000e-01 : f32
    %150 = vector.broadcast %cst_143 : f32 to vector<32x64xf32>
    %151 = arith.mulf %150, %147 : vector<32x64xf32>
    %152 = arith.select %149, %147, %151 : vector<32x64xi1>, vector<32x64xf32>
    %c1_144 = arith.constant 1 : index
    %c0_145 = arith.constant 0 : index
    %c0_146 = arith.constant 0 : index
    %153 = vector.load %arg4[%c1_144, %c0_145, %c0_146] : memref<8x32x96xf32, #tpu.memory_space<vmem>>, vector<1x32x96xf32>
    %154 = vector.shape_cast %153 : vector<1x32x96xf32> to vector<32x96xf32>
    %cst_147 = arith.constant 0.000000e+00 : f32
    %155 = vector.broadcast %cst_147 : f32 to vector<32x4xf32>
    %c0_148 = arith.constant 0 : index
    %c0_149 = arith.constant 0 : index
    %156 = vector.load %arg9[%c0_148, %c0_149] : memref<96x64xf32, #tpu.memory_space<vmem>>, vector<32x4xf32>
    tpu.vector_store %arg9[%c0_148, %c0_149], %155 {strides = array<i32>} : memref<96x64xf32, #tpu.memory_space<vmem>>, vector<32x4xf32>,
    %157 = vector.extract_strided_slice %152 {offsets = [0, 0], sizes = [32, 60], strides = [1, 1]} : vector<32x64xf32> to vector<32x60xf32>
    %c0_150 = arith.constant 0 : index
    %c4_151 = arith.constant 4 : index
    %158 = vector.load %arg9[%c0_150, %c4_151] : memref<96x64xf32, #tpu.memory_space<vmem>>, vector<32x60xf32>
    tpu.vector_store %arg9[%c0_150, %c4_151], %157 {strides = array<i32>} : memref<96x64xf32, #tpu.memory_space<vmem>>, vector<32x60xf32>,
    %cst_152 = arith.constant 0.000000e+00 : f32
    %159 = vector.broadcast %cst_152 : f32 to vector<32x1xf32>
    %c32_153 = arith.constant 32 : index
    %c0_154 = arith.constant 0 : index
    %160 = vector.load %arg9[%c32_153, %c0_154] : memref<96x64xf32, #tpu.memory_space<vmem>>, vector<32x1xf32>
    tpu.vector_store %arg9[%c32_153, %c0_154], %159 {strides = array<i32>} : memref<96x64xf32, #tpu.memory_space<vmem>>, vector<32x1xf32>,
    %161 = vector.extract_strided_slice %152 {offsets = [0, 0], sizes = [32, 63], strides = [1, 1]} : vector<32x64xf32> to vector<32x63xf32>
    %c32_155 = arith.constant 32 : index
    %c1_156 = arith.constant 1 : index
    %162 = vector.load %arg9[%c32_155, %c1_156] : memref<96x64xf32, #tpu.memory_space<vmem>>, vector<32x63xf32>
    tpu.vector_store %arg9[%c32_155, %c1_156], %161 {strides = array<i32>} : memref<96x64xf32, #tpu.memory_space<vmem>>, vector<32x63xf32>,
    %163 = vector.extract_strided_slice %152 {offsets = [0, 2], sizes = [32, 62], strides = [1, 1]} : vector<32x64xf32> to vector<32x62xf32>
    %c64_157 = arith.constant 64 : index
    %c0_158 = arith.constant 0 : index
    %164 = vector.load %arg9[%c64_157, %c0_158] : memref<96x64xf32, #tpu.memory_space<vmem>>, vector<32x62xf32>
    tpu.vector_store %arg9[%c64_157, %c0_158], %163 {strides = array<i32>} : memref<96x64xf32, #tpu.memory_space<vmem>>, vector<32x62xf32>,
    %cst_159 = arith.constant 0.000000e+00 : f32
    %165 = vector.broadcast %cst_159 : f32 to vector<32x2xf32>
    %c64_160 = arith.constant 64 : index
    %c62 = arith.constant 62 : index
    %166 = vector.load %arg9[%c64_160, %c62] : memref<96x64xf32, #tpu.memory_space<vmem>>, vector<32x2xf32>
    tpu.vector_store %arg9[%c64_160, %c62], %165 {strides = array<i32>} : memref<96x64xf32, #tpu.memory_space<vmem>>, vector<32x2xf32>,
    %c0_161 = arith.constant 0 : index
    %c0_162 = arith.constant 0 : index
    %167 = vector.load %arg9[%c0_161, %c0_162] : memref<96x64xf32, #tpu.memory_space<vmem>>, vector<96x64xf32>
    %cst_163 = arith.constant dense<0.000000e+00> : vector<32x64xf32>
    %168 = tpu.matmul %154, %167, %cst_163 {dimension_numbers = #tpu.dot_dimension_numbers<[1], [0], [0], [1], [0, 0, 1, 1], [], []>} : vector<32x96xf32>, vector<96x64xf32>, vector<32x64xf32> -> vector<32x64xf32>
    %169 = arith.addf %152, %168 : vector<32x64xf32>
    %cst_164 = arith.constant 0.000000e+00 : f32
    %170 = vector.broadcast %cst_164 : f32 to vector<32x64xf32>
    %171 = arith.cmpf oge, %169, %170 : vector<32x64xf32>
    %cst_165 = arith.constant 2.000000e-01 : f32
    %172 = vector.broadcast %cst_165 : f32 to vector<32x64xf32>
    %173 = arith.mulf %172, %169 : vector<32x64xf32>
    %174 = arith.select %171, %169, %173 : vector<32x64xi1>, vector<32x64xf32>
    %c2_166 = arith.constant 2 : index
    %c0_167 = arith.constant 0 : index
    %c0_168 = arith.constant 0 : index
    %175 = vector.load %arg4[%c2_166, %c0_167, %c0_168] : memref<8x32x96xf32, #tpu.memory_space<vmem>>, vector<1x32x96xf32>
    %176 = vector.shape_cast %175 : vector<1x32x96xf32> to vector<32x96xf32>
    %cst_169 = arith.constant 0.000000e+00 : f32
    %177 = vector.broadcast %cst_169 : f32 to vector<32x13xf32>
    %c0_170 = arith.constant 0 : index
    %c0_171 = arith.constant 0 : index
    %178 = vector.load %arg9[%c0_170, %c0_171] : memref<96x64xf32, #tpu.memory_space<vmem>>, vector<32x13xf32>
    tpu.vector_store %arg9[%c0_170, %c0_171], %177 {strides = array<i32>} : memref<96x64xf32, #tpu.memory_space<vmem>>, vector<32x13xf32>,
    %179 = vector.extract_strided_slice %174 {offsets = [0, 0], sizes = [32, 51], strides = [1, 1]} : vector<32x64xf32> to vector<32x51xf32>
    %c0_172 = arith.constant 0 : index
    %c13_173 = arith.constant 13 : index
    %180 = vector.load %arg9[%c0_172, %c13_173] : memref<96x64xf32, #tpu.memory_space<vmem>>, vector<32x51xf32>
    tpu.vector_store %arg9[%c0_172, %c13_173], %179 {strides = array<i32>} : memref<96x64xf32, #tpu.memory_space<vmem>>, vector<32x51xf32>,
    %cst_174 = arith.constant 0.000000e+00 : f32
    %181 = vector.broadcast %cst_174 : f32 to vector<32x4xf32>
    %c32_175 = arith.constant 32 : index
    %c0_176 = arith.constant 0 : index
    %182 = vector.load %arg9[%c32_175, %c0_176] : memref<96x64xf32, #tpu.memory_space<vmem>>, vector<32x4xf32>
    tpu.vector_store %arg9[%c32_175, %c0_176], %181 {strides = array<i32>} : memref<96x64xf32, #tpu.memory_space<vmem>>, vector<32x4xf32>,
    %183 = vector.extract_strided_slice %174 {offsets = [0, 0], sizes = [32, 60], strides = [1, 1]} : vector<32x64xf32> to vector<32x60xf32>
    %c32_177 = arith.constant 32 : index
    %c4_178 = arith.constant 4 : index
    %184 = vector.load %arg9[%c32_177, %c4_178] : memref<96x64xf32, #tpu.memory_space<vmem>>, vector<32x60xf32>
    tpu.vector_store %arg9[%c32_177, %c4_178], %183 {strides = array<i32>} : memref<96x64xf32, #tpu.memory_space<vmem>>, vector<32x60xf32>,
    %185 = vector.extract_strided_slice %174 {offsets = [0, 5], sizes = [32, 59], strides = [1, 1]} : vector<32x64xf32> to vector<32x59xf32>
    %c64_179 = arith.constant 64 : index
    %c0_180 = arith.constant 0 : index
    %186 = vector.load %arg9[%c64_179, %c0_180] : memref<96x64xf32, #tpu.memory_space<vmem>>, vector<32x59xf32>
    tpu.vector_store %arg9[%c64_179, %c0_180], %185 {strides = array<i32>} : memref<96x64xf32, #tpu.memory_space<vmem>>, vector<32x59xf32>,
    %cst_181 = arith.constant 0.000000e+00 : f32
    %187 = vector.broadcast %cst_181 : f32 to vector<32x5xf32>
    %c64_182 = arith.constant 64 : index
    %c59 = arith.constant 59 : index
    %188 = vector.load %arg9[%c64_182, %c59] : memref<96x64xf32, #tpu.memory_space<vmem>>, vector<32x5xf32>
    tpu.vector_store %arg9[%c64_182, %c59], %187 {strides = array<i32>} : memref<96x64xf32, #tpu.memory_space<vmem>>, vector<32x5xf32>,
    %c0_183 = arith.constant 0 : index
    %c0_184 = arith.constant 0 : index
    %189 = vector.load %arg9[%c0_183, %c0_184] : memref<96x64xf32, #tpu.memory_space<vmem>>, vector<96x64xf32>
    %cst_185 = arith.constant dense<0.000000e+00> : vector<32x64xf32>
    %190 = tpu.matmul %176, %189, %cst_185 {dimension_numbers = #tpu.dot_dimension_numbers<[1], [0], [0], [1], [0, 0, 1, 1], [], []>} : vector<32x96xf32>, vector<96x64xf32>, vector<32x64xf32> -> vector<32x64xf32>
    %191 = arith.addf %174, %190 : vector<32x64xf32>
    %cst_186 = arith.constant 0.000000e+00 : f32
    %192 = vector.broadcast %cst_186 : f32 to vector<32x64xf32>
    %193 = arith.cmpf oge, %191, %192 : vector<32x64xf32>
    %cst_187 = arith.constant 2.000000e-01 : f32
    %194 = vector.broadcast %cst_187 : f32 to vector<32x64xf32>
    %195 = arith.mulf %194, %191 : vector<32x64xf32>
    %196 = arith.select %193, %191, %195 : vector<32x64xi1>, vector<32x64xf32>
    %c3_188 = arith.constant 3 : index
    %c0_189 = arith.constant 0 : index
    %c0_190 = arith.constant 0 : index
    %197 = vector.load %arg4[%c3_188, %c0_189, %c0_190] : memref<8x32x96xf32, #tpu.memory_space<vmem>>, vector<1x32x96xf32>
    %198 = vector.shape_cast %197 : vector<1x32x96xf32> to vector<32x96xf32>
    %cst_191 = arith.constant 0.000000e+00 : f32
    %199 = vector.broadcast %cst_191 : f32 to vector<32x1xf32>
    %c0_192 = arith.constant 0 : index
    %c0_193 = arith.constant 0 : index
    %200 = vector.load %arg9[%c0_192, %c0_193] : memref<96x64xf32, #tpu.memory_space<vmem>>, vector<32x1xf32>
    tpu.vector_store %arg9[%c0_192, %c0_193], %199 {strides = array<i32>} : memref<96x64xf32, #tpu.memory_space<vmem>>, vector<32x1xf32>,
    %201 = vector.extract_strided_slice %196 {offsets = [0, 0], sizes = [32, 63], strides = [1, 1]} : vector<32x64xf32> to vector<32x63xf32>
    %c0_194 = arith.constant 0 : index
    %c1_195 = arith.constant 1 : index
    %202 = vector.load %arg9[%c0_194, %c1_195] : memref<96x64xf32, #tpu.memory_space<vmem>>, vector<32x63xf32>
    tpu.vector_store %arg9[%c0_194, %c1_195], %201 {strides = array<i32>} : memref<96x64xf32, #tpu.memory_space<vmem>>, vector<32x63xf32>,
    %c32_196 = arith.constant 32 : index
    %c0_197 = arith.constant 0 : index
    %203 = vector.load %arg9[%c32_196, %c0_197] : memref<96x64xf32, #tpu.memory_space<vmem>>, vector<32x64xf32>
    tpu.vector_store %arg9[%c32_196, %c0_197], %196 {strides = array<i32>} : memref<96x64xf32, #tpu.memory_space<vmem>>, vector<32x64xf32>,
    %204 = vector.extract_strided_slice %196 {offsets = [0, 1], sizes = [32, 63], strides = [1, 1]} : vector<32x64xf32> to vector<32x63xf32>
    %c64_198 = arith.constant 64 : index
    %c0_199 = arith.constant 0 : index
    %205 = vector.load %arg9[%c64_198, %c0_199] : memref<96x64xf32, #tpu.memory_space<vmem>>, vector<32x63xf32>
    tpu.vector_store %arg9[%c64_198, %c0_199], %204 {strides = array<i32>} : memref<96x64xf32, #tpu.memory_space<vmem>>, vector<32x63xf32>,
    %cst_200 = arith.constant 0.000000e+00 : f32
    %206 = vector.broadcast %cst_200 : f32 to vector<32x1xf32>
    %c64_201 = arith.constant 64 : index
    %c63_202 = arith.constant 63 : index
    %207 = vector.load %arg9[%c64_201, %c63_202] : memref<96x64xf32, #tpu.memory_space<vmem>>, vector<32x1xf32>
    tpu.vector_store %arg9[%c64_201, %c63_202], %206 {strides = array<i32>} : memref<96x64xf32, #tpu.memory_space<vmem>>, vector<32x1xf32>,
    %c0_203 = arith.constant 0 : index
    %c0_204 = arith.constant 0 : index
    %208 = vector.load %arg9[%c0_203, %c0_204] : memref<96x64xf32, #tpu.memory_space<vmem>>, vector<96x64xf32>
    %cst_205 = arith.constant dense<0.000000e+00> : vector<32x64xf32>
    %209 = tpu.matmul %198, %208, %cst_205 {dimension_numbers = #tpu.dot_dimension_numbers<[1], [0], [0], [1], [0, 0, 1, 1], [], []>} : vector<32x96xf32>, vector<96x64xf32>, vector<32x64xf32> -> vector<32x64xf32>
    %210 = arith.addf %196, %209 : vector<32x64xf32>
    %cst_206 = arith.constant 0.000000e+00 : f32
    %211 = vector.broadcast %cst_206 : f32 to vector<32x64xf32>
    %212 = arith.cmpf oge, %210, %211 : vector<32x64xf32>
    %cst_207 = arith.constant 2.000000e-01 : f32
    %213 = vector.broadcast %cst_207 : f32 to vector<32x64xf32>
    %214 = arith.mulf %213, %210 : vector<32x64xf32>
    %215 = arith.select %212, %210, %214 : vector<32x64xi1>, vector<32x64xf32>
    %c4_208 = arith.constant 4 : index
    %c0_209 = arith.constant 0 : index
    %c0_210 = arith.constant 0 : index
    %216 = vector.load %arg4[%c4_208, %c0_209, %c0_210] : memref<8x32x96xf32, #tpu.memory_space<vmem>>, vector<1x32x96xf32>
    %217 = vector.shape_cast %216 : vector<1x32x96xf32> to vector<32x96xf32>
    %cst_211 = arith.constant 0.000000e+00 : f32
    %218 = vector.broadcast %cst_211 : f32 to vector<32x4xf32>
    %c0_212 = arith.constant 0 : index
    %c0_213 = arith.constant 0 : index
    %219 = vector.load %arg9[%c0_212, %c0_213] : memref<96x64xf32, #tpu.memory_space<vmem>>, vector<32x4xf32>
    tpu.vector_store %arg9[%c0_212, %c0_213], %218 {strides = array<i32>} : memref<96x64xf32, #tpu.memory_space<vmem>>, vector<32x4xf32>,
    %220 = vector.extract_strided_slice %215 {offsets = [0, 0], sizes = [32, 60], strides = [1, 1]} : vector<32x64xf32> to vector<32x60xf32>
    %c0_214 = arith.constant 0 : index
    %c4_215 = arith.constant 4 : index
    %221 = vector.load %arg9[%c0_214, %c4_215] : memref<96x64xf32, #tpu.memory_space<vmem>>, vector<32x60xf32>
    tpu.vector_store %arg9[%c0_214, %c4_215], %220 {strides = array<i32>} : memref<96x64xf32, #tpu.memory_space<vmem>>, vector<32x60xf32>,
    %cst_216 = arith.constant 0.000000e+00 : f32
    %222 = vector.broadcast %cst_216 : f32 to vector<32x1xf32>
    %c32_217 = arith.constant 32 : index
    %c0_218 = arith.constant 0 : index
    %223 = vector.load %arg9[%c32_217, %c0_218] : memref<96x64xf32, #tpu.memory_space<vmem>>, vector<32x1xf32>
    tpu.vector_store %arg9[%c32_217, %c0_218], %222 {strides = array<i32>} : memref<96x64xf32, #tpu.memory_space<vmem>>, vector<32x1xf32>,
    %224 = vector.extract_strided_slice %215 {offsets = [0, 0], sizes = [32, 63], strides = [1, 1]} : vector<32x64xf32> to vector<32x63xf32>
    %c32_219 = arith.constant 32 : index
    %c1_220 = arith.constant 1 : index
    %225 = vector.load %arg9[%c32_219, %c1_220] : memref<96x64xf32, #tpu.memory_space<vmem>>, vector<32x63xf32>
    tpu.vector_store %arg9[%c32_219, %c1_220], %224 {strides = array<i32>} : memref<96x64xf32, #tpu.memory_space<vmem>>, vector<32x63xf32>,
    %226 = vector.extract_strided_slice %215 {offsets = [0, 2], sizes = [32, 62], strides = [1, 1]} : vector<32x64xf32> to vector<32x62xf32>
    %c64_221 = arith.constant 64 : index
    %c0_222 = arith.constant 0 : index
    %227 = vector.load %arg9[%c64_221, %c0_222] : memref<96x64xf32, #tpu.memory_space<vmem>>, vector<32x62xf32>
    tpu.vector_store %arg9[%c64_221, %c0_222], %226 {strides = array<i32>} : memref<96x64xf32, #tpu.memory_space<vmem>>, vector<32x62xf32>,
    %cst_223 = arith.constant 0.000000e+00 : f32
    %228 = vector.broadcast %cst_223 : f32 to vector<32x2xf32>
    %c64_224 = arith.constant 64 : index
    %c62_225 = arith.constant 62 : index
    %229 = vector.load %arg9[%c64_224, %c62_225] : memref<96x64xf32, #tpu.memory_space<vmem>>, vector<32x2xf32>
    tpu.vector_store %arg9[%c64_224, %c62_225], %228 {strides = array<i32>} : memref<96x64xf32, #tpu.memory_space<vmem>>, vector<32x2xf32>,
    %c0_226 = arith.constant 0 : index
    %c0_227 = arith.constant 0 : index
    %230 = vector.load %arg9[%c0_226, %c0_227] : memref<96x64xf32, #tpu.memory_space<vmem>>, vector<96x64xf32>
    %cst_228 = arith.constant dense<0.000000e+00> : vector<32x64xf32>
    %231 = tpu.matmul %217, %230, %cst_228 {dimension_numbers = #tpu.dot_dimension_numbers<[1], [0], [0], [1], [0, 0, 1, 1], [], []>} : vector<32x96xf32>, vector<96x64xf32>, vector<32x64xf32> -> vector<32x64xf32>
    %232 = arith.addf %215, %231 : vector<32x64xf32>
    %cst_229 = arith.constant 0.000000e+00 : f32
    %233 = vector.broadcast %cst_229 : f32 to vector<32x64xf32>
    %234 = arith.cmpf oge, %232, %233 : vector<32x64xf32>
    %cst_230 = arith.constant 2.000000e-01 : f32
    %235 = vector.broadcast %cst_230 : f32 to vector<32x64xf32>
    %236 = arith.mulf %235, %232 : vector<32x64xf32>
    %237 = arith.select %234, %232, %236 : vector<32x64xi1>, vector<32x64xf32>
    %c5_231 = arith.constant 5 : index
    %c0_232 = arith.constant 0 : index
    %c0_233 = arith.constant 0 : index
    %238 = vector.load %arg4[%c5_231, %c0_232, %c0_233] : memref<8x32x96xf32, #tpu.memory_space<vmem>>, vector<1x32x96xf32>
    %239 = vector.shape_cast %238 : vector<1x32x96xf32> to vector<32x96xf32>
    %cst_234 = arith.constant 0.000000e+00 : f32
    %240 = vector.broadcast %cst_234 : f32 to vector<32x13xf32>
    %c0_235 = arith.constant 0 : index
    %c0_236 = arith.constant 0 : index
    %241 = vector.load %arg9[%c0_235, %c0_236] : memref<96x64xf32, #tpu.memory_space<vmem>>, vector<32x13xf32>
    tpu.vector_store %arg9[%c0_235, %c0_236], %240 {strides = array<i32>} : memref<96x64xf32, #tpu.memory_space<vmem>>, vector<32x13xf32>,
    %242 = vector.extract_strided_slice %237 {offsets = [0, 0], sizes = [32, 51], strides = [1, 1]} : vector<32x64xf32> to vector<32x51xf32>
    %c0_237 = arith.constant 0 : index
    %c13_238 = arith.constant 13 : index
    %243 = vector.load %arg9[%c0_237, %c13_238] : memref<96x64xf32, #tpu.memory_space<vmem>>, vector<32x51xf32>
    tpu.vector_store %arg9[%c0_237, %c13_238], %242 {strides = array<i32>} : memref<96x64xf32, #tpu.memory_space<vmem>>, vector<32x51xf32>,
    %cst_239 = arith.constant 0.000000e+00 : f32
    %244 = vector.broadcast %cst_239 : f32 to vector<32x4xf32>
    %c32_240 = arith.constant 32 : index
    %c0_241 = arith.constant 0 : index
    %245 = vector.load %arg9[%c32_240, %c0_241] : memref<96x64xf32, #tpu.memory_space<vmem>>, vector<32x4xf32>
    tpu.vector_store %arg9[%c32_240, %c0_241], %244 {strides = array<i32>} : memref<96x64xf32, #tpu.memory_space<vmem>>, vector<32x4xf32>,
    %246 = vector.extract_strided_slice %237 {offsets = [0, 0], sizes = [32, 60], strides = [1, 1]} : vector<32x64xf32> to vector<32x60xf32>
    %c32_242 = arith.constant 32 : index
    %c4_243 = arith.constant 4 : index
    %247 = vector.load %arg9[%c32_242, %c4_243] : memref<96x64xf32, #tpu.memory_space<vmem>>, vector<32x60xf32>
    tpu.vector_store %arg9[%c32_242, %c4_243], %246 {strides = array<i32>} : memref<96x64xf32, #tpu.memory_space<vmem>>, vector<32x60xf32>,
    %248 = vector.extract_strided_slice %237 {offsets = [0, 5], sizes = [32, 59], strides = [1, 1]} : vector<32x64xf32> to vector<32x59xf32>
    %c64_244 = arith.constant 64 : index
    %c0_245 = arith.constant 0 : index
    %249 = vector.load %arg9[%c64_244, %c0_245] : memref<96x64xf32, #tpu.memory_space<vmem>>, vector<32x59xf32>
    tpu.vector_store %arg9[%c64_244, %c0_245], %248 {strides = array<i32>} : memref<96x64xf32, #tpu.memory_space<vmem>>, vector<32x59xf32>,
    %cst_246 = arith.constant 0.000000e+00 : f32
    %250 = vector.broadcast %cst_246 : f32 to vector<32x5xf32>
    %c64_247 = arith.constant 64 : index
    %c59_248 = arith.constant 59 : index
    %251 = vector.load %arg9[%c64_247, %c59_248] : memref<96x64xf32, #tpu.memory_space<vmem>>, vector<32x5xf32>
    tpu.vector_store %arg9[%c64_247, %c59_248], %250 {strides = array<i32>} : memref<96x64xf32, #tpu.memory_space<vmem>>, vector<32x5xf32>,
    %c0_249 = arith.constant 0 : index
    %c0_250 = arith.constant 0 : index
    %252 = vector.load %arg9[%c0_249, %c0_250] : memref<96x64xf32, #tpu.memory_space<vmem>>, vector<96x64xf32>
    %cst_251 = arith.constant dense<0.000000e+00> : vector<32x64xf32>
    %253 = tpu.matmul %239, %252, %cst_251 {dimension_numbers = #tpu.dot_dimension_numbers<[1], [0], [0], [1], [0, 0, 1, 1], [], []>} : vector<32x96xf32>, vector<96x64xf32>, vector<32x64xf32> -> vector<32x64xf32>
    %254 = arith.addf %237, %253 : vector<32x64xf32>
    %cst_252 = arith.constant 0.000000e+00 : f32
    %255 = vector.broadcast %cst_252 : f32 to vector<32x64xf32>
    %256 = arith.cmpf oge, %254, %255 : vector<32x64xf32>
    %cst_253 = arith.constant 2.000000e-01 : f32
    %257 = vector.broadcast %cst_253 : f32 to vector<32x64xf32>
    %258 = arith.mulf %257, %254 : vector<32x64xf32>
    %259 = arith.select %256, %254, %258 : vector<32x64xi1>, vector<32x64xf32>
    %c6 = arith.constant 6 : index
    %c0_254 = arith.constant 0 : index
    %c0_255 = arith.constant 0 : index
    %260 = vector.load %arg4[%c6, %c0_254, %c0_255] : memref<8x32x96xf32, #tpu.memory_space<vmem>>, vector<1x32x96xf32>
    %261 = vector.shape_cast %260 : vector<1x32x96xf32> to vector<32x96xf32>
    %cst_256 = arith.constant 0.000000e+00 : f32
    %262 = vector.broadcast %cst_256 : f32 to vector<32x1xf32>
    %c0_257 = arith.constant 0 : index
    %c0_258 = arith.constant 0 : index
    %263 = vector.load %arg9[%c0_257, %c0_258] : memref<96x64xf32, #tpu.memory_space<vmem>>, vector<32x1xf32>
    tpu.vector_store %arg9[%c0_257, %c0_258], %262 {strides = array<i32>} : memref<96x64xf32, #tpu.memory_space<vmem>>, vector<32x1xf32>,
    %264 = vector.extract_strided_slice %259 {offsets = [0, 0], sizes = [32, 63], strides = [1, 1]} : vector<32x64xf32> to vector<32x63xf32>
    %c0_259 = arith.constant 0 : index
    %c1_260 = arith.constant 1 : index
    %265 = vector.load %arg9[%c0_259, %c1_260] : memref<96x64xf32, #tpu.memory_space<vmem>>, vector<32x63xf32>
    tpu.vector_store %arg9[%c0_259, %c1_260], %264 {strides = array<i32>} : memref<96x64xf32, #tpu.memory_space<vmem>>, vector<32x63xf32>,
    %c32_261 = arith.constant 32 : index
    %c0_262 = arith.constant 0 : index
    %266 = vector.load %arg9[%c32_261, %c0_262] : memref<96x64xf32, #tpu.memory_space<vmem>>, vector<32x64xf32>
    tpu.vector_store %arg9[%c32_261, %c0_262], %259 {strides = array<i32>} : memref<96x64xf32, #tpu.memory_space<vmem>>, vector<32x64xf32>,
    %267 = vector.extract_strided_slice %259 {offsets = [0, 1], sizes = [32, 63], strides = [1, 1]} : vector<32x64xf32> to vector<32x63xf32>
    %c64_263 = arith.constant 64 : index
    %c0_264 = arith.constant 0 : index
    %268 = vector.load %arg9[%c64_263, %c0_264] : memref<96x64xf32, #tpu.memory_space<vmem>>, vector<32x63xf32>
    tpu.vector_store %arg9[%c64_263, %c0_264], %267 {strides = array<i32>} : memref<96x64xf32, #tpu.memory_space<vmem>>, vector<32x63xf32>,
    %cst_265 = arith.constant 0.000000e+00 : f32
    %269 = vector.broadcast %cst_265 : f32 to vector<32x1xf32>
    %c64_266 = arith.constant 64 : index
    %c63_267 = arith.constant 63 : index
    %270 = vector.load %arg9[%c64_266, %c63_267] : memref<96x64xf32, #tpu.memory_space<vmem>>, vector<32x1xf32>
    tpu.vector_store %arg9[%c64_266, %c63_267], %269 {strides = array<i32>} : memref<96x64xf32, #tpu.memory_space<vmem>>, vector<32x1xf32>,
    %c0_268 = arith.constant 0 : index
    %c0_269 = arith.constant 0 : index
    %271 = vector.load %arg9[%c0_268, %c0_269] : memref<96x64xf32, #tpu.memory_space<vmem>>, vector<96x64xf32>
    %cst_270 = arith.constant dense<0.000000e+00> : vector<32x64xf32>
    %272 = tpu.matmul %261, %271, %cst_270 {dimension_numbers = #tpu.dot_dimension_numbers<[1], [0], [0], [1], [0, 0, 1, 1], [], []>} : vector<32x96xf32>, vector<96x64xf32>, vector<32x64xf32> -> vector<32x64xf32>
    %273 = arith.addf %259, %272 : vector<32x64xf32>
    %cst_271 = arith.constant 0.000000e+00 : f32
    %274 = vector.broadcast %cst_271 : f32 to vector<32x64xf32>
    %275 = arith.cmpf oge, %273, %274 : vector<32x64xf32>
    %cst_272 = arith.constant 2.000000e-01 : f32
    %276 = vector.broadcast %cst_272 : f32 to vector<32x64xf32>
    %277 = arith.mulf %276, %273 : vector<32x64xf32>
    %278 = arith.select %275, %273, %277 : vector<32x64xi1>, vector<32x64xf32>
    %c7 = arith.constant 7 : index
    %c0_273 = arith.constant 0 : index
    %c0_274 = arith.constant 0 : index
    %279 = vector.load %arg4[%c7, %c0_273, %c0_274] : memref<8x32x96xf32, #tpu.memory_space<vmem>>, vector<1x32x96xf32>
    %280 = vector.shape_cast %279 : vector<1x32x96xf32> to vector<32x96xf32>
    %cst_275 = arith.constant 0.000000e+00 : f32
    %281 = vector.broadcast %cst_275 : f32 to vector<32x1xf32>
    %c0_276 = arith.constant 0 : index
    %c0_277 = arith.constant 0 : index
    %282 = vector.load %arg9[%c0_276, %c0_277] : memref<96x64xf32, #tpu.memory_space<vmem>>, vector<32x1xf32>
    tpu.vector_store %arg9[%c0_276, %c0_277], %281 {strides = array<i32>} : memref<96x64xf32, #tpu.memory_space<vmem>>, vector<32x1xf32>,
    %283 = vector.extract_strided_slice %278 {offsets = [0, 0], sizes = [32, 63], strides = [1, 1]} : vector<32x64xf32> to vector<32x63xf32>
    %c0_278 = arith.constant 0 : index
    %c1_279 = arith.constant 1 : index
    %284 = vector.load %arg9[%c0_278, %c1_279] : memref<96x64xf32, #tpu.memory_space<vmem>>, vector<32x63xf32>
    tpu.vector_store %arg9[%c0_278, %c1_279], %283 {strides = array<i32>} : memref<96x64xf32, #tpu.memory_space<vmem>>, vector<32x63xf32>,
    %c32_280 = arith.constant 32 : index
    %c0_281 = arith.constant 0 : index
    %285 = vector.load %arg9[%c32_280, %c0_281] : memref<96x64xf32, #tpu.memory_space<vmem>>, vector<32x64xf32>
    tpu.vector_store %arg9[%c32_280, %c0_281], %278 {strides = array<i32>} : memref<96x64xf32, #tpu.memory_space<vmem>>, vector<32x64xf32>,
    %286 = vector.extract_strided_slice %278 {offsets = [0, 1], sizes = [32, 63], strides = [1, 1]} : vector<32x64xf32> to vector<32x63xf32>
    %c64_282 = arith.constant 64 : index
    %c0_283 = arith.constant 0 : index
    %287 = vector.load %arg9[%c64_282, %c0_283] : memref<96x64xf32, #tpu.memory_space<vmem>>, vector<32x63xf32>
    tpu.vector_store %arg9[%c64_282, %c0_283], %286 {strides = array<i32>} : memref<96x64xf32, #tpu.memory_space<vmem>>, vector<32x63xf32>,
    %cst_284 = arith.constant 0.000000e+00 : f32
    %288 = vector.broadcast %cst_284 : f32 to vector<32x1xf32>
    %c64_285 = arith.constant 64 : index
    %c63_286 = arith.constant 63 : index
    %289 = vector.load %arg9[%c64_285, %c63_286] : memref<96x64xf32, #tpu.memory_space<vmem>>, vector<32x1xf32>
    tpu.vector_store %arg9[%c64_285, %c63_286], %288 {strides = array<i32>} : memref<96x64xf32, #tpu.memory_space<vmem>>, vector<32x1xf32>,
    %c0_287 = arith.constant 0 : index
    %c0_288 = arith.constant 0 : index
    %290 = vector.load %arg9[%c0_287, %c0_288] : memref<96x64xf32, #tpu.memory_space<vmem>>, vector<96x64xf32>
    %cst_289 = arith.constant dense<0.000000e+00> : vector<32x64xf32>
    %291 = tpu.matmul %280, %290, %cst_289 {dimension_numbers = #tpu.dot_dimension_numbers<[1], [0], [0], [1], [0, 0, 1, 1], [], []>} : vector<32x96xf32>, vector<96x64xf32>, vector<32x64xf32> -> vector<32x64xf32>
    %292 = arith.addf %278, %291 : vector<32x64xf32>
    %cst_290 = arith.constant 0.000000e+00 : f32
    %293 = vector.broadcast %cst_290 : f32 to vector<32x64xf32>
    %294 = arith.cmpf oge, %292, %293 : vector<32x64xf32>
    %cst_291 = arith.constant 2.000000e-01 : f32
    %295 = vector.broadcast %cst_291 : f32 to vector<32x64xf32>
    %296 = arith.mulf %295, %292 : vector<32x64xf32>
    %297 = arith.select %294, %292, %296 : vector<32x64xi1>, vector<32x64xf32>
    %c0_292 = arith.constant 0 : index
    %c4_293 = arith.constant 4 : index
    %298 = vector.load %arg10[%c0_292, %c4_293] : memref<32x256xf32, #tpu.memory_space<vmem>>, vector<32x64xf32>
    tpu.vector_store %arg10[%c0_292, %c4_293], %297 {strides = array<i32>} : memref<32x256xf32, #tpu.memory_space<vmem>>, vector<32x64xf32>,
    %c0_294 = arith.constant 0 : index
    %c0_295 = arith.constant 0 : index
    %299 = vector.load %arg6[%c0_294, %c0_295] : memref<8x32xf32, #tpu.memory_space<vmem>>, vector<8x32xf32>
    %c0_296 = arith.constant 0 : index
    %c0_297 = arith.constant 0 : index
    %300 = vector.load %arg10[%c0_296, %c0_297] : memref<32x256xf32, #tpu.memory_space<vmem>>, vector<32x256xf32>
    %cst_298 = arith.constant dense<0.000000e+00> : vector<8x256xf32>
    %301 = tpu.matmul %299, %300, %cst_298 {dimension_numbers = #tpu.dot_dimension_numbers<[1], [0], [0], [1], [0, 0, 1, 1], [], []>} : vector<8x32xf32>, vector<32x256xf32>, vector<8x256xf32> -> vector<8x256xf32>
    %302 = vector.extract_strided_slice %301 {offsets = [0, 0], sizes = [1, 128], strides = [1, 1]} : vector<8x256xf32> to vector<1x128xf32>
    %303 = vector.extract_strided_slice %301 {offsets = [1, 1], sizes = [1, 128], strides = [1, 1]} : vector<8x256xf32> to vector<1x128xf32>
    %304 = arith.addf %302, %303 : vector<1x128xf32>
    %305 = vector.extract_strided_slice %301 {offsets = [2, 2], sizes = [1, 128], strides = [1, 1]} : vector<8x256xf32> to vector<1x128xf32>
    %306 = arith.addf %304, %305 : vector<1x128xf32>
    %307 = vector.extract_strided_slice %301 {offsets = [3, 3], sizes = [1, 128], strides = [1, 1]} : vector<8x256xf32> to vector<1x128xf32>
    %308 = arith.addf %306, %307 : vector<1x128xf32>
    %309 = vector.extract_strided_slice %301 {offsets = [4, 4], sizes = [1, 128], strides = [1, 1]} : vector<8x256xf32> to vector<1x128xf32>
    %310 = arith.addf %308, %309 : vector<1x128xf32>
    %311 = vector.extract_strided_slice %301 {offsets = [5, 5], sizes = [1, 128], strides = [1, 1]} : vector<8x256xf32> to vector<1x128xf32>
    %312 = arith.addf %310, %311 : vector<1x128xf32>
    %313 = vector.extract_strided_slice %301 {offsets = [6, 6], sizes = [1, 128], strides = [1, 1]} : vector<8x256xf32> to vector<1x128xf32>
    %314 = arith.addf %312, %313 : vector<1x128xf32>
    %315 = vector.extract_strided_slice %301 {offsets = [7, 7], sizes = [1, 128], strides = [1, 1]} : vector<8x256xf32> to vector<1x128xf32>
    %316 = arith.addf %314, %315 : vector<1x128xf32>
    %c0_299 = arith.constant 0 : index
    %317 = memref.load %arg7[%c0_299] : memref<1xf32, #tpu.memory_space<smem>>
    %318 = math.absf %317 : f32
    %319 = vector.broadcast %318 : f32 to vector<1x128xf32>
    %320 = arith.mulf %316, %319 : vector<1x128xf32>
    %c0_300 = arith.constant 0 : index
    %c0_301 = arith.constant 0 : index
    %c0_302 = arith.constant 0 : index
    %321 = vector.load %arg8[%c0_300, %c0_301, %c0_302] : memref<1x1x128xf32, #tpu.memory_space<vmem>>, vector<1x1x128xf32>
    %322 = vector.shape_cast %321 : vector<1x1x128xf32> to vector<1x128xf32>
    %323 = vector.shape_cast %320 : vector<1x128xf32> to vector<1x1x128xf32>
    tpu.vector_store %arg8[%c0_300, %c0_301, %c0_302], %323 {strides = array<i32>} : memref<1x1x128xf32, #tpu.memory_space<vmem>>, vector<1x1x128xf32>,
    return
  }
  func.func @transform_0(%arg0: i32) -> (i32, i32, i32) {
    %c0_i32 = arith.constant 0 : i32
    %c0_i32_0 = arith.constant 0 : i32
    %c0_i32_1 = arith.constant 0 : i32
    return %arg0, %c0_i32, %c0_i32_0 : i32, i32, i32
  }
  func.func @transform_1(%arg0: i32) -> (i32, i32) {
    %c0_i32 = arith.constant 0 : i32
    %c0_i32_0 = arith.constant 0 : i32
    %c0_i32_1 = arith.constant 0 : i32
    return %c0_i32, %c0_i32_0 : i32, i32
  }
  func.func @transform_2(%arg0: i32) -> (i32, i32, i32) {
    %c0_i32 = arith.constant 0 : i32
    %c0_i32_0 = arith.constant 0 : i32
    %c0_i32_1 = arith.constant 0 : i32
    %c0_i32_2 = arith.constant 0 : i32
    return %c0_i32, %c0_i32_0, %c0_i32_1 : i32, i32, i32
  }
  func.func @transform_3(%arg0: i32) -> (i32, i32, i32) {
    %c0_i32 = arith.constant 0 : i32
    %c0_i32_0 = arith.constant 0 : i32
    %c0_i32_1 = arith.constant 0 : i32
    %c0_i32_2 = arith.constant 0 : i32
    return %c0_i32, %c0_i32_0, %c0_i32_1 : i32, i32, i32
  }
  func.func @transform_4(%arg0: i32) -> (i32, i32) {
    %c0_i32 = arith.constant 0 : i32
    %c0_i32_0 = arith.constant 0 : i32
    %c0_i32_1 = arith.constant 0 : i32
    return %c0_i32, %c0_i32_0 : i32, i32
  }
  func.func @transform_5(%arg0: i32) -> (i32, i32) {
    %c0_i32 = arith.constant 0 : i32
    %c0_i32_0 = arith.constant 0 : i32
    %c0_i32_1 = arith.constant 0 : i32
    return %c0_i32, %c0_i32_0 : i32, i32
  }
  func.func @transform_6(%arg0: i32) -> i32 {
    %c0_i32 = arith.constant 0 : i32
    %c0_i32_0 = arith.constant 0 : i32
    return %c0_i32 : i32
  }
  func.func @transform_7(%arg0: i32) -> (i32, i32, i32) {
    %c0_i32 = arith.constant 0 : i32
    %c0_i32_0 = arith.constant 0 : i32
    %c0_i32_1 = arith.constant 0 : i32
    return %arg0, %c0_i32, %c0_i32_0 : i32, i32, i32
  }
}

</mosaic_0001>

<llo_original>
// kernel: tpu_custom_call.1
$region0: #{tpu_custom_call.1}
  #allocation0 [shape = 'u32[]', space=smem, size = 0x4, offset = 0x4, fixed_abs, tag = 'smem constant byte address 0x4 - core index']
  #allocation1 [shape = 'u32[144,128]{1,0:T(1,128)}', space=vmem, size = 0x12000, scoped, tag = 'internal scratch']
  #allocation2 [shape = 'f32[96,64]{1,0:T(8,128)}', space=vmem, size = 0xc000, scoped, tag = 'scratch operand']
  #allocation3 [shape = 'f32[32,256]{1,0:T(8,128)}', space=vmem, size = 0x8000, scoped, tag = 'scratch operand']
  #allocation4 [shape = 'f32[1]{0:T(128)S(6)}', space=smem, size = 0x200, scoped, tag = 'scoped memory for tpu_custom_call.1']
  %s0 = inlined_call_operand.vmem [shape: f32[2,6,16], index: 0, kind: input, shape index: {}]
  %s1 = inlined_call_operand.vmem [shape: f32[32,6], index: 1, kind: input, shape index: {}]
  %s2 = inlined_call_operand.hbm [shape: f32[6,32,96], index: 2, kind: input, shape index: {}]
  %s3 = inlined_call_operand.hbm [shape: f32[8,32,96], index: 3, kind: input, shape index: {}]
  %s4 = inlined_call_operand.vmem [shape: f32[16,64], index: 4, kind: input, shape index: {}]
  %s5 = inlined_call_operand.vmem [shape: f32[8,32], index: 5, kind: input, shape index: {}]
  %s6 = inlined_call_operand.<no memory space> [shape: f32[1], index: 6, kind: input, shape index: {}]
  %s7 = inlined_call_operand.hbm [shape: f32[2,1,128], index: 7, kind: output, shape index: {}]
  %s8 = sld [smem:[#allocation0]]
  $region73: #{tpu_custom_call.1} parent=0
    _
  %s10 = ssub.s32 1, %s8
  %s11 = scalar_select 0, %s10, %s8
  %12 = sst [smem:[#allocation4]] %s6
  $region1: #{tpu_custom_call.1} parent=0
    #allocation5 [shape = 'u8[98304]{0}', space=vmem, size = 0x18000, scoped, tag = 'input window, operand 2, single buffered']
    #allocation6 [shape = 's32[2]{0}', space=sflag, size = 0x8, scoped, tag = 'scoped memory for tpu_custom_call.1']
    #allocation7 [shape = 's32[2]{0}', space=sflag, size = 0x8, scoped, tag = 'scoped memory for tpu_custom_call.1']
    #allocation8 [shape = 'u8[131072]{0}', space=vmem, size = 0x20000, scoped, tag = 'input window, operand 3, single buffered']
    #allocation9 [shape = 's32[1]{0}', space=sflag, size = 0x4, scoped, tag = 'scoped memory for tpu_custom_call.1']
    #allocation10 [shape = 'u8[1024]{0}', space=vmem, size = 0x400, scoped, tag = 'output window, operand 0']
    %13 = vsyncpa [#allocation6], 0
    %14 = vsyncpa [#allocation9], 0
    %15 = vsyncpa [#allocation7], 0
    %s16 = scalar_lea.sflag [#allocation7], 1
    %17 = vsyncpa %s16, 0
    loop: start=0, step=1, limit=4
    $region2: #{tpu_custom_call.1} parent=1 // loop_pre_header
      _
    $region3: #{tpu_custom_call.1} parent=1 // loop_header
      %s19 = sphi 0, %s23
      %p20 = scmp.ge.s32.totalorder %s19, 4
      %s29 = sphi 0, %s31
      %s32 = sphi 0, %s29
      %s33 = sphi 0, %s32
      %s49 = sphi 0, %s33
      %s53 = sphi 0, %s53
      %s55 = sphi 0, %s53
      %s56 = sphi 0, %s55
      %s70 = sphi 0, %s56
      %s74 = sphi 0, %s74
      %s76 = sphi 0, %s74
      %s77 = sphi 0, %s76
      %s91 = sphi 0, %s77
      %s95 = sphi 0, %s95
      %s97 = sphi 0, %s95
      %s98 = sphi 0, %s97
      %s112 = sphi 0, %s98
      %s116 = sphi 0, %s116
      %s118 = sphi 0, %s116
      %s119 = sphi 0, %s118
      %s133 = sphi 0, %s119
      %s137 = sphi 0, %s137
      %s139 = sphi 0, %s137
      %s140 = sphi 0, %s139
      %s154 = sphi 0, %s140
      %s158 = sphi 0, %s158
      %s160 = sphi 0, %s158
      %s161 = sphi 0, %s160
      %s175 = sphi 0, %s161
      %s181 = sphi 0, %s183
      %s184 = sphi 0, %s181
      %s185 = sphi 0, %s184
      %s201 = sphi 0, %s185
    $region4: #{tpu_custom_call.1} parent=1 // loop_header_branch
      %22 = sbr.rel (%p20) target = $region8
    $region5: #{tpu_custom_call.1} parent=1 // loop_body
      %s24 = ssub.s32 %s19, 1
      %s25 = ssub.s32 %s19, 2
      %s26 = sadd.s32 %s19, 1
      %s27 = ssub.s32 %s19, %s26
      %p28 = scmp.eq.s32.totalorder %s27, 0
      %s30 = sadd.s32 %s29, 1
      %s31 = scalar_select %p28, %s29, %s30
      %p34 = pneg %p28
      %p35 = scmp.eq.s32.totalorder %s19, 1
      %p36 = por %p34, %p35
      %p37 = scmp.ne.s32.totalorder %s29, %s32
      %p38 = scmp.eq.s32.totalorder %s19, 0
      %p39 = por %p37, %p38
      %p40 = scmp.ne.s32.totalorder %s29, %s32
      %p41 = scmp.eq.s32.totalorder %s24, 1
      %p42 = por %p40, %p41
      %p43 = scmp.ne.s32.totalorder %s32, %s33
      %p44 = scmp.eq.s32.totalorder %s24, 0
      %p45 = por %p43, %p44
      %p46 = scmp.ne.s32.totalorder %s32, %s33
      %p47 = scmp.eq.s32.totalorder %s25, 1
      %p48 = por %p46, %p47
      %p50 = scmp.ne.s32.totalorder %s33, %s49
      %p51 = scmp.eq.s32.totalorder %s25, 0
      %p52 = por %p50, %p51
      %s54 = sadd.s32 %s53, 1
      %p57 = scmp.eq.s32.totalorder %s19, 1
      %p58 = scmp.ne.s32.totalorder %s53, %s55
      %p59 = scmp.eq.s32.totalorder %s19, 0
      %p60 = por %p58, %p59
      %p61 = scmp.ne.s32.totalorder %s53, %s55
      %p62 = scmp.eq.s32.totalorder %s24, 1
      %p63 = por %p61, %p62
      %p64 = scmp.ne.s32.totalorder %s55, %s56
      %p65 = scmp.eq.s32.totalorder %s24, 0
      %p66 = por %p64, %p65
      %p67 = scmp.ne.s32.totalorder %s55, %s56
      %p68 = scmp.eq.s32.totalorder %s25, 1
      %p69 = por %p67, %p68
      %p71 = scmp.ne.s32.totalorder %s56, %s70
      %p72 = scmp.eq.s32.totalorder %s25, 0
      %p73 = por %p71, %p72
      %s75 = sadd.s32 %s74, 1
      %p78 = scmp.eq.s32.totalorder %s19, 1
      %p79 = scmp.ne.s32.totalorder %s74, %s76
      %p80 = scmp.eq.s32.totalorder %s19, 0
      %p81 = por %p79, %p80
      %p82 = scmp.ne.s32.totalorder %s74, %s76
      %p83 = scmp.eq.s32.totalorder %s24, 1
      %p84 = por %p82, %p83
      %p85 = scmp.ne.s32.totalorder %s76, %s77
      %p86 = scmp.eq.s32.totalorder %s24, 0
      %p87 = por %p85, %p86
      %p88 = scmp.ne.s32.totalorder %s76, %s77
      %p89 = scmp.eq.s32.totalorder %s25, 1
      %p90 = por %p88, %p89
      %p92 = scmp.ne.s32.totalorder %s77, %s91
      %p93 = scmp.eq.s32.totalorder %s25, 0
      %p94 = por %p92, %p93
      %s96 = sadd.s32 %s95, 1
      %p99 = scmp.eq.s32.totalorder %s19, 1
      %p100 = scmp.ne.s32.totalorder %s95, %s97
      %p101 = scmp.eq.s32.totalorder %s19, 0
      %p102 = por %p100, %p101
      %p103 = scmp.ne.s32.totalorder %s95, %s97
      %p104 = scmp.eq.s32.totalorder %s24, 1
      %p105 = por %p103, %p104
      %p106 = scmp.ne.s32.totalorder %s97, %s98
      %p107 = scmp.eq.s32.totalorder %s24, 0
      %p108 = por %p106, %p107
      %p109 = scmp.ne.s32.totalorder %s97, %s98
      %p110 = scmp.eq.s32.totalorder %s25, 1
      %p111 = por %p109, %p110
      %p113 = scmp.ne.s32.totalorder %s98, %s112
      %p114 = scmp.eq.s32.totalorder %s25, 0
      %p115 = por %p113, %p114
      %s117 = sadd.s32 %s116, 1
      %p120 = scmp.eq.s32.totalorder %s19, 1
      %p121 = scmp.ne.s32.totalorder %s116, %s118
      %p122 = scmp.eq.s32.totalorder %s19, 0
      %p123 = por %p121, %p122
      %p124 = scmp.ne.s32.totalorder %s116, %s118
      %p125 = scmp.eq.s32.totalorder %s24, 1
      %p126 = por %p124, %p125
      %p127 = scmp.ne.s32.totalorder %s118, %s119
      %p128 = scmp.eq.s32.totalorder %s24, 0
      %p129 = por %p127, %p128
      %p130 = scmp.ne.s32.totalorder %s118, %s119
      %p131 = scmp.eq.s32.totalorder %s25, 1
      %p132 = por %p130, %p131
      %p134 = scmp.ne.s32.totalorder %s119, %s133
      %p135 = scmp.eq.s32.totalorder %s25, 0
      %p136 = por %p134, %p135
      %s138 = sadd.s32 %s137, 1
      %p141 = scmp.eq.s32.totalorder %s19, 1
      %p142 = scmp.ne.s32.totalorder %s137, %s139
      %p143 = scmp.eq.s32.totalorder %s19, 0
      %p144 = por %p142, %p143
      %p145 = scmp.ne.s32.totalorder %s137, %s139
      %p146 = scmp.eq.s32.totalorder %s24, 1
      %p147 = por %p145, %p146
      %p148 = scmp.ne.s32.totalorder %s139, %s140
      %p149 = scmp.eq.s32.totalorder %s24, 0
      %p150 = por %p148, %p149
      %p151 = scmp.ne.s32.totalorder %s139, %s140
      %p152 = scmp.eq.s32.totalorder %s25, 1
      %p153 = por %p151, %p152
      %p155 = scmp.ne.s32.totalorder %s140, %s154
      %p156 = scmp.eq.s32.totalorder %s25, 0
      %p157 = por %p155, %p156
      %s159 = sadd.s32 %s158, 1
      %p162 = scmp.eq.s32.totalorder %s19, 1
      %p163 = scmp.ne.s32.totalorder %s158, %s160
      %p164 = scmp.eq.s32.totalorder %s19, 0
      %p165 = por %p163, %p164
      %p166 = scmp.ne.s32.totalorder %s158, %s160
      %p167 = scmp.eq.s32.totalorder %s24, 1
      %p168 = por %p166, %p167
      %p169 = scmp.ne.s32.totalorder %s160, %s161
      %p170 = scmp.eq.s32.totalorder %s24, 0
      %p171 = por %p169, %p170
      %p172 = scmp.ne.s32.totalorder %s160, %s161
      %p173 = scmp.eq.s32.totalorder %s25, 1
      %p174 = por %p172, %p173
      %p176 = scmp.ne.s32.totalorder %s161, %s175
      %p177 = scmp.eq.s32.totalorder %s25, 0
      %p178 = por %p176, %p177
      %s179 = ssub.s32 %s19, %s26
      %p180 = scmp.eq.s32.totalorder %s179, 0
      %s182 = sadd.s32 %s181, 1
      %s183 = scalar_select %p180, %s181, %s182
      %p186 = pneg %p180
      %p187 = scmp.eq.s32.totalorder %s19, 1
      %p188 = por %p186, %p187
      %p189 = scmp.ne.s32.totalorder %s181, %s184
      %p190 = scmp.eq.s32.totalorder %s19, 0
      %p191 = por %p189, %p190
      %p192 = scmp.ne.s32.totalorder %s181, %s184
      %p193 = scmp.eq.s32.totalorder %s24, 1
      %p194 = por %p192, %p193
      %p195 = scmp.ne.s32.totalorder %s184, %s185
      %p196 = scmp.eq.s32.totalorder %s24, 0
      %p197 = por %p195, %p196
      %p198 = scmp.ne.s32.totalorder %s184, %s185
      %p199 = scmp.eq.s32.totalorder %s25, 1
      %p200 = por %p198, %p199
      %p202 = scmp.ne.s32.totalorder %s185, %s201
      %p203 = scmp.eq.s32.totalorder %s25, 0
      %p204 = por %p202, %p203
      %p205 = scmp.le.s32.totalorder 1, %s19
      %p206 = scmp.lt.s32.totalorder %s19, 3
      %p207 = pnand %p205, %p206
      %p208 = pneg %p207
      // Predicated region
      $region9: #{tpu_custom_call.1} parent=5 // pred_check
        _
      $region10: #{tpu_custom_call.1} parent=5 // pred_check_branch
        %210 = sbr.rel (%p207) target = $region12
      $region11: #{tpu_custom_call.1} parent=5 // pred_region
        %s211 = ssub.s32 %s19, 1
        // Predicated region
        $region13: #{tpu_custom_call.1} parent=11 // pred_check
          %p212 = pneg %p66
        $region14: #{tpu_custom_call.1} parent=11 // pred_check_branch
          %214 = sbr.rel (%p212) target = $region16
        $region15: #{tpu_custom_call.1} parent=11 // pred_region
          _
        $region16: #{tpu_custom_call.1} parent=11 // pred_fallthru
          _
        // Predicated region
        $region17: #{tpu_custom_call.1} parent=11 // pred_check
          %p215 = pneg %p87
        $region18: #{tpu_custom_call.1} parent=11 // pred_check_branch
          %217 = sbr.rel (%p215) target = $region20
        $region19: #{tpu_custom_call.1} parent=11 // pred_region
          %s219 = ssub.s32 3072, 3072
          %220 = vsyncadd [#allocation6], %s219
          %s221 = sshll.u32 [#allocation5], 4
          %s222 = int_to_ptr.vmem [resolvable:$true] %s221
          %227 = dma.hbm_to_vmem [thread:$0]  %s2, 3072, %s222, [#allocation6], 128, 128, 8
        $region20: #{tpu_custom_call.1} parent=11 // pred_fallthru
          _
        // Predicated region
        $region21: #{tpu_custom_call.1} parent=11 // pred_check
          %p228 = pneg %p108
        $region22: #{tpu_custom_call.1} parent=11 // pred_check_branch
          %230 = sbr.rel (%p228) target = $region24
        $region23: #{tpu_custom_call.1} parent=11 // pred_region
          %s232 = ssub.s32 4096, 4096
          %233 = vsyncadd [#allocation9], %s232
          %s234 = sshll.u32 [#allocation8], 4
          %s235 = int_to_ptr.vmem [resolvable:$true] %s234
          %240 = dma.hbm_to_vmem [thread:$0]  %s3, 4096, %s235, [#allocation9], 128, 128, 8
        $region24: #{tpu_custom_call.1} parent=11 // pred_fallthru
          _
        // Predicated region
        $region25: #{tpu_custom_call.1} parent=11 // pred_check
          %p241 = pneg %p129
        $region26: #{tpu_custom_call.1} parent=11 // pred_check_branch
          %243 = sbr.rel (%p241) target = $region28
        $region27: #{tpu_custom_call.1} parent=11 // pred_region
          _
        $region28: #{tpu_custom_call.1} parent=11 // pred_fallthru
          _
        // Predicated region
        $region29: #{tpu_custom_call.1} parent=11 // pred_check
          %p244 = pneg %p150
        $region30: #{tpu_custom_call.1} parent=11 // pred_check_branch
          %246 = sbr.rel (%p244) target = $region32
        $region31: #{tpu_custom_call.1} parent=11 // pred_region
          _
        $region32: #{tpu_custom_call.1} parent=11 // pred_fallthru
          _
        // Predicated region
        $region33: #{tpu_custom_call.1} parent=11 // pred_check
          %p247 = pneg %p171
        $region34: #{tpu_custom_call.1} parent=11 // pred_check_branch
          %249 = sbr.rel (%p247) target = $region36
        $region35: #{tpu_custom_call.1} parent=11 // pred_region
          _
        $region36: #{tpu_custom_call.1} parent=11 // pred_fallthru
          _
      $region12: #{tpu_custom_call.1} parent=5 // pred_fallthru
        _
      %p250 = scmp.lt.s32.totalorder %s19, 2
      // Predicated region
      $region37: #{tpu_custom_call.1} parent=5 // pred_check
        %p251 = pneg %p250
      $region38: #{tpu_custom_call.1} parent=5 // pred_check_branch
        %253 = sbr.rel (%p251) target = $region40
      $region39: #{tpu_custom_call.1} parent=5 // pred_region
        // Predicated region
        $region41: #{tpu_custom_call.1} parent=39 // pred_check
          %p254 = pneg %p39
        $region42: #{tpu_custom_call.1} parent=39 // pred_check_branch
          %256 = sbr.rel (%p254) target = $region44
        $region43: #{tpu_custom_call.1} parent=39 // pred_region
          %p257 = scmp.lt.s32.totalorder %s19, 1
          %s258 = scalar_select %p257, %s19, 1
          %s259 = smul.addr %s258, 8
          %s260 = scalar_lea.vmem %s0, %s259
        $region44: #{tpu_custom_call.1} parent=39 // pred_fallthru
          _
      $region40: #{tpu_custom_call.1} parent=5 // pred_fallthru
        _
      %p261 = scmp.le.s32.totalorder 1, %s19
      %p262 = scmp.lt.s32.totalorder %s19, 3
      %p263 = pnand %p261, %p262
      %p264 = pneg %p263
      // Predicated region
      $region45: #{tpu_custom_call.1} parent=5 // pred_check
        _
      $region46: #{tpu_custom_call.1} parent=5 // pred_check_branch
        %266 = sbr.rel (%p263) target = $region48
      $region47: #{tpu_custom_call.1} parent=5 // pred_region
        %s267 = ssub.s32 %s19, 1
        // Predicated region
        $region49: #{tpu_custom_call.1} parent=47 // pred_check
          %p268 = pneg %p87
        $region50: #{tpu_custom_call.1} parent=47 // pred_check_branch
          %270 = sbr.rel (%p268) target = $region52
        $region51: #{tpu_custom_call.1} parent=47 // pred_region
          %271 = dma.done [#allocation6], 3072
        $region52: #{tpu_custom_call.1} parent=47 // pred_fallthru
          _
        // Predicated region
        $region53: #{tpu_custom_call.1} parent=47 // pred_check
          %p272 = pneg %p108
        $region54: #{tpu_custom_call.1} parent=47 // pred_check_branch
          %274 = sbr.rel (%p272) target = $region56
        $region55: #{tpu_custom_call.1} parent=47 // pred_region
          %275 = dma.done [#allocation9], 4096
        $region56: #{tpu_custom_call.1} parent=47 // pred_fallthru
          _
        %p276 = scmp.lt.s32.totalorder %s24, 1
        %s277 = scalar_select %p276, %s24, 1
        %s278 = smul.addr %s277, 8
        %s279 = scalar_lea.vmem %s0, %s278
        %p280 = pneg %p45
        %p281 = pneg %p42
        %p282 = pneg %p66
        %p283 = pneg %p63
        %p284 = pneg %p87
        %p285 = pneg %p84
        %p286 = pneg %p108
        %p287 = pneg %p105
        %p288 = pneg %p129
        %p289 = pneg %p126
        %p290 = pneg %p150
        %p291 = pneg %p147
        %p292 = pneg %p171
        %p293 = pneg %p168
        %p294 = pneg %p197
        %p295 = pneg %p194
        %s296 = sand.u32 %s184, 1
        %s297 = scalar_lea.sflag [#allocation7], %s296
        %s298 = sand.u32 %s184, 1
        %s299 = scalar_lea.vmem [#allocation10], %s298
        %p300 = scmp.lt.s32.totalorder %s24, 1
        %s301 = scalar_select %p300, %s24, 1
        %s302 = smul.addr %s301, 8
        %s303 = scalar_lea.vmem %s0, %s302
        %p304 = scmp.eq.s32.totalorder %s24, 0
        // Predicated region
        $region57: #{tpu_custom_call.1} parent=47 // pred_check
          %p305 = pneg %p304
        $region58: #{tpu_custom_call.1} parent=47 // pred_check_branch
          %307 = sbr.rel (%p305) target = $region60
        $region59: #{tpu_custom_call.1} parent=47 // pred_region
          %vm308 = vcmask 31744
          %309 = vst.msk [vmem:[#allocation3] sm:$0xff] %vm308, 0.0
          %310 = vst.msk [vmem:[#allocation3 + $0x10] sm:$0xff] %vm308, 0.0
          %311 = vst.msk [vmem:[#allocation3 + $0x20] sm:$0xff] %vm308, 0.0
          %312 = vst.msk [vmem:[#allocation3 + $0x30] sm:$0xff] %vm308, 0.0
          %vm313 = vcmask 1048096
          %314 = vst.msk [vmem:[#allocation3] sm:$0xff] %vm313, 0.0
          %315 = vst [vmem:[#allocation3 + $0x8] sm:$0xff] 0.0
          %316 = vst.msk [vmem:[#allocation3 + $0x10] sm:$0xff] %vm313, 0.0
          %317 = vst [vmem:[#allocation3 + $0x18] sm:$0xff] 0.0
          %318 = vst.msk [vmem:[#allocation3 + $0x20] sm:$0xff] %vm313, 0.0
          %319 = vst [vmem:[#allocation3 + $0x28] sm:$0xff] 0.0
          %320 = vst.msk [vmem:[#allocation3 + $0x30] sm:$0xff] %vm313, 0.0
          %321 = vst [vmem:[#allocation3 + $0x38] sm:$0xff] 0.0
        $region60: #{tpu_custom_call.1} parent=47 // pred_fallthru
          _
        %v322 = vld [vmem:[%s303] sm:$0x3f]
        %v323 = vld [vmem:[%s1] sm:$0xff]
        %v324 = vld [vmem:[%s1 + $0x8] sm:$0xff]
        %v325 = vld [vmem:[%s1 + $0x10] sm:$0xff]
        %v326 = vld [vmem:[%s1 + $0x18] sm:$0xff]
        %vm327 = vcmask 48128
        %v329 = vsel %vm327, %v323, 0
        %v332 = vsel %vm327, %v324, 0
        %v335 = vsel %vm327, %v325, 0
        %v338 = vsel %vm327, %v326, 0
        %vm340 = vcmask 1045504
        %v342 = vsel %vm340, %v322, 0
        %344 = vmatprep.subr.mxu0 0.0
        %345 = vmatpush1.msra.mxu0 0.0
        %346 = vmatprep.subr.mxu0 0.0
        %347 = vmatpush1.msra.mxu0 0.0
        %348 = vmatprep.subr.mxu0 0.0
        %349 = vmatpush1.msra.mxu0 0.0
        %350 = vmatprep.subr.mxu0 0.0
        %351 = vmatpush1.msra.mxu0 0.0
        %352 = vmatprep.subr.mxu0 0.0
        %353 = vmatpush1.msra.mxu0 0.0
        %354 = vmatprep.subr.mxu0 0.0
        %355 = vmatpush1.msra.mxu0 0.0
        %356 = vmatprep.subr.mxu0 0.0
        %357 = vmatpush1.msra.mxu0 0.0
        %358 = vmatprep.subr.mxu0 0.0
        %359 = vmatpush1.msra.mxu0 0.0
        %360 = vmatprep.subr.mxu0 0.0
        %361 = vmatpush1.msra.mxu0 0.0
        %362 = vmatprep.subr.mxu0 0.0
        %363 = vmatpush1.msra.mxu0 0.0
        %364 = vmatprep.subr.mxu0 0.0
        %365 = vmatpush1.msra.mxu0 0.0
        %366 = vmatprep.subr.mxu0 0.0
        %367 = vmatpush1.msra.mxu0 0.0
        %368 = vmatprep.subr.mxu0 0.0
        %369 = vmatpush1.msra.mxu0 0.0
        %370 = vmatprep.subr.mxu0 0.0
        %371 = vmatpush1.msra.mxu0 0.0
        %372 = vmatprep.subr.mxu0 0.0
        %373 = vmatpush1.msra.mxu0 0.0
        %374 = vmatprep.subr.mxu0 0.0
        %375 = vmatpush1.msra.mxu0 %v342
        %376 = vmatprep.subr.mxu0 0.0
        %377 = vmatpush2.msra.mxu0 0.0
        %378 = vmatprep.subr.mxu0 0.0
        %379 = vmatpush2.msra.mxu0 0.0
        %380 = vmatprep.subr.mxu0 0.0
        %381 = vmatpush2.msra.mxu0 0.0
        %382 = vmatprep.subr.mxu0 0.0
        %383 = vmatpush2.msra.mxu0 0.0
        %384 = vmatprep.subr.mxu0 0.0
        %385 = vmatpush2.msra.mxu0 0.0
        %386 = vmatprep.subr.mxu0 0.0
        %387 = vmatpush2.msra.mxu0 0.0
        %388 = vmatprep.subr.mxu0 0.0
        %389 = vmatpush2.msra.mxu0 0.0
        %390 = vmatprep.subr.mxu0 0.0
        %391 = vmatpush2.msra.mxu0 0.0
        %392 = vmatprep.subr.mxu0 0.0
        %393 = vmatpush2.msra.mxu0 0.0
        %394 = vmatprep.subr.mxu0 0.0
        %395 = vmatpush2.msra.mxu0 0.0
        %396 = vmatprep.subr.mxu0 0.0
        %397 = vmatpush2.msra.mxu0 0.0
        %398 = vmatprep.subr.mxu0 0.0
        %399 = vmatpush2.msra.mxu0 0.0
        %400 = vmatprep.subr.mxu0 0.0
        %401 = vmatpush2.msra.mxu0 0.0
        %402 = vmatprep.subr.mxu0 0.0
        %403 = vmatpush2.msra.mxu0 0.0
        %404 = vmatprep.subr.mxu0 0.0
        %405 = vmatpush2.msra.mxu0 0.0
        %406 = vmatprep.subr.mxu0 0.0
        %407 = vmatpush2.msra.mxu0 0.0
        %408 = vmatprep.mubr.f32.mxu0 0.0
        %409 = vmatmul.mubr.f32.gmra.mxu0 %v329
        %v410 = vpop.f32.mrf.mxu0
        %v411 = vadd.f32 0.0, %v410
        %v412 = vpop.f32.mrf.mxu0
        %413 = vmatprep.mubr.f32.mxu0 0.0
        %414 = vmatmul.mubr.f32.gmra.mxu0 %v332
        %v415 = vpop.f32.mrf.mxu0
        %v416 = vadd.f32 0.0, %v415
        %v417 = vpop.f32.mrf.mxu0
        %418 = vmatprep.mubr.f32.mxu0 0.0
        %419 = vmatmul.mubr.f32.gmra.mxu0 %v335
        %v420 = vpop.f32.mrf.mxu0
        %v421 = vadd.f32 0.0, %v420
        %v422 = vpop.f32.mrf.mxu0
        %423 = vmatprep.mubr.f32.mxu0 0.0
        %424 = vmatmul.mubr.f32.gmra.mxu0 %v338
        %v425 = vpop.f32.mrf.mxu0
        %v426 = vadd.f32 0.0, %v425
        %v427 = vpop.f32.mrf.mxu0
        %428 = vdwg.mxu0
        %vm429 = vcmp.ge.f32.partialorder %v411, 0.0
        %vm430 = vcmp.ge.f32.partialorder %v416, 0.0
        %vm431 = vcmp.ge.f32.partialorder %v421, 0.0
        %vm432 = vcmp.ge.f32.partialorder %v426, 0.0
        %v433 = vmul.f32 %v411, 0.2
        %v434 = vmul.f32 %v416, 0.2
        %v435 = vmul.f32 %v421, 0.2
        %v436 = vmul.f32 %v426, 0.2
        %v437 = vsel %vm429, %v411, %v433
        %v438 = vsel %vm430, %v416, %v434
        %v439 = vsel %vm431, %v421, %v435
        %v440 = vsel %vm432, %v426, %v436
        %v441 = vld [vmem:[#allocation5] sm:$0xff]
        %v442 = vld [vmem:[#allocation5 + $0x8] sm:$0xff]
        %v443 = vld [vmem:[#allocation5 + $0x10] sm:$0xff]
        %v444 = vld [vmem:[#allocation5 + $0x18] sm:$0xff]
        %vm445 = vcmask 7168
        %446 = vst.msk [vmem:[#allocation2] sm:$0xff] %vm445, 0.0
        %447 = vst.msk [vmem:[#allocation2 + $0x8] sm:$0xff] %vm445, 0.0
        %448 = vst.msk [vmem:[#allocation2 + $0x10] sm:$0xff] %vm445, 0.0
        %449 = vst.msk [vmem:[#allocation2 + $0x18] sm:$0xff] %vm445, 0.0
        %454 = vrot.lane.b32.xlu0 %v437, 1
        %v455 = vpop.permute.xlu0 %454
        %456 = vrot.lane.b32.xlu0 %v438, 1
        %v457 = vpop.permute.xlu0 %456
        %458 = vrot.lane.b32.xlu0 %v439, 1
        %v459 = vpop.permute.xlu0 %458
        %460 = vrot.lane.b32.xlu0 %v440, 1
        %v461 = vpop.permute.xlu0 %460
        %vm466 = vcmask 130056
        %467 = vst.msk [vmem:[#allocation2] sm:$0xff] %vm466, %v455
        %468 = vst.msk [vmem:[#allocation2 + $0x8] sm:$0xff] %vm466, %v457
        %469 = vst.msk [vmem:[#allocation2 + $0x10] sm:$0xff] %vm466, %v459
        %470 = vst.msk [vmem:[#allocation2 + $0x18] sm:$0xff] %vm466, %v461
        %vm471 = vcmask 130048
        %472 = vst.msk [vmem:[#allocation2 + $0x20] sm:$0xff] %vm471, %v437
        %473 = vst.msk [vmem:[#allocation2 + $0x28] sm:$0xff] %vm471, %v438
        %474 = vst.msk [vmem:[#allocation2 + $0x30] sm:$0xff] %vm471, %v439
        %475 = vst.msk [vmem:[#allocation2 + $0x38] sm:$0xff] %vm471, %v440
        %476 = vrot.lane.b32.xlu0 %v437, 127
        %v477 = vpop.permute.xlu0 %476
        %478 = vrot.lane.b32.xlu0 %v438, 127
        %v479 = vpop.permute.xlu0 %478
        %480 = vrot.lane.b32.xlu0 %v439, 127
        %v481 = vpop.permute.xlu0 %480
        %482 = vrot.lane.b32.xlu0 %v440, 127
        %v483 = vpop.permute.xlu0 %482
        %vm488 = vcmask 121856
        %489 = vst.msk [vmem:[#allocation2 + $0x40] sm:$0xff] %vm488, %v477
        %490 = vst.msk [vmem:[#allocation2 + $0x48] sm:$0xff] %vm488, %v479
        %491 = vst.msk [vmem:[#allocation2 + $0x50] sm:$0xff] %vm488, %v481
        %492 = vst.msk [vmem:[#allocation2 + $0x58] sm:$0xff] %vm488, %v483
        %vm493 = vcmask 130168
        %494 = vst.msk [vmem:[#allocation2 + $0x40] sm:$0xff] %vm493, 0.0
        %495 = vst.msk [vmem:[#allocation2 + $0x48] sm:$0xff] %vm493, 0.0
        %496 = vst.msk [vmem:[#allocation2 + $0x50] sm:$0xff] %vm493, 0.0
        %497 = vst.msk [vmem:[#allocation2 + $0x58] sm:$0xff] %vm493, 0.0
        %v498 = vld [vmem:[#allocation2] sm:$0xff]
        %v499 = vld [vmem:[#allocation2 + $0x8] sm:$0xff]
        %v500 = vld [vmem:[#allocation2 + $0x10] sm:$0xff]
        %v501 = vld [vmem:[#allocation2 + $0x18] sm:$0xff]
        %v502 = vld [vmem:[#allocation2 + $0x20] sm:$0xff]
        %v503 = vld [vmem:[#allocation2 + $0x28] sm:$0xff]
        %v504 = vld [vmem:[#allocation2 + $0x30] sm:$0xff]
        %v505 = vld [vmem:[#allocation2 + $0x38] sm:$0xff]
        %v506 = vld [vmem:[#allocation2 + $0x40] sm:$0xff]
        %v507 = vld [vmem:[#allocation2 + $0x48] sm:$0xff]
        %v508 = vld [vmem:[#allocation2 + $0x50] sm:$0xff]
        %v509 = vld [vmem:[#allocation2 + $0x58] sm:$0xff]
        %vm510 = vcmask 785408
        %v512 = vsel %vm510, %v441, 0
        %v515 = vsel %vm510, %v442, 0
        %v518 = vsel %vm510, %v443, 0
        %v521 = vsel %vm510, %v444, 0
        %523 = vmatprep.subr.mxu0 0.0
        %524 = vmatpush1.msra.mxu0 0.0
        %525 = vmatprep.subr.mxu0 0.0
        %526 = vmatpush1.msra.mxu0 0.0
        %527 = vmatprep.subr.mxu0 0.0
        %528 = vmatpush1.msra.mxu0 0.0
        %529 = vmatprep.subr.mxu0 0.0
        %530 = vmatpush1.msra.mxu0 0.0
        %531 = vmatprep.subr.mxu0 0.0
        %532 = vmatpush1.msra.mxu0 %v509
        %533 = vmatprep.subr.mxu0 0.0
        %534 = vmatpush1.msra.mxu0 %v508
        %535 = vmatprep.subr.mxu0 0.0
        %536 = vmatpush1.msra.mxu0 %v507
        %537 = vmatprep.subr.mxu0 0.0
        %538 = vmatpush1.msra.mxu0 %v506
        %539 = vmatprep.subr.mxu0 0.0
        %540 = vmatpush1.msra.mxu0 %v505
        %541 = vmatprep.subr.mxu0 0.0
        %542 = vmatpush1.msra.mxu0 %v504
        %543 = vmatprep.subr.mxu0 0.0
        %544 = vmatpush1.msra.mxu0 %v503
        %545 = vmatprep.subr.mxu0 0.0
        %546 = vmatpush1.msra.mxu0 %v502
        %547 = vmatprep.subr.mxu0 0.0
        %548 = vmatpush1.msra.mxu0 %v501
        %549 = vmatprep.subr.mxu0 0.0
        %550 = vmatpush1.msra.mxu0 %v500
        %551 = vmatprep.subr.mxu0 0.0
        %552 = vmatpush1.msra.mxu0 %v499
        %553 = vmatprep.subr.mxu0 0.0
        %554 = vmatpush1.msra.mxu0 %v498
        %555 = vmatprep.subr.mxu0 0.0
        %556 = vmatpush2.msra.mxu0 0.0
        %557 = vmatprep.subr.mxu0 0.0
        %558 = vmatpush2.msra.mxu0 0.0
        %559 = vmatprep.subr.mxu0 0.0
        %560 = vmatpush2.msra.mxu0 0.0
        %561 = vmatprep.subr.mxu0 0.0
        %562 = vmatpush2.msra.mxu0 0.0
        %563 = vmatprep.subr.mxu0 0.0
        %564 = vmatpush2.msra.mxu0 0.0
        %565 = vmatprep.subr.mxu0 0.0
        %566 = vmatpush2.msra.mxu0 0.0
        %567 = vmatprep.subr.mxu0 0.0
        %568 = vmatpush2.msra.mxu0 0.0
        %569 = vmatprep.subr.mxu0 0.0
        %570 = vmatpush2.msra.mxu0 0.0
        %571 = vmatprep.subr.mxu0 0.0
        %572 = vmatpush2.msra.mxu0 0.0
        %573 = vmatprep.subr.mxu0 0.0
        %574 = vmatpush2.msra.mxu0 0.0
        %575 = vmatprep.subr.mxu0 0.0
        %576 = vmatpush2.msra.mxu0 0.0
        %577 = vmatprep.subr.mxu0 0.0
        %578 = vmatpush2.msra.mxu0 0.0
        %579 = vmatprep.subr.mxu0 0.0
        %580 = vmatpush2.msra.mxu0 0.0
        %581 = vmatprep.subr.mxu0 0.0
        %582 = vmatpush2.msra.mxu0 0.0
        %583 = vmatprep.subr.mxu0 0.0
        %584 = vmatpush2.msra.mxu0 0.0
        %585 = vmatprep.subr.mxu0 0.0
        %586 = vmatpush2.msra.mxu0 0.0
        %587 = vmatprep.mubr.f32.mxu0 0.0
        %588 = vmatmul.mubr.f32.gmra.mxu0 %v512
        %v589 = vpop.f32.mrf.mxu0
        %v590 = vadd.f32 0.0, %v589
        %v591 = vpop.f32.mrf.mxu0
        %592 = vmatprep.mubr.f32.mxu0 0.0
        %593 = vmatmul.mubr.f32.gmra.mxu0 %v515
        %v594 = vpop.f32.mrf.mxu0
        %v595 = vadd.f32 0.0, %v594
        %v596 = vpop.f32.mrf.mxu0
        %597 = vmatprep.mubr.f32.mxu0 0.0
        %598 = vmatmul.mubr.f32.gmra.mxu0 %v518
        %v599 = vpop.f32.mrf.mxu0
        %v600 = vadd.f32 0.0, %v599
        %v601 = vpop.f32.mrf.mxu0
        %602 = vmatprep.mubr.f32.mxu0 0.0
        %603 = vmatmul.mubr.f32.gmra.mxu0 %v521
        %v604 = vpop.f32.mrf.mxu0
        %v605 = vadd.f32 0.0, %v604
        %v606 = vpop.f32.mrf.mxu0
        %607 = vdwg.mxu0
        %v608 = vadd.f32 %v437, %v590
        %v609 = vadd.f32 %v438, %v595
        %v610 = vadd.f32 %v439, %v600
        %v611 = vadd.f32 %v440, %v605
        %vm612 = vcmp.ge.f32.partialorder %v608, 0.0
        %vm613 = vcmp.ge.f32.partialorder %v609, 0.0
        %vm614 = vcmp.ge.f32.partialorder %v610, 0.0
        %vm615 = vcmp.ge.f32.partialorder %v611, 0.0
        %v616 = vmul.f32 %v608, 0.2
        %v617 = vmul.f32 %v609, 0.2
        %v618 = vmul.f32 %v610, 0.2
        %v619 = vmul.f32 %v611, 0.2
        %v620 = vsel %vm612, %v608, %v616
        %v621 = vsel %vm613, %v609, %v617
        %v622 = vsel %vm614, %v610, %v618
        %v623 = vsel %vm615, %v611, %v619
        %s624 = scalar_lea.vmem [#allocation5], 32
        %v625 = vld [vmem:[%s624] sm:$0xff]
        %v626 = vld [vmem:[%s624 + $0x8] sm:$0xff]
        %v627 = vld [vmem:[%s624 + $0x10] sm:$0xff]
        %v628 = vld [vmem:[%s624 + $0x18] sm:$0xff]
        %vm629 = vcmask 31744
        %630 = vst.msk [vmem:[#allocation2] sm:$0xff] %vm629, 0.0
        %631 = vst.msk [vmem:[#allocation2 + $0x8] sm:$0xff] %vm629, 0.0
        %632 = vst.msk [vmem:[#allocation2 + $0x10] sm:$0xff] %vm629, 0.0
        %633 = vst.msk [vmem:[#allocation2 + $0x18] sm:$0xff] %vm629, 0.0
        %638 = vrot.lane.b32.xlu0 %v620, 4
        %v639 = vpop.permute.xlu0 %638
        %640 = vrot.lane.b32.xlu0 %v621, 4
        %v641 = vpop.permute.xlu0 %640
        %642 = vrot.lane.b32.xlu0 %v622, 4
        %v643 = vpop.permute.xlu0 %642
        %644 = vrot.lane.b32.xlu0 %v623, 4
        %v645 = vpop.permute.xlu0 %644
        %vm650 = vcmask 130080
        %651 = vst.msk [vmem:[#allocation2] sm:$0xff] %vm650, %v639
        %652 = vst.msk [vmem:[#allocation2 + $0x8] sm:$0xff] %vm650, %v641
        %653 = vst.msk [vmem:[#allocation2 + $0x10] sm:$0xff] %vm650, %v643
        %654 = vst.msk [vmem:[#allocation2 + $0x18] sm:$0xff] %vm650, %v645
        %655 = vst.msk [vmem:[#allocation2 + $0x20] sm:$0xff] %vm445, 0.0
        %656 = vst.msk [vmem:[#allocation2 + $0x28] sm:$0xff] %vm445, 0.0
        %657 = vst.msk [vmem:[#allocation2 + $0x30] sm:$0xff] %vm445, 0.0
        %658 = vst.msk [vmem:[#allocation2 + $0x38] sm:$0xff] %vm445, 0.0
        %659 = vrot.lane.b32.xlu0 %v620, 1
        %v660 = vpop.permute.xlu0 %659
        %661 = vrot.lane.b32.xlu0 %v621, 1
        %v662 = vpop.permute.xlu0 %661
        %663 = vrot.lane.b32.xlu0 %v622, 1
        %v664 = vpop.permute.xlu0 %663
        %665 = vrot.lane.b32.xlu0 %v623, 1
        %v666 = vpop.permute.xlu0 %665
        %671 = vst.msk [vmem:[#allocation2 + $0x20] sm:$0xff] %vm466, %v660
        %672 = vst.msk [vmem:[#allocation2 + $0x28] sm:$0xff] %vm466, %v662
        %673 = vst.msk [vmem:[#allocation2 + $0x30] sm:$0xff] %vm466, %v664
        %674 = vst.msk [vmem:[#allocation2 + $0x38] sm:$0xff] %vm466, %v666
        %675 = vrot.lane.b32.xlu0 %v620, 126
        %v676 = vpop.permute.xlu0 %675
        %677 = vrot.lane.b32.xlu0 %v621, 126
        %v678 = vpop.permute.xlu0 %677
        %679 = vrot.lane.b32.xlu0 %v622, 126
        %v680 = vpop.permute.xlu0 %679
        %681 = vrot.lane.b32.xlu0 %v623, 126
        %v682 = vpop.permute.xlu0 %681
        %vm687 = vcmask 113664
        %688 = vst.msk [vmem:[#allocation2 + $0x40] sm:$0xff] %vm687, %v676
        %689 = vst.msk [vmem:[#allocation2 + $0x48] sm:$0xff] %vm687, %v678
        %690 = vst.msk [vmem:[#allocation2 + $0x50] sm:$0xff] %vm687, %v680
        %691 = vst.msk [vmem:[#allocation2 + $0x58] sm:$0xff] %vm687, %v682
        %vm692 = vcmask 130160
        %693 = vst.msk [vmem:[#allocation2 + $0x40] sm:$0xff] %vm692, 0.0
        %694 = vst.msk [vmem:[#allocation2 + $0x48] sm:$0xff] %vm692, 0.0
        %695 = vst.msk [vmem:[#allocation2 + $0x50] sm:$0xff] %vm692, 0.0
        %696 = vst.msk [vmem:[#allocation2 + $0x58] sm:$0xff] %vm692, 0.0
        %v697 = vld [vmem:[#allocation2] sm:$0xff]
        %v698 = vld [vmem:[#allocation2 + $0x8] sm:$0xff]
        %v699 = vld [vmem:[#allocation2 + $0x10] sm:$0xff]
        %v700 = vld [vmem:[#allocation2 + $0x18] sm:$0xff]
        %v701 = vld [vmem:[#allocation2 + $0x20] sm:$0xff]
        %v702 = vld [vmem:[#allocation2 + $0x28] sm:$0xff]
        %v703 = vld [vmem:[#allocation2 + $0x30] sm:$0xff]
        %v704 = vld [vmem:[#allocation2 + $0x38] sm:$0xff]
        %v705 = vld [vmem:[#allocation2 + $0x40] sm:$0xff]
        %v706 = vld [vmem:[#allocation2 + $0x48] sm:$0xff]
        %v707 = vld [vmem:[#allocation2 + $0x50] sm:$0xff]
        %v708 = vld [vmem:[#allocation2 + $0x58] sm:$0xff]
        %v710 = vsel %vm510, %v625, 0
        %v713 = vsel %vm510, %v626, 0
        %v716 = vsel %vm510, %v627, 0
        %v719 = vsel %vm510, %v628, 0
        %721 = vmatprep.subr.mxu0 0.0
        %722 = vmatpush1.msra.mxu0 0.0
        %723 = vmatprep.subr.mxu0 0.0
        %724 = vmatpush1.msra.mxu0 0.0
        %725 = vmatprep.subr.mxu0 0.0
        %726 = vmatpush1.msra.mxu0 0.0
        %727 = vmatprep.subr.mxu0 0.0
        %728 = vmatpush1.msra.mxu0 0.0
        %729 = vmatprep.subr.mxu0 0.0
        %730 = vmatpush1.msra.mxu0 %v708
        %731 = vmatprep.subr.mxu0 0.0
        %732 = vmatpush1.msra.mxu0 %v707
        %733 = vmatprep.subr.mxu0 0.0
        %734 = vmatpush1.msra.mxu0 %v706
        %735 = vmatprep.subr.mxu0 0.0
        %736 = vmatpush1.msra.mxu0 %v705
        %737 = vmatprep.subr.mxu0 0.0
        %738 = vmatpush1.msra.mxu0 %v704
        %739 = vmatprep.subr.mxu0 0.0
        %740 = vmatpush1.msra.mxu0 %v703
        %741 = vmatprep.subr.mxu0 0.0
        %742 = vmatpush1.msra.mxu0 %v702
        %743 = vmatprep.subr.mxu0 0.0
        %744 = vmatpush1.msra.mxu0 %v701
        %745 = vmatprep.subr.mxu0 0.0
        %746 = vmatpush1.msra.mxu0 %v700
        %747 = vmatprep.subr.mxu0 0.0
        %748 = vmatpush1.msra.mxu0 %v699
        %749 = vmatprep.subr.mxu0 0.0
        %750 = vmatpush1.msra.mxu0 %v698
        %751 = vmatprep.subr.mxu0 0.0
        %752 = vmatpush1.msra.mxu0 %v697
        %753 = vmatprep.subr.mxu0 0.0
        %754 = vmatpush2.msra.mxu0 0.0
        %755 = vmatprep.subr.mxu0 0.0
        %756 = vmatpush2.msra.mxu0 0.0
        %757 = vmatprep.subr.mxu0 0.0
        %758 = vmatpush2.msra.mxu0 0.0
        %759 = vmatprep.subr.mxu0 0.0
        %760 = vmatpush2.msra.mxu0 0.0
        %761 = vmatprep.subr.mxu0 0.0
        %762 = vmatpush2.msra.mxu0 0.0
        %763 = vmatprep.subr.mxu0 0.0
        %764 = vmatpush2.msra.mxu0 0.0
        %765 = vmatprep.subr.mxu0 0.0
        %766 = vmatpush2.msra.mxu0 0.0
        %767 = vmatprep.subr.mxu0 0.0
        %768 = vmatpush2.msra.mxu0 0.0
        %769 = vmatprep.subr.mxu0 0.0
        %770 = vmatpush2.msra.mxu0 0.0
        %771 = vmatprep.subr.mxu0 0.0
        %772 = vmatpush2.msra.mxu0 0.0
        %773 = vmatprep.subr.mxu0 0.0
        %774 = vmatpush2.msra.mxu0 0.0
        %775 = vmatprep.subr.mxu0 0.0
        %776 = vmatpush2.msra.mxu0 0.0
        %777 = vmatprep.subr.mxu0 0.0
        %778 = vmatpush2.msra.mxu0 0.0
        %779 = vmatprep.subr.mxu0 0.0
        %780 = vmatpush2.msra.mxu0 0.0
        %781 = vmatprep.subr.mxu0 0.0
        %782 = vmatpush2.msra.mxu0 0.0
        %783 = vmatprep.subr.mxu0 0.0
        %784 = vmatpush2.msra.mxu0 0.0
        %785 = vmatprep.mubr.f32.mxu0 0.0
        %786 = vmatmul.mubr.f32.gmra.mxu0 %v710
        %v787 = vpop.f32.mrf.mxu0
        %v788 = vadd.f32 0.0, %v787
        %v789 = vpop.f32.mrf.mxu0
        %790 = vmatprep.mubr.f32.mxu0 0.0
        %791 = vmatmul.mubr.f32.gmra.mxu0 %v713
        %v792 = vpop.f32.mrf.mxu0
        %v793 = vadd.f32 0.0, %v792
        %v794 = vpop.f32.mrf.mxu0
        %795 = vmatprep.mubr.f32.mxu0 0.0
        %796 = vmatmul.mubr.f32.gmra.mxu0 %v716
        %v797 = vpop.f32.mrf.mxu0
        %v798 = vadd.f32 0.0, %v797
        %v799 = vpop.f32.mrf.mxu0
        %800 = vmatprep.mubr.f32.mxu0 0.0
        %801 = vmatmul.mubr.f32.gmra.mxu0 %v719
        %v802 = vpop.f32.mrf.mxu0
        %v803 = vadd.f32 0.0, %v802
        %v804 = vpop.f32.mrf.mxu0
        %805 = vdwg.mxu0
        %v806 = vadd.f32 %v620, %v788
        %v807 = vadd.f32 %v621, %v793
        %v808 = vadd.f32 %v622, %v798
        %v809 = vadd.f32 %v623, %v803
        %vm810 = vcmp.ge.f32.partialorder %v806, 0.0
        %vm811 = vcmp.ge.f32.partialorder %v807, 0.0
        %vm812 = vcmp.ge.f32.partialorder %v808, 0.0
        %vm813 = vcmp.ge.f32.partialorder %v809, 0.0
        %v814 = vmul.f32 %v806, 0.2
        %v815 = vmul.f32 %v807, 0.2
        %v816 = vmul.f32 %v808, 0.2
        %v817 = vmul.f32 %v809, 0.2
        %v818 = vsel %vm810, %v806, %v814
        %v819 = vsel %vm811, %v807, %v815
        %v820 = vsel %vm812, %v808, %v816
        %v821 = vsel %vm813, %v809, %v817
        %s822 = scalar_lea.vmem [#allocation5], 64
        %v823 = vld [vmem:[%s822] sm:$0xff]
        %v824 = vld [vmem:[%s822 + $0x8] sm:$0xff]
        %v825 = vld [vmem:[%s822 + $0x10] sm:$0xff]
        %v826 = vld [vmem:[%s822 + $0x18] sm:$0xff]
        %vm827 = vcmask 105472
        %828 = vst.msk [vmem:[#allocation2] sm:$0xff] %vm827, 0.0
        %829 = vst.msk [vmem:[#allocation2 + $0x8] sm:$0xff] %vm827, 0.0
        %830 = vst.msk [vmem:[#allocation2 + $0x10] sm:$0xff] %vm827, 0.0
        %831 = vst.msk [vmem:[#allocation2 + $0x18] sm:$0xff] %vm827, 0.0
        %836 = vrot.lane.b32.xlu0 %v818, 13
        %v837 = vpop.permute.xlu0 %836
        %838 = vrot.lane.b32.xlu0 %v819, 13
        %v839 = vpop.permute.xlu0 %838
        %840 = vrot.lane.b32.xlu0 %v820, 13
        %v841 = vpop.permute.xlu0 %840
        %842 = vrot.lane.b32.xlu0 %v821, 13
        %v843 = vpop.permute.xlu0 %842
        %vm848 = vcmask 130152
        %849 = vst.msk [vmem:[#allocation2] sm:$0xff] %vm848, %v837
        %850 = vst.msk [vmem:[#allocation2 + $0x8] sm:$0xff] %vm848, %v839
        %851 = vst.msk [vmem:[#allocation2 + $0x10] sm:$0xff] %vm848, %v841
        %852 = vst.msk [vmem:[#allocation2 + $0x18] sm:$0xff] %vm848, %v843
        %853 = vst.msk [vmem:[#allocation2 + $0x20] sm:$0xff] %vm629, 0.0
        %854 = vst.msk [vmem:[#allocation2 + $0x28] sm:$0xff] %vm629, 0.0
        %855 = vst.msk [vmem:[#allocation2 + $0x30] sm:$0xff] %vm629, 0.0
        %856 = vst.msk [vmem:[#allocation2 + $0x38] sm:$0xff] %vm629, 0.0
        %857 = vrot.lane.b32.xlu0 %v818, 4
        %v858 = vpop.permute.xlu0 %857
        %859 = vrot.lane.b32.xlu0 %v819, 4
        %v860 = vpop.permute.xlu0 %859
        %861 = vrot.lane.b32.xlu0 %v820, 4
        %v862 = vpop.permute.xlu0 %861
        %863 = vrot.lane.b32.xlu0 %v821, 4
        %v864 = vpop.permute.xlu0 %863
        %869 = vst.msk [vmem:[#allocation2 + $0x20] sm:$0xff] %vm650, %v858
        %870 = vst.msk [vmem:[#allocation2 + $0x28] sm:$0xff] %vm650, %v860
        %871 = vst.msk [vmem:[#allocation2 + $0x30] sm:$0xff] %vm650, %v862
        %872 = vst.msk [vmem:[#allocation2 + $0x38] sm:$0xff] %vm650, %v864
        %873 = vrot.lane.b32.xlu0 %v818, 123
        %v874 = vpop.permute.xlu0 %873
        %875 = vrot.lane.b32.xlu0 %v819, 123
        %v876 = vpop.permute.xlu0 %875
        %877 = vrot.lane.b32.xlu0 %v820, 123
        %v878 = vpop.permute.xlu0 %877
        %879 = vrot.lane.b32.xlu0 %v821, 123
        %v880 = vpop.permute.xlu0 %879
        %vm885 = vcmask 89088
        %886 = vst.msk [vmem:[#allocation2 + $0x40] sm:$0xff] %vm885, %v874
        %887 = vst.msk [vmem:[#allocation2 + $0x48] sm:$0xff] %vm885, %v876
        %888 = vst.msk [vmem:[#allocation2 + $0x50] sm:$0xff] %vm885, %v878
        %889 = vst.msk [vmem:[#allocation2 + $0x58] sm:$0xff] %vm885, %v880
        %vm890 = vcmask 130136
        %891 = vst.msk [vmem:[#allocation2 + $0x40] sm:$0xff] %vm890, 0.0
        %892 = vst.msk [vmem:[#allocation2 + $0x48] sm:$0xff] %vm890, 0.0
        %893 = vst.msk [vmem:[#allocation2 + $0x50] sm:$0xff] %vm890, 0.0
        %894 = vst.msk [vmem:[#allocation2 + $0x58] sm:$0xff] %vm890, 0.0
        %v895 = vld [vmem:[#allocation2] sm:$0xff]
        %v896 = vld [vmem:[#allocation2 + $0x8] sm:$0xff]
        %v897 = vld [vmem:[#allocation2 + $0x10] sm:$0xff]
        %v898 = vld [vmem:[#allocation2 + $0x18] sm:$0xff]
        %v899 = vld [vmem:[#allocation2 + $0x20] sm:$0xff]
        %v900 = vld [vmem:[#allocation2 + $0x28] sm:$0xff]
        %v901 = vld [vmem:[#allocation2 + $0x30] sm:$0xff]
        %v902 = vld [vmem:[#allocation2 + $0x38] sm:$0xff]
        %v903 = vld [vmem:[#allocation2 + $0x40] sm:$0xff]
        %v904 = vld [vmem:[#allocation2 + $0x48] sm:$0xff]
        %v905 = vld [vmem:[#allocation2 + $0x50] sm:$0xff]
        %v906 = vld [vmem:[#allocation2 + $0x58] sm:$0xff]
        %v908 = vsel %vm510, %v823, 0
        %v911 = vsel %vm510, %v824, 0
        %v914 = vsel %vm510, %v825, 0
        %v917 = vsel %vm510, %v826, 0
        %919 = vmatprep.subr.mxu0 0.0
        %920 = vmatpush1.msra.mxu0 0.0
        %921 = vmatprep.subr.mxu0 0.0
        %922 = vmatpush1.msra.mxu0 0.0
        %923 = vmatprep.subr.mxu0 0.0
        %924 = vmatpush1.msra.mxu0 0.0
        %925 = vmatprep.subr.mxu0 0.0
        %926 = vmatpush1.msra.mxu0 0.0
        %927 = vmatprep.subr.mxu0 0.0
        %928 = vmatpush1.msra.mxu0 %v906
        %929 = vmatprep.subr.mxu0 0.0
        %930 = vmatpush1.msra.mxu0 %v905
        %931 = vmatprep.subr.mxu0 0.0
        %932 = vmatpush1.msra.mxu0 %v904
        %933 = vmatprep.subr.mxu0 0.0
        %934 = vmatpush1.msra.mxu0 %v903
        %935 = vmatprep.subr.mxu0 0.0
        %936 = vmatpush1.msra.mxu0 %v902
        %937 = vmatprep.subr.mxu0 0.0
        %938 = vmatpush1.msra.mxu0 %v901
        %939 = vmatprep.subr.mxu0 0.0
        %940 = vmatpush1.msra.mxu0 %v900
        %941 = vmatprep.subr.mxu0 0.0
        %942 = vmatpush1.msra.mxu0 %v899
        %943 = vmatprep.subr.mxu0 0.0
        %944 = vmatpush1.msra.mxu0 %v898
        %945 = vmatprep.subr.mxu0 0.0
        %946 = vmatpush1.msra.mxu0 %v897
        %947 = vmatprep.subr.mxu0 0.0
        %948 = vmatpush1.msra.mxu0 %v896
        %949 = vmatprep.subr.mxu0 0.0
        %950 = vmatpush1.msra.mxu0 %v895
        %951 = vmatprep.subr.mxu0 0.0
        %952 = vmatpush2.msra.mxu0 0.0
        %953 = vmatprep.subr.mxu0 0.0
        %954 = vmatpush2.msra.mxu0 0.0
        %955 = vmatprep.subr.mxu0 0.0
        %956 = vmatpush2.msra.mxu0 0.0
        %957 = vmatprep.subr.mxu0 0.0
        %958 = vmatpush2.msra.mxu0 0.0
        %959 = vmatprep.subr.mxu0 0.0
        %960 = vmatpush2.msra.mxu0 0.0
        %961 = vmatprep.subr.mxu0 0.0
        %962 = vmatpush2.msra.mxu0 0.0
        %963 = vmatprep.subr.mxu0 0.0
        %964 = vmatpush2.msra.mxu0 0.0
        %965 = vmatprep.subr.mxu0 0.0
        %966 = vmatpush2.msra.mxu0 0.0
        %967 = vmatprep.subr.mxu0 0.0
        %968 = vmatpush2.msra.mxu0 0.0
        %969 = vmatprep.subr.mxu0 0.0
        %970 = vmatpush2.msra.mxu0 0.0
        %971 = vmatprep.subr.mxu0 0.0
        %972 = vmatpush2.msra.mxu0 0.0
        %973 = vmatprep.subr.mxu0 0.0
        %974 = vmatpush2.msra.mxu0 0.0
        %975 = vmatprep.subr.mxu0 0.0
        %976 = vmatpush2.msra.mxu0 0.0
        %977 = vmatprep.subr.mxu0 0.0
        %978 = vmatpush2.msra.mxu0 0.0
        %979 = vmatprep.subr.mxu0 0.0
        %980 = vmatpush2.msra.mxu0 0.0
        %981 = vmatprep.subr.mxu0 0.0
        %982 = vmatpush2.msra.mxu0 0.0
        %983 = vmatprep.mubr.f32.mxu0 0.0
        %984 = vmatmul.mubr.f32.gmra.mxu0 %v908
        %v985 = vpop.f32.mrf.mxu0
        %v986 = vadd.f32 0.0, %v985
        %v987 = vpop.f32.mrf.mxu0
        %988 = vmatprep.mubr.f32.mxu0 0.0
        %989 = vmatmul.mubr.f32.gmra.mxu0 %v911
        %v990 = vpop.f32.mrf.mxu0
        %v991 = vadd.f32 0.0, %v990
        %v992 = vpop.f32.mrf.mxu0
        %993 = vmatprep.mubr.f32.mxu0 0.0
        %994 = vmatmul.mubr.f32.gmra.mxu0 %v914
        %v995 = vpop.f32.mrf.mxu0
        %v996 = vadd.f32 0.0, %v995
        %v997 = vpop.f32.mrf.mxu0
        %998 = vmatprep.mubr.f32.mxu0 0.0
        %999 = vmatmul.mubr.f32.gmra.mxu0 %v917
        %v1000 = vpop.f32.mrf.mxu0
        %v1001 = vadd.f32 0.0, %v1000
        %v1002 = vpop.f32.mrf.mxu0
        %1003 = vdwg.mxu0
        %v1004 = vadd.f32 %v818, %v986
        %v1005 = vadd.f32 %v819, %v991
        %v1006 = vadd.f32 %v820, %v996
        %v1007 = vadd.f32 %v821, %v1001
        %vm1008 = vcmp.ge.f32.partialorder %v1004, 0.0
        %vm1009 = vcmp.ge.f32.partialorder %v1005, 0.0
        %vm1010 = vcmp.ge.f32.partialorder %v1006, 0.0
        %vm1011 = vcmp.ge.f32.partialorder %v1007, 0.0
        %v1012 = vmul.f32 %v1004, 0.2
        %v1013 = vmul.f32 %v1005, 0.2
        %v1014 = vmul.f32 %v1006, 0.2
        %v1015 = vmul.f32 %v1007, 0.2
        %v1016 = vsel %vm1008, %v1004, %v1012
        %v1017 = vsel %vm1009, %v1005, %v1013
        %v1018 = vsel %vm1010, %v1006, %v1014
        %v1019 = vsel %vm1011, %v1007, %v1015
        %s1020 = scalar_lea.vmem [#allocation5], 96
        %v1021 = vld [vmem:[%s1020] sm:$0xff]
        %v1022 = vld [vmem:[%s1020 + $0x8] sm:$0xff]
        %v1023 = vld [vmem:[%s1020 + $0x10] sm:$0xff]
        %v1024 = vld [vmem:[%s1020 + $0x18] sm:$0xff]
        %1025 = vst.msk [vmem:[#allocation2] sm:$0xff] %vm445, 0.0
        %1026 = vst.msk [vmem:[#allocation2 + $0x8] sm:$0xff] %vm445, 0.0
        %1027 = vst.msk [vmem:[#allocation2 + $0x10] sm:$0xff] %vm445, 0.0
        %1028 = vst.msk [vmem:[#allocation2 + $0x18] sm:$0xff] %vm445, 0.0
        %1033 = vrot.lane.b32.xlu0 %v1016, 1
        %v1034 = vpop.permute.xlu0 %1033
        %1035 = vrot.lane.b32.xlu0 %v1017, 1
        %v1036 = vpop.permute.xlu0 %1035
        %1037 = vrot.lane.b32.xlu0 %v1018, 1
        %v1038 = vpop.permute.xlu0 %1037
        %1039 = vrot.lane.b32.xlu0 %v1019, 1
        %v1040 = vpop.permute.xlu0 %1039
        %1045 = vst.msk [vmem:[#allocation2] sm:$0xff] %vm466, %v1034
        %1046 = vst.msk [vmem:[#allocation2 + $0x8] sm:$0xff] %vm466, %v1036
        %1047 = vst.msk [vmem:[#allocation2 + $0x10] sm:$0xff] %vm466, %v1038
        %1048 = vst.msk [vmem:[#allocation2 + $0x18] sm:$0xff] %vm466, %v1040
        %1049 = vst.msk [vmem:[#allocation2 + $0x20] sm:$0xff] %vm471, %v1016
        %1050 = vst.msk [vmem:[#allocation2 + $0x28] sm:$0xff] %vm471, %v1017
        %1051 = vst.msk [vmem:[#allocation2 + $0x30] sm:$0xff] %vm471, %v1018
        %1052 = vst.msk [vmem:[#allocation2 + $0x38] sm:$0xff] %vm471, %v1019
        %1053 = vrot.lane.b32.xlu0 %v1016, 127
        %v1054 = vpop.permute.xlu0 %1053
        %1055 = vrot.lane.b32.xlu0 %v1017, 127
        %v1056 = vpop.permute.xlu0 %1055
        %1057 = vrot.lane.b32.xlu0 %v1018, 127
        %v1058 = vpop.permute.xlu0 %1057
        %1059 = vrot.lane.b32.xlu0 %v1019, 127
        %v1060 = vpop.permute.xlu0 %1059
        %1065 = vst.msk [vmem:[#allocation2 + $0x40] sm:$0xff] %vm488, %v1054
        %1066 = vst.msk [vmem:[#allocation2 + $0x48] sm:$0xff] %vm488, %v1056
        %1067 = vst.msk [vmem:[#allocation2 + $0x50] sm:$0xff] %vm488, %v1058
        %1068 = vst.msk [vmem:[#allocation2 + $0x58] sm:$0xff] %vm488, %v1060
        %1069 = vst.msk [vmem:[#allocation2 + $0x40] sm:$0xff] %vm493, 0.0
        %1070 = vst.msk [vmem:[#allocation2 + $0x48] sm:$0xff] %vm493, 0.0
        %1071 = vst.msk [vmem:[#allocation2 + $0x50] sm:$0xff] %vm493, 0.0
        %1072 = vst.msk [vmem:[#allocation2 + $0x58] sm:$0xff] %vm493, 0.0
        %v1073 = vld [vmem:[#allocation2] sm:$0xff]
        %v1074 = vld [vmem:[#allocation2 + $0x8] sm:$0xff]
        %v1075 = vld [vmem:[#allocation2 + $0x10] sm:$0xff]
        %v1076 = vld [vmem:[#allocation2 + $0x18] sm:$0xff]
        %v1077 = vld [vmem:[#allocation2 + $0x20] sm:$0xff]
        %v1078 = vld [vmem:[#allocation2 + $0x28] sm:$0xff]
        %v1079 = vld [vmem:[#allocation2 + $0x30] sm:$0xff]
        %v1080 = vld [vmem:[#allocation2 + $0x38] sm:$0xff]
        %v1081 = vld [vmem:[#allocation2 + $0x40] sm:$0xff]
        %v1082 = vld [vmem:[#allocation2 + $0x48] sm:$0xff]
        %v1083 = vld [vmem:[#allocation2 + $0x50] sm:$0xff]
        %v1084 = vld [vmem:[#allocation2 + $0x58] sm:$0xff]
        %v1086 = vsel %vm510, %v1021, 0
        %v1089 = vsel %vm510, %v1022, 0
        %v1092 = vsel %vm510, %v1023, 0
        %v1095 = vsel %vm510, %v1024, 0
        %1097 = vmatprep.subr.mxu0 0.0
        %1098 = vmatpush1.msra.mxu0 0.0
        %1099 = vmatprep.subr.mxu0 0.0
        %1100 = vmatpush1.msra.mxu0 0.0
        %1101 = vmatprep.subr.mxu0 0.0
        %1102 = vmatpush1.msra.mxu0 0.0
        %1103 = vmatprep.subr.mxu0 0.0
        %1104 = vmatpush1.msra.mxu0 0.0
        %1105 = vmatprep.subr.mxu0 0.0
        %1106 = vmatpush1.msra.mxu0 %v1084
        %1107 = vmatprep.subr.mxu0 0.0
        %1108 = vmatpush1.msra.mxu0 %v1083
        %1109 = vmatprep.subr.mxu0 0.0
        %1110 = vmatpush1.msra.mxu0 %v1082
        %1111 = vmatprep.subr.mxu0 0.0
        %1112 = vmatpush1.msra.mxu0 %v1081
        %1113 = vmatprep.subr.mxu0 0.0
        %1114 = vmatpush1.msra.mxu0 %v1080
        %1115 = vmatprep.subr.mxu0 0.0
        %1116 = vmatpush1.msra.mxu0 %v1079
        %1117 = vmatprep.subr.mxu0 0.0
        %1118 = vmatpush1.msra.mxu0 %v1078
        %1119 = vmatprep.subr.mxu0 0.0
        %1120 = vmatpush1.msra.mxu0 %v1077
        %1121 = vmatprep.subr.mxu0 0.0
        %1122 = vmatpush1.msra.mxu0 %v1076
        %1123 = vmatprep.subr.mxu0 0.0
        %1124 = vmatpush1.msra.mxu0 %v1075
        %1125 = vmatprep.subr.mxu0 0.0
        %1126 = vmatpush1.msra.mxu0 %v1074
        %1127 = vmatprep.subr.mxu0 0.0
        %1128 = vmatpush1.msra.mxu0 %v1073
        %1129 = vmatprep.subr.mxu0 0.0
        %1130 = vmatpush2.msra.mxu0 0.0
        %1131 = vmatprep.subr.mxu0 0.0
        %1132 = vmatpush2.msra.mxu0 0.0
        %1133 = vmatprep.subr.mxu0 0.0
        %1134 = vmatpush2.msra.mxu0 0.0
        %1135 = vmatprep.subr.mxu0 0.0
        %1136 = vmatpush2.msra.mxu0 0.0
        %1137 = vmatprep.subr.mxu0 0.0
        %1138 = vmatpush2.msra.mxu0 0.0
        %1139 = vmatprep.subr.mxu0 0.0
        %1140 = vmatpush2.msra.mxu0 0.0
        %1141 = vmatprep.subr.mxu0 0.0
        %1142 = vmatpush2.msra.mxu0 0.0
        %1143 = vmatprep.subr.mxu0 0.0
        %1144 = vmatpush2.msra.mxu0 0.0
        %1145 = vmatprep.subr.mxu0 0.0
        %1146 = vmatpush2.msra.mxu0 0.0
        %1147 = vmatprep.subr.mxu0 0.0
        %1148 = vmatpush2.msra.mxu0 0.0
        %1149 = vmatprep.subr.mxu0 0.0
        %1150 = vmatpush2.msra.mxu0 0.0
        %1151 = vmatprep.subr.mxu0 0.0
        %1152 = vmatpush2.msra.mxu0 0.0
        %1153 = vmatprep.subr.mxu0 0.0
        %1154 = vmatpush2.msra.mxu0 0.0
        %1155 = vmatprep.subr.mxu0 0.0
        %1156 = vmatpush2.msra.mxu0 0.0
        %1157 = vmatprep.subr.mxu0 0.0
        %1158 = vmatpush2.msra.mxu0 0.0
        %1159 = vmatprep.subr.mxu0 0.0
        %1160 = vmatpush2.msra.mxu0 0.0
        %1161 = vmatprep.mubr.f32.mxu0 0.0
        %1162 = vmatmul.mubr.f32.gmra.mxu0 %v1086
        %v1163 = vpop.f32.mrf.mxu0
        %v1164 = vadd.f32 0.0, %v1163
        %v1165 = vpop.f32.mrf.mxu0
        %1166 = vmatprep.mubr.f32.mxu0 0.0
        %1167 = vmatmul.mubr.f32.gmra.mxu0 %v1089
        %v1168 = vpop.f32.mrf.mxu0
        %v1169 = vadd.f32 0.0, %v1168
        %v1170 = vpop.f32.mrf.mxu0
        %1171 = vmatprep.mubr.f32.mxu0 0.0
        %1172 = vmatmul.mubr.f32.gmra.mxu0 %v1092
        %v1173 = vpop.f32.mrf.mxu0
        %v1174 = vadd.f32 0.0, %v1173
        %v1175 = vpop.f32.mrf.mxu0
        %1176 = vmatprep.mubr.f32.mxu0 0.0
        %1177 = vmatmul.mubr.f32.gmra.mxu0 %v1095
        %v1178 = vpop.f32.mrf.mxu0
        %v1179 = vadd.f32 0.0, %v1178
        %v1180 = vpop.f32.mrf.mxu0
        %1181 = vdwg.mxu0
        %v1182 = vadd.f32 %v1016, %v1164
        %v1183 = vadd.f32 %v1017, %v1169
        %v1184 = vadd.f32 %v1018, %v1174
        %v1185 = vadd.f32 %v1019, %v1179
        %vm1186 = vcmp.ge.f32.partialorder %v1182, 0.0
        %vm1187 = vcmp.ge.f32.partialorder %v1183, 0.0
        %vm1188 = vcmp.ge.f32.partialorder %v1184, 0.0
        %vm1189 = vcmp.ge.f32.partialorder %v1185, 0.0
        %v1190 = vmul.f32 %v1182, 0.2
        %v1191 = vmul.f32 %v1183, 0.2
        %v1192 = vmul.f32 %v1184, 0.2
        %v1193 = vmul.f32 %v1185, 0.2
        %v1194 = vsel %vm1186, %v1182, %v1190
        %v1195 = vsel %vm1187, %v1183, %v1191
        %v1196 = vsel %vm1188, %v1184, %v1192
        %v1197 = vsel %vm1189, %v1185, %v1193
        %s1198 = scalar_lea.vmem [#allocation5], 128
        %v1199 = vld [vmem:[%s1198] sm:$0xff]
        %v1200 = vld [vmem:[%s1198 + $0x8] sm:$0xff]
        %v1201 = vld [vmem:[%s1198 + $0x10] sm:$0xff]
        %v1202 = vld [vmem:[%s1198 + $0x18] sm:$0xff]
        %1203 = vst.msk [vmem:[#allocation2] sm:$0xff] %vm445, 0.0
        %1204 = vst.msk [vmem:[#allocation2 + $0x8] sm:$0xff] %vm445, 0.0
        %1205 = vst.msk [vmem:[#allocation2 + $0x10] sm:$0xff] %vm445, 0.0
        %1206 = vst.msk [vmem:[#allocation2 + $0x18] sm:$0xff] %vm445, 0.0
        %1211 = vrot.lane.b32.xlu0 %v1194, 1
        %v1212 = vpop.permute.xlu0 %1211
        %1213 = vrot.lane.b32.xlu0 %v1195, 1
        %v1214 = vpop.permute.xlu0 %1213
        %1215 = vrot.lane.b32.xlu0 %v1196, 1
        %v1216 = vpop.permute.xlu0 %1215
        %1217 = vrot.lane.b32.xlu0 %v1197, 1
        %v1218 = vpop.permute.xlu0 %1217
        %1223 = vst.msk [vmem:[#allocation2] sm:$0xff] %vm466, %v1212
        %1224 = vst.msk [vmem:[#allocation2 + $0x8] sm:$0xff] %vm466, %v1214
        %1225 = vst.msk [vmem:[#allocation2 + $0x10] sm:$0xff] %vm466, %v1216
        %1226 = vst.msk [vmem:[#allocation2 + $0x18] sm:$0xff] %vm466, %v1218
        %1227 = vst.msk [vmem:[#allocation2 + $0x20] sm:$0xff] %vm471, %v1194
        %1228 = vst.msk [vmem:[#allocation2 + $0x28] sm:$0xff] %vm471, %v1195
        %1229 = vst.msk [vmem:[#allocation2 + $0x30] sm:$0xff] %vm471, %v1196
        %1230 = vst.msk [vmem:[#allocation2 + $0x38] sm:$0xff] %vm471, %v1197
        %1231 = vrot.lane.b32.xlu0 %v1194, 127
        %v1232 = vpop.permute.xlu0 %1231
        %1233 = vrot.lane.b32.xlu0 %v1195, 127
        %v1234 = vpop.permute.xlu0 %1233
        %1235 = vrot.lane.b32.xlu0 %v1196, 127
        %v1236 = vpop.permute.xlu0 %1235
        %1237 = vrot.lane.b32.xlu0 %v1197, 127
        %v1238 = vpop.permute.xlu0 %1237
        %1243 = vst.msk [vmem:[#allocation2 + $0x40] sm:$0xff] %vm488, %v1232
        %1244 = vst.msk [vmem:[#allocation2 + $0x48] sm:$0xff] %vm488, %v1234
        %1245 = vst.msk [vmem:[#allocation2 + $0x50] sm:$0xff] %vm488, %v1236
        %1246 = vst.msk [vmem:[#allocation2 + $0x58] sm:$0xff] %vm488, %v1238
        %1247 = vst.msk [vmem:[#allocation2 + $0x40] sm:$0xff] %vm493, 0.0
        %1248 = vst.msk [vmem:[#allocation2 + $0x48] sm:$0xff] %vm493, 0.0
        %1249 = vst.msk [vmem:[#allocation2 + $0x50] sm:$0xff] %vm493, 0.0
        %1250 = vst.msk [vmem:[#allocation2 + $0x58] sm:$0xff] %vm493, 0.0
        %v1251 = vld [vmem:[#allocation2] sm:$0xff]
        %v1252 = vld [vmem:[#allocation2 + $0x8] sm:$0xff]
        %v1253 = vld [vmem:[#allocation2 + $0x10] sm:$0xff]
        %v1254 = vld [vmem:[#allocation2 + $0x18] sm:$0xff]
        %v1255 = vld [vmem:[#allocation2 + $0x20] sm:$0xff]
        %v1256 = vld [vmem:[#allocation2 + $0x28] sm:$0xff]
        %v1257 = vld [vmem:[#allocation2 + $0x30] sm:$0xff]
        %v1258 = vld [vmem:[#allocation2 + $0x38] sm:$0xff]
        %v1259 = vld [vmem:[#allocation2 + $0x40] sm:$0xff]
        %v1260 = vld [vmem:[#allocation2 + $0x48] sm:$0xff]
        %v1261 = vld [vmem:[#allocation2 + $0x50] sm:$0xff]
        %v1262 = vld [vmem:[#allocation2 + $0x58] sm:$0xff]
        %v1264 = vsel %vm510, %v1199, 0
        %v1267 = vsel %vm510, %v1200, 0
        %v1270 = vsel %vm510, %v1201, 0
        %v1273 = vsel %vm510, %v1202, 0
        %1275 = vmatprep.subr.mxu0 0.0
        %1276 = vmatpush1.msra.mxu0 0.0
        %1277 = vmatprep.subr.mxu0 0.0
        %1278 = vmatpush1.msra.mxu0 0.0
        %1279 = vmatprep.subr.mxu0 0.0
        %1280 = vmatpush1.msra.mxu0 0.0
        %1281 = vmatprep.subr.mxu0 0.0
        %1282 = vmatpush1.msra.mxu0 0.0
        %1283 = vmatprep.subr.mxu0 0.0
        %1284 = vmatpush1.msra.mxu0 %v1262
        %1285 = vmatprep.subr.mxu0 0.0
        %1286 = vmatpush1.msra.mxu0 %v1261
        %1287 = vmatprep.subr.mxu0 0.0
        %1288 = vmatpush1.msra.mxu0 %v1260
        %1289 = vmatprep.subr.mxu0 0.0
        %1290 = vmatpush1.msra.mxu0 %v1259
        %1291 = vmatprep.subr.mxu0 0.0
        %1292 = vmatpush1.msra.mxu0 %v1258
        %1293 = vmatprep.subr.mxu0 0.0
        %1294 = vmatpush1.msra.mxu0 %v1257
        %1295 = vmatprep.subr.mxu0 0.0
        %1296 = vmatpush1.msra.mxu0 %v1256
        %1297 = vmatprep.subr.mxu0 0.0
        %1298 = vmatpush1.msra.mxu0 %v1255
        %1299 = vmatprep.subr.mxu0 0.0
        %1300 = vmatpush1.msra.mxu0 %v1254
        %1301 = vmatprep.subr.mxu0 0.0
        %1302 = vmatpush1.msra.mxu0 %v1253
        %1303 = vmatprep.subr.mxu0 0.0
        %1304 = vmatpush1.msra.mxu0 %v1252
        %1305 = vmatprep.subr.mxu0 0.0
        %1306 = vmatpush1.msra.mxu0 %v1251
        %1307 = vmatprep.subr.mxu0 0.0
        %1308 = vmatpush2.msra.mxu0 0.0
        %1309 = vmatprep.subr.mxu0 0.0
        %1310 = vmatpush2.msra.mxu0 0.0
        %1311 = vmatprep.subr.mxu0 0.0
        %1312 = vmatpush2.msra.mxu0 0.0
        %1313 = vmatprep.subr.mxu0 0.0
        %1314 = vmatpush2.msra.mxu0 0.0
        %1315 = vmatprep.subr.mxu0 0.0
        %1316 = vmatpush2.msra.mxu0 0.0
        %1317 = vmatprep.subr.mxu0 0.0
        %1318 = vmatpush2.msra.mxu0 0.0
        %1319 = vmatprep.subr.mxu0 0.0
        %1320 = vmatpush2.msra.mxu0 0.0
        %1321 = vmatprep.subr.mxu0 0.0
        %1322 = vmatpush2.msra.mxu0 0.0
        %1323 = vmatprep.subr.mxu0 0.0
        %1324 = vmatpush2.msra.mxu0 0.0
        %1325 = vmatprep.subr.mxu0 0.0
        %1326 = vmatpush2.msra.mxu0 0.0
        %1327 = vmatprep.subr.mxu0 0.0
        %1328 = vmatpush2.msra.mxu0 0.0
        %1329 = vmatprep.subr.mxu0 0.0
        %1330 = vmatpush2.msra.mxu0 0.0
        %1331 = vmatprep.subr.mxu0 0.0
        %1332 = vmatpush2.msra.mxu0 0.0
        %1333 = vmatprep.subr.mxu0 0.0
        %1334 = vmatpush2.msra.mxu0 0.0
        %1335 = vmatprep.subr.mxu0 0.0
        %1336 = vmatpush2.msra.mxu0 0.0
        %1337 = vmatprep.subr.mxu0 0.0
        %1338 = vmatpush2.msra.mxu0 0.0
        %1339 = vmatprep.mubr.f32.mxu0 0.0
        %1340 = vmatmul.mubr.f32.gmra.mxu0 %v1264
        %v1341 = vpop.f32.mrf.mxu0
        %v1342 = vadd.f32 0.0, %v1341
        %v1343 = vpop.f32.mrf.mxu0
        %1344 = vmatprep.mubr.f32.mxu0 0.0
        %1345 = vmatmul.mubr.f32.gmra.mxu0 %v1267
        %v1346 = vpop.f32.mrf.mxu0
        %v1347 = vadd.f32 0.0, %v1346
        %v1348 = vpop.f32.mrf.mxu0
        %1349 = vmatprep.mubr.f32.mxu0 0.0
        %1350 = vmatmul.mubr.f32.gmra.mxu0 %v1270
        %v1351 = vpop.f32.mrf.mxu0
        %v1352 = vadd.f32 0.0, %v1351
        %v1353 = vpop.f32.mrf.mxu0
        %1354 = vmatprep.mubr.f32.mxu0 0.0
        %1355 = vmatmul.mubr.f32.gmra.mxu0 %v1273
        %v1356 = vpop.f32.mrf.mxu0
        %v1357 = vadd.f32 0.0, %v1356
        %v1358 = vpop.f32.mrf.mxu0
        %1359 = vdwg.mxu0
        %v1360 = vadd.f32 %v1194, %v1342
        %v1361 = vadd.f32 %v1195, %v1347
        %v1362 = vadd.f32 %v1196, %v1352
        %v1363 = vadd.f32 %v1197, %v1357
        %vm1364 = vcmp.ge.f32.partialorder %v1360, 0.0
        %vm1365 = vcmp.ge.f32.partialorder %v1361, 0.0
        %vm1366 = vcmp.ge.f32.partialorder %v1362, 0.0
        %vm1367 = vcmp.ge.f32.partialorder %v1363, 0.0
        %v1368 = vmul.f32 %v1360, 0.2
        %v1369 = vmul.f32 %v1361, 0.2
        %v1370 = vmul.f32 %v1362, 0.2
        %v1371 = vmul.f32 %v1363, 0.2
        %v1372 = vsel %vm1364, %v1360, %v1368
        %v1373 = vsel %vm1365, %v1361, %v1369
        %v1374 = vsel %vm1366, %v1362, %v1370
        %v1375 = vsel %vm1367, %v1363, %v1371
        %s1376 = scalar_lea.vmem [#allocation5], 160
        %v1377 = vld [vmem:[%s1376] sm:$0xff]
        %v1378 = vld [vmem:[%s1376 + $0x8] sm:$0xff]
        %v1379 = vld [vmem:[%s1376 + $0x10] sm:$0xff]
        %v1380 = vld [vmem:[%s1376 + $0x18] sm:$0xff]
        %1381 = vst.msk [vmem:[#allocation2] sm:$0xff] %vm445, 0.0
        %1382 = vst.msk [vmem:[#allocation2 + $0x8] sm:$0xff] %vm445, 0.0
        %1383 = vst.msk [vmem:[#allocation2 + $0x10] sm:$0xff] %vm445, 0.0
        %1384 = vst.msk [vmem:[#allocation2 + $0x18] sm:$0xff] %vm445, 0.0
        %1389 = vrot.lane.b32.xlu0 %v1372, 1
        %v1390 = vpop.permute.xlu0 %1389
        %1391 = vrot.lane.b32.xlu0 %v1373, 1
        %v1392 = vpop.permute.xlu0 %1391
        %1393 = vrot.lane.b32.xlu0 %v1374, 1
        %v1394 = vpop.permute.xlu0 %1393
        %1395 = vrot.lane.b32.xlu0 %v1375, 1
        %v1396 = vpop.permute.xlu0 %1395
        %1401 = vst.msk [vmem:[#allocation2] sm:$0xff] %vm466, %v1390
        %1402 = vst.msk [vmem:[#allocation2 + $0x8] sm:$0xff] %vm466, %v1392
        %1403 = vst.msk [vmem:[#allocation2 + $0x10] sm:$0xff] %vm466, %v1394
        %1404 = vst.msk [vmem:[#allocation2 + $0x18] sm:$0xff] %vm466, %v1396
        %1405 = vst.msk [vmem:[#allocation2 + $0x20] sm:$0xff] %vm471, %v1372
        %1406 = vst.msk [vmem:[#allocation2 + $0x28] sm:$0xff] %vm471, %v1373
        %1407 = vst.msk [vmem:[#allocation2 + $0x30] sm:$0xff] %vm471, %v1374
        %1408 = vst.msk [vmem:[#allocation2 + $0x38] sm:$0xff] %vm471, %v1375
        %1409 = vrot.lane.b32.xlu0 %v1372, 127
        %v1410 = vpop.permute.xlu0 %1409
        %1411 = vrot.lane.b32.xlu0 %v1373, 127
        %v1412 = vpop.permute.xlu0 %1411
        %1413 = vrot.lane.b32.xlu0 %v1374, 127
        %v1414 = vpop.permute.xlu0 %1413
        %1415 = vrot.lane.b32.xlu0 %v1375, 127
        %v1416 = vpop.permute.xlu0 %1415
        %1421 = vst.msk [vmem:[#allocation2 + $0x40] sm:$0xff] %vm488, %v1410
        %1422 = vst.msk [vmem:[#allocation2 + $0x48] sm:$0xff] %vm488, %v1412
        %1423 = vst.msk [vmem:[#allocation2 + $0x50] sm:$0xff] %vm488, %v1414
        %1424 = vst.msk [vmem:[#allocation2 + $0x58] sm:$0xff] %vm488, %v1416
        %1425 = vst.msk [vmem:[#allocation2 + $0x40] sm:$0xff] %vm493, 0.0
        %1426 = vst.msk [vmem:[#allocation2 + $0x48] sm:$0xff] %vm493, 0.0
        %1427 = vst.msk [vmem:[#allocation2 + $0x50] sm:$0xff] %vm493, 0.0
        %1428 = vst.msk [vmem:[#allocation2 + $0x58] sm:$0xff] %vm493, 0.0
        %v1429 = vld [vmem:[#allocation2] sm:$0xff]
        %v1430 = vld [vmem:[#allocation2 + $0x8] sm:$0xff]
        %v1431 = vld [vmem:[#allocation2 + $0x10] sm:$0xff]
        %v1432 = vld [vmem:[#allocation2 + $0x18] sm:$0xff]
        %v1433 = vld [vmem:[#allocation2 + $0x20] sm:$0xff]
        %v1434 = vld [vmem:[#allocation2 + $0x28] sm:$0xff]
        %v1435 = vld [vmem:[#allocation2 + $0x30] sm:$0xff]
        %v1436 = vld [vmem:[#allocation2 + $0x38] sm:$0xff]
        %v1437 = vld [vmem:[#allocation2 + $0x40] sm:$0xff]
        %v1438 = vld [vmem:[#allocation2 + $0x48] sm:$0xff]
        %v1439 = vld [vmem:[#allocation2 + $0x50] sm:$0xff]
        %v1440 = vld [vmem:[#allocation2 + $0x58] sm:$0xff]
        %v1442 = vsel %vm510, %v1377, 0
        %v1445 = vsel %vm510, %v1378, 0
        %v1448 = vsel %vm510, %v1379, 0
        %v1451 = vsel %vm510, %v1380, 0
        %1453 = vmatprep.subr.mxu0 0.0
        %1454 = vmatpush1.msra.mxu0 0.0
        %1455 = vmatprep.subr.mxu0 0.0
        %1456 = vmatpush1.msra.mxu0 0.0
        %1457 = vmatprep.subr.mxu0 0.0
        %1458 = vmatpush1.msra.mxu0 0.0
        %1459 = vmatprep.subr.mxu0 0.0
        %1460 = vmatpush1.msra.mxu0 0.0
        %1461 = vmatprep.subr.mxu0 0.0
        %1462 = vmatpush1.msra.mxu0 %v1440
        %1463 = vmatprep.subr.mxu0 0.0
        %1464 = vmatpush1.msra.mxu0 %v1439
        %1465 = vmatprep.subr.mxu0 0.0
        %1466 = vmatpush1.msra.mxu0 %v1438
        %1467 = vmatprep.subr.mxu0 0.0
        %1468 = vmatpush1.msra.mxu0 %v1437
        %1469 = vmatprep.subr.mxu0 0.0
        %1470 = vmatpush1.msra.mxu0 %v1436
        %1471 = vmatprep.subr.mxu0 0.0
        %1472 = vmatpush1.msra.mxu0 %v1435
        %1473 = vmatprep.subr.mxu0 0.0
        %1474 = vmatpush1.msra.mxu0 %v1434
        %1475 = vmatprep.subr.mxu0 0.0
        %1476 = vmatpush1.msra.mxu0 %v1433
        %1477 = vmatprep.subr.mxu0 0.0
        %1478 = vmatpush1.msra.mxu0 %v1432
        %1479 = vmatprep.subr.mxu0 0.0
        %1480 = vmatpush1.msra.mxu0 %v1431
        %1481 = vmatprep.subr.mxu0 0.0
        %1482 = vmatpush1.msra.mxu0 %v1430
        %1483 = vmatprep.subr.mxu0 0.0
        %1484 = vmatpush1.msra.mxu0 %v1429
        %1485 = vmatprep.subr.mxu0 0.0
        %1486 = vmatpush2.msra.mxu0 0.0
        %1487 = vmatprep.subr.mxu0 0.0
        %1488 = vmatpush2.msra.mxu0 0.0
        %1489 = vmatprep.subr.mxu0 0.0
        %1490 = vmatpush2.msra.mxu0 0.0
        %1491 = vmatprep.subr.mxu0 0.0
        %1492 = vmatpush2.msra.mxu0 0.0
        %1493 = vmatprep.subr.mxu0 0.0
        %1494 = vmatpush2.msra.mxu0 0.0
        %1495 = vmatprep.subr.mxu0 0.0
        %1496 = vmatpush2.msra.mxu0 0.0
        %1497 = vmatprep.subr.mxu0 0.0
        %1498 = vmatpush2.msra.mxu0 0.0
        %1499 = vmatprep.subr.mxu0 0.0
        %1500 = vmatpush2.msra.mxu0 0.0
        %1501 = vmatprep.subr.mxu0 0.0
        %1502 = vmatpush2.msra.mxu0 0.0
        %1503 = vmatprep.subr.mxu0 0.0
        %1504 = vmatpush2.msra.mxu0 0.0
        %1505 = vmatprep.subr.mxu0 0.0
        %1506 = vmatpush2.msra.mxu0 0.0
        %1507 = vmatprep.subr.mxu0 0.0
        %1508 = vmatpush2.msra.mxu0 0.0
        %1509 = vmatprep.subr.mxu0 0.0
        %1510 = vmatpush2.msra.mxu0 0.0
        %1511 = vmatprep.subr.mxu0 0.0
        %1512 = vmatpush2.msra.mxu0 0.0
        %1513 = vmatprep.subr.mxu0 0.0
        %1514 = vmatpush2.msra.mxu0 0.0
        %1515 = vmatprep.subr.mxu0 0.0
        %1516 = vmatpush2.msra.mxu0 0.0
        %1517 = vmatprep.mubr.f32.mxu0 0.0
        %1518 = vmatmul.mubr.f32.gmra.mxu0 %v1442
        %v1519 = vpop.f32.mrf.mxu0
        %v1520 = vadd.f32 0.0, %v1519
        %v1521 = vpop.f32.mrf.mxu0
        %1522 = vmatprep.mubr.f32.mxu0 0.0
        %1523 = vmatmul.mubr.f32.gmra.mxu0 %v1445
        %v1524 = vpop.f32.mrf.mxu0
        %v1525 = vadd.f32 0.0, %v1524
        %v1526 = vpop.f32.mrf.mxu0
        %1527 = vmatprep.mubr.f32.mxu0 0.0
        %1528 = vmatmul.mubr.f32.gmra.mxu0 %v1448
        %v1529 = vpop.f32.mrf.mxu0
        %v1530 = vadd.f32 0.0, %v1529
        %v1531 = vpop.f32.mrf.mxu0
        %1532 = vmatprep.mubr.f32.mxu0 0.0
        %1533 = vmatmul.mubr.f32.gmra.mxu0 %v1451
        %v1534 = vpop.f32.mrf.mxu0
        %v1535 = vadd.f32 0.0, %v1534
        %v1536 = vpop.f32.mrf.mxu0
        %1537 = vdwg.mxu0
        %v1538 = vadd.f32 %v1372, %v1520
        %v1539 = vadd.f32 %v1373, %v1525
        %v1540 = vadd.f32 %v1374, %v1530
        %v1541 = vadd.f32 %v1375, %v1535
        %vm1542 = vcmp.ge.f32.partialorder %v1538, 0.0
        %vm1543 = vcmp.ge.f32.partialorder %v1539, 0.0
        %vm1544 = vcmp.ge.f32.partialorder %v1540, 0.0
        %vm1545 = vcmp.ge.f32.partialorder %v1541, 0.0
        %v1546 = vmul.f32 %v1538, 0.2
        %v1547 = vmul.f32 %v1539, 0.2
        %v1548 = vmul.f32 %v1540, 0.2
        %v1549 = vmul.f32 %v1541, 0.2
        %v1550 = vsel %vm1542, %v1538, %v1546
        %v1551 = vsel %vm1543, %v1539, %v1547
        %v1552 = vsel %vm1544, %v1540, %v1548
        %v1553 = vsel %vm1545, %v1541, %v1549
        %v1554 = vld [vmem:[%s4] sm:$0xff]
        %v1555 = vld [vmem:[%s4 + $0x8] sm:$0xff]
        %v1557 = vsel %vm471, %v1550, 0
        %v1560 = vsel %vm471, %v1551, 0
        %v1563 = vsel %vm471, %v1552, 0
        %v1566 = vsel %vm471, %v1553, 0
        %1568 = vmatprep.subr.mxu0 0.0
        %1569 = vmatpush1.msra.mxu0 0.0
        %1570 = vmatprep.subr.mxu0 0.0
        %1571 = vmatpush1.msra.mxu0 0.0
        %1572 = vmatprep.subr.mxu0 0.0
        %1573 = vmatpush1.msra.mxu0 0.0
        %1574 = vmatprep.subr.mxu0 0.0
        %1575 = vmatpush1.msra.mxu0 0.0
        %1576 = vmatprep.subr.mxu0 0.0
        %1577 = vmatpush1.msra.mxu0 0.0
        %1578 = vmatprep.subr.mxu0 0.0
        %1579 = vmatpush1.msra.mxu0 0.0
        %1580 = vmatprep.subr.mxu0 0.0
        %1581 = vmatpush1.msra.mxu0 0.0
        %1582 = vmatprep.subr.mxu0 0.0
        %1583 = vmatpush1.msra.mxu0 0.0
        %1584 = vmatprep.subr.mxu0 0.0
        %1585 = vmatpush1.msra.mxu0 0.0
        %1586 = vmatprep.subr.mxu0 0.0
        %1587 = vmatpush1.msra.mxu0 0.0
        %1588 = vmatprep.subr.mxu0 0.0
        %1589 = vmatpush1.msra.mxu0 0.0
        %1590 = vmatprep.subr.mxu0 0.0
        %1591 = vmatpush1.msra.mxu0 0.0
        %1592 = vmatprep.subr.mxu0 0.0
        %1593 = vmatpush1.msra.mxu0 0.0
        %1594 = vmatprep.subr.mxu0 0.0
        %1595 = vmatpush1.msra.mxu0 0.0
        %1596 = vmatprep.subr.mxu0 0.0
        %1597 = vmatpush1.msra.mxu0 %v1555
        %1598 = vmatprep.subr.mxu0 0.0
        %1599 = vmatpush1.msra.mxu0 %v1554
        %1600 = vmatprep.subr.mxu0 0.0
        %1601 = vmatpush2.msra.mxu0 0.0
        %1602 = vmatprep.subr.mxu0 0.0
        %1603 = vmatpush2.msra.mxu0 0.0
        %1604 = vmatprep.subr.mxu0 0.0
        %1605 = vmatpush2.msra.mxu0 0.0
        %1606 = vmatprep.subr.mxu0 0.0
        %1607 = vmatpush2.msra.mxu0 0.0
        %1608 = vmatprep.subr.mxu0 0.0
        %1609 = vmatpush2.msra.mxu0 0.0
        %1610 = vmatprep.subr.mxu0 0.0
        %1611 = vmatpush2.msra.mxu0 0.0
        %1612 = vmatprep.subr.mxu0 0.0
        %1613 = vmatpush2.msra.mxu0 0.0
        %1614 = vmatprep.subr.mxu0 0.0
        %1615 = vmatpush2.msra.mxu0 0.0
        %1616 = vmatprep.subr.mxu0 0.0
        %1617 = vmatpush2.msra.mxu0 0.0
        %1618 = vmatprep.subr.mxu0 0.0
        %1619 = vmatpush2.msra.mxu0 0.0
        %1620 = vmatprep.subr.mxu0 0.0
        %1621 = vmatpush2.msra.mxu0 0.0
        %1622 = vmatprep.subr.mxu0 0.0
        %1623 = vmatpush2.msra.mxu0 0.0
        %1624 = vmatprep.subr.mxu0 0.0
        %1625 = vmatpush2.msra.mxu0 0.0
        %1626 = vmatprep.subr.mxu0 0.0
        %1627 = vmatpush2.msra.mxu0 0.0
        %1628 = vmatprep.subr.mxu0 0.0
        %1629 = vmatpush2.msra.mxu0 0.0
        %1630 = vmatprep.subr.mxu0 0.0
        %1631 = vmatpush2.msra.mxu0 0.0
        %1632 = vmatprep.mubr.f32.mxu0 0.0
        %1633 = vmatmul.mubr.f32.gmra.mxu0 %v1557
        %v1634 = vpop.f32.mrf.mxu0
        %v1635 = vadd.f32 0.0, %v1634
        %v1636 = vpop.f32.mrf.mxu0
        %1637 = vmatprep.mubr.f32.mxu0 0.0
        %1638 = vmatmul.mubr.f32.gmra.mxu0 %v1560
        %v1639 = vpop.f32.mrf.mxu0
        %v1640 = vadd.f32 0.0, %v1639
        %v1641 = vpop.f32.mrf.mxu0
        %1642 = vmatprep.mubr.f32.mxu0 0.0
        %1643 = vmatmul.mubr.f32.gmra.mxu0 %v1563
        %v1644 = vpop.f32.mrf.mxu0
        %v1645 = vadd.f32 0.0, %v1644
        %v1646 = vpop.f32.mrf.mxu0
        %1647 = vmatprep.mubr.f32.mxu0 0.0
        %1648 = vmatmul.mubr.f32.gmra.mxu0 %v1566
        %v1649 = vpop.f32.mrf.mxu0
        %v1650 = vadd.f32 0.0, %v1649
        %v1651 = vpop.f32.mrf.mxu0
        %1652 = vdwg.mxu0
        %v1653 = vld [vmem:[#allocation8] sm:$0xff]
        %v1654 = vld [vmem:[#allocation8 + $0x8] sm:$0xff]
        %v1655 = vld [vmem:[#allocation8 + $0x10] sm:$0xff]
        %v1656 = vld [vmem:[#allocation8 + $0x18] sm:$0xff]
        %1657 = vst.msk [vmem:[#allocation2] sm:$0xff] %vm445, 0.0
        %1658 = vst.msk [vmem:[#allocation2 + $0x8] sm:$0xff] %vm445, 0.0
        %1659 = vst.msk [vmem:[#allocation2 + $0x10] sm:$0xff] %vm445, 0.0
        %1660 = vst.msk [vmem:[#allocation2 + $0x18] sm:$0xff] %vm445, 0.0
        %1665 = vrot.lane.b32.xlu0 %v1635, 1
        %v1666 = vpop.permute.xlu0 %1665
        %1667 = vrot.lane.b32.xlu0 %v1640, 1
        %v1668 = vpop.permute.xlu0 %1667
        %1669 = vrot.lane.b32.xlu0 %v1645, 1
        %v1670 = vpop.permute.xlu0 %1669
        %1671 = vrot.lane.b32.xlu0 %v1650, 1
        %v1672 = vpop.permute.xlu0 %1671
        %vm1677 = vcmask 523272
        %1678 = vst.msk [vmem:[#allocation2] sm:$0xff] %vm1677, %v1666
        %1679 = vst.msk [vmem:[#allocation2 + $0x8] sm:$0xff] %vm1677, %v1668
        %1680 = vst.msk [vmem:[#allocation2 + $0x10] sm:$0xff] %vm1677, %v1670
        %1681 = vst.msk [vmem:[#allocation2 + $0x18] sm:$0xff] %vm1677, %v1672
        %vm1682 = vcmask 523264
        %1683 = vst.msk [vmem:[#allocation2 + $0x20] sm:$0xff] %vm1682, %v1635
        %1684 = vst.msk [vmem:[#allocation2 + $0x28] sm:$0xff] %vm1682, %v1640
        %1685 = vst.msk [vmem:[#allocation2 + $0x30] sm:$0xff] %vm1682, %v1645
        %1686 = vst.msk [vmem:[#allocation2 + $0x38] sm:$0xff] %vm1682, %v1650
        %1687 = vrot.lane.b32.xlu0 %v1635, 127
        %v1688 = vpop.permute.xlu0 %1687
        %1689 = vrot.lane.b32.xlu0 %v1640, 127
        %v1690 = vpop.permute.xlu0 %1689
        %1691 = vrot.lane.b32.xlu0 %v1645, 127
        %v1692 = vpop.permute.xlu0 %1691
        %1693 = vrot.lane.b32.xlu0 %v1650, 127
        %v1694 = vpop.permute.xlu0 %1693
        %vm1699 = vcmask 515072
        %1700 = vst.msk [vmem:[#allocation2 + $0x40] sm:$0xff] %vm1699, %v1688
        %1701 = vst.msk [vmem:[#allocation2 + $0x48] sm:$0xff] %vm1699, %v1690
        %1702 = vst.msk [vmem:[#allocation2 + $0x50] sm:$0xff] %vm1699, %v1692
        %1703 = vst.msk [vmem:[#allocation2 + $0x58] sm:$0xff] %vm1699, %v1694
        %vm1704 = vcmask 523768
        %1705 = vst.msk [vmem:[#allocation2 + $0x40] sm:$0xff] %vm1704, 0.0
        %1706 = vst.msk [vmem:[#allocation2 + $0x48] sm:$0xff] %vm1704, 0.0
        %1707 = vst.msk [vmem:[#allocation2 + $0x50] sm:$0xff] %vm1704, 0.0
        %1708 = vst.msk [vmem:[#allocation2 + $0x58] sm:$0xff] %vm1704, 0.0
        %v1709 = vld [vmem:[#allocation2] sm:$0xff]
        %v1710 = vld [vmem:[#allocation2 + $0x8] sm:$0xff]
        %v1711 = vld [vmem:[#allocation2 + $0x10] sm:$0xff]
        %v1712 = vld [vmem:[#allocation2 + $0x18] sm:$0xff]
        %v1713 = vld [vmem:[#allocation2 + $0x20] sm:$0xff]
        %v1714 = vld [vmem:[#allocation2 + $0x28] sm:$0xff]
        %v1715 = vld [vmem:[#allocation2 + $0x30] sm:$0xff]
        %v1716 = vld [vmem:[#allocation2 + $0x38] sm:$0xff]
        %v1717 = vld [vmem:[#allocation2 + $0x40] sm:$0xff]
        %v1718 = vld [vmem:[#allocation2 + $0x48] sm:$0xff]
        %v1719 = vld [vmem:[#allocation2 + $0x50] sm:$0xff]
        %v1720 = vld [vmem:[#allocation2 + $0x58] sm:$0xff]
        %v1722 = vsel %vm510, %v1653, 0
        %v1725 = vsel %vm510, %v1654, 0
        %v1728 = vsel %vm510, %v1655, 0
        %v1731 = vsel %vm510, %v1656, 0
        %1733 = vmatprep.subr.mxu0 0.0
        %1734 = vmatpush1.msra.mxu0 0.0
        %1735 = vmatprep.subr.mxu0 0.0
        %1736 = vmatpush1.msra.mxu0 0.0
        %1737 = vmatprep.subr.mxu0 0.0
        %1738 = vmatpush1.msra.mxu0 0.0
        %1739 = vmatprep.subr.mxu0 0.0
        %1740 = vmatpush1.msra.mxu0 0.0
        %1741 = vmatprep.subr.mxu0 0.0
        %1742 = vmatpush1.msra.mxu0 %v1720
        %1743 = vmatprep.subr.mxu0 0.0
        %1744 = vmatpush1.msra.mxu0 %v1719
        %1745 = vmatprep.subr.mxu0 0.0
        %1746 = vmatpush1.msra.mxu0 %v1718
        %1747 = vmatprep.subr.mxu0 0.0
        %1748 = vmatpush1.msra.mxu0 %v1717
        %1749 = vmatprep.subr.mxu0 0.0
        %1750 = vmatpush1.msra.mxu0 %v1716
        %1751 = vmatprep.subr.mxu0 0.0
        %1752 = vmatpush1.msra.mxu0 %v1715
        %1753 = vmatprep.subr.mxu0 0.0
        %1754 = vmatpush1.msra.mxu0 %v1714
        %1755 = vmatprep.subr.mxu0 0.0
        %1756 = vmatpush1.msra.mxu0 %v1713
        %1757 = vmatprep.subr.mxu0 0.0
        %1758 = vmatpush1.msra.mxu0 %v1712
        %1759 = vmatprep.subr.mxu0 0.0
        %1760 = vmatpush1.msra.mxu0 %v1711
        %1761 = vmatprep.subr.mxu0 0.0
        %1762 = vmatpush1.msra.mxu0 %v1710
        %1763 = vmatprep.subr.mxu0 0.0
        %1764 = vmatpush1.msra.mxu0 %v1709
        %1765 = vmatprep.subr.mxu0 0.0
        %1766 = vmatpush2.msra.mxu0 0.0
        %1767 = vmatprep.subr.mxu0 0.0
        %1768 = vmatpush2.msra.mxu0 0.0
        %1769 = vmatprep.subr.mxu0 0.0
        %1770 = vmatpush2.msra.mxu0 0.0
        %1771 = vmatprep.subr.mxu0 0.0
        %1772 = vmatpush2.msra.mxu0 0.0
        %1773 = vmatprep.subr.mxu0 0.0
        %1774 = vmatpush2.msra.mxu0 0.0
        %1775 = vmatprep.subr.mxu0 0.0
        %1776 = vmatpush2.msra.mxu0 0.0
        %1777 = vmatprep.subr.mxu0 0.0
        %1778 = vmatpush2.msra.mxu0 0.0
        %1779 = vmatprep.subr.mxu0 0.0
        %1780 = vmatpush2.msra.mxu0 0.0
        %1781 = vmatprep.subr.mxu0 0.0
        %1782 = vmatpush2.msra.mxu0 0.0
        %1783 = vmatprep.subr.mxu0 0.0
        %1784 = vmatpush2.msra.mxu0 0.0
        %1785 = vmatprep.subr.mxu0 0.0
        %1786 = vmatpush2.msra.mxu0 0.0
        %1787 = vmatprep.subr.mxu0 0.0
        %1788 = vmatpush2.msra.mxu0 0.0
        %1789 = vmatprep.subr.mxu0 0.0
        %1790 = vmatpush2.msra.mxu0 0.0
        %1791 = vmatprep.subr.mxu0 0.0
        %1792 = vmatpush2.msra.mxu0 0.0
        %1793 = vmatprep.subr.mxu0 0.0
        %1794 = vmatpush2.msra.mxu0 0.0
        %1795 = vmatprep.subr.mxu0 0.0
        %1796 = vmatpush2.msra.mxu0 0.0
        %1797 = vmatprep.mubr.f32.mxu0 0.0
        %1798 = vmatmul.mubr.f32.gmra.mxu0 %v1722
        %v1799 = vpop.f32.mrf.mxu0
        %v1800 = vadd.f32 0.0, %v1799
        %v1801 = vpop.f32.mrf.mxu0
        %1802 = vmatprep.mubr.f32.mxu0 0.0
        %1803 = vmatmul.mubr.f32.gmra.mxu0 %v1725
        %v1804 = vpop.f32.mrf.mxu0
        %v1805 = vadd.f32 0.0, %v1804
        %v1806 = vpop.f32.mrf.mxu0
        %1807 = vmatprep.mubr.f32.mxu0 0.0
        %1808 = vmatmul.mubr.f32.gmra.mxu0 %v1728
        %v1809 = vpop.f32.mrf.mxu0
        %v1810 = vadd.f32 0.0, %v1809
        %v1811 = vpop.f32.mrf.mxu0
        %1812 = vmatprep.mubr.f32.mxu0 0.0
        %1813 = vmatmul.mubr.f32.gmra.mxu0 %v1731
        %v1814 = vpop.f32.mrf.mxu0
        %v1815 = vadd.f32 0.0, %v1814
        %v1816 = vpop.f32.mrf.mxu0
        %1817 = vdwg.mxu0
        %v1818 = vadd.f32 %v1635, %v1800
        %v1819 = vadd.f32 %v1640, %v1805
        %v1820 = vadd.f32 %v1645, %v1810
        %v1821 = vadd.f32 %v1650, %v1815
        %vm1822 = vcmp.ge.f32.partialorder %v1818, 0.0
        %vm1823 = vcmp.ge.f32.partialorder %v1819, 0.0
        %vm1824 = vcmp.ge.f32.partialorder %v1820, 0.0
        %vm1825 = vcmp.ge.f32.partialorder %v1821, 0.0
        %v1826 = vmul.f32 %v1818, 0.2
        %v1827 = vmul.f32 %v1819, 0.2
        %v1828 = vmul.f32 %v1820, 0.2
        %v1829 = vmul.f32 %v1821, 0.2
        %v1830 = vsel %vm1822, %v1818, %v1826
        %v1831 = vsel %vm1823, %v1819, %v1827
        %v1832 = vsel %vm1824, %v1820, %v1828
        %v1833 = vsel %vm1825, %v1821, %v1829
        %s1834 = scalar_lea.vmem [#allocation8], 32
        %v1835 = vld [vmem:[%s1834] sm:$0xff]
        %v1836 = vld [vmem:[%s1834 + $0x8] sm:$0xff]
        %v1837 = vld [vmem:[%s1834 + $0x10] sm:$0xff]
        %v1838 = vld [vmem:[%s1834 + $0x18] sm:$0xff]
        %1839 = vst.msk [vmem:[#allocation2] sm:$0xff] %vm629, 0.0
        %1840 = vst.msk [vmem:[#allocation2 + $0x8] sm:$0xff] %vm629, 0.0
        %1841 = vst.msk [vmem:[#allocation2 + $0x10] sm:$0xff] %vm629, 0.0
        %1842 = vst.msk [vmem:[#allocation2 + $0x18] sm:$0xff] %vm629, 0.0
        %1847 = vrot.lane.b32.xlu0 %v1830, 4
        %v1848 = vpop.permute.xlu0 %1847
        %1849 = vrot.lane.b32.xlu0 %v1831, 4
        %v1850 = vpop.permute.xlu0 %1849
        %1851 = vrot.lane.b32.xlu0 %v1832, 4
        %v1852 = vpop.permute.xlu0 %1851
        %1853 = vrot.lane.b32.xlu0 %v1833, 4
        %v1854 = vpop.permute.xlu0 %1853
        %vm1859 = vcmask 523296
        %1860 = vst.msk [vmem:[#allocation2] sm:$0xff] %vm1859, %v1848
        %1861 = vst.msk [vmem:[#allocation2 + $0x8] sm:$0xff] %vm1859, %v1850
        %1862 = vst.msk [vmem:[#allocation2 + $0x10] sm:$0xff] %vm1859, %v1852
        %1863 = vst.msk [vmem:[#allocation2 + $0x18] sm:$0xff] %vm1859, %v1854
        %1864 = vst.msk [vmem:[#allocation2 + $0x20] sm:$0xff] %vm445, 0.0
        %1865 = vst.msk [vmem:[#allocation2 + $0x28] sm:$0xff] %vm445, 0.0
        %1866 = vst.msk [vmem:[#allocation2 + $0x30] sm:$0xff] %vm445, 0.0
        %1867 = vst.msk [vmem:[#allocation2 + $0x38] sm:$0xff] %vm445, 0.0
        %1868 = vrot.lane.b32.xlu0 %v1830, 1
        %v1869 = vpop.permute.xlu0 %1868
        %1870 = vrot.lane.b32.xlu0 %v1831, 1
        %v1871 = vpop.permute.xlu0 %1870
        %1872 = vrot.lane.b32.xlu0 %v1832, 1
        %v1873 = vpop.permute.xlu0 %1872
        %1874 = vrot.lane.b32.xlu0 %v1833, 1
        %v1875 = vpop.permute.xlu0 %1874
        %1880 = vst.msk [vmem:[#allocation2 + $0x20] sm:$0xff] %vm1677, %v1869
        %1881 = vst.msk [vmem:[#allocation2 + $0x28] sm:$0xff] %vm1677, %v1871
        %1882 = vst.msk [vmem:[#allocation2 + $0x30] sm:$0xff] %vm1677, %v1873
        %1883 = vst.msk [vmem:[#allocation2 + $0x38] sm:$0xff] %vm1677, %v1875
        %1884 = vrot.lane.b32.xlu0 %v1830, 126
        %v1885 = vpop.permute.xlu0 %1884
        %1886 = vrot.lane.b32.xlu0 %v1831, 126
        %v1887 = vpop.permute.xlu0 %1886
        %1888 = vrot.lane.b32.xlu0 %v1832, 126
        %v1889 = vpop.permute.xlu0 %1888
        %1890 = vrot.lane.b32.xlu0 %v1833, 126
        %v1891 = vpop.permute.xlu0 %1890
        %vm1896 = vcmask 506880
        %1897 = vst.msk [vmem:[#allocation2 + $0x40] sm:$0xff] %vm1896, %v1885
        %1898 = vst.msk [vmem:[#allocation2 + $0x48] sm:$0xff] %vm1896, %v1887
        %1899 = vst.msk [vmem:[#allocation2 + $0x50] sm:$0xff] %vm1896, %v1889
        %1900 = vst.msk [vmem:[#allocation2 + $0x58] sm:$0xff] %vm1896, %v1891
        %vm1901 = vcmask 523760
        %1902 = vst.msk [vmem:[#allocation2 + $0x40] sm:$0xff] %vm1901, 0.0
        %1903 = vst.msk [vmem:[#allocation2 + $0x48] sm:$0xff] %vm1901, 0.0
        %1904 = vst.msk [vmem:[#allocation2 + $0x50] sm:$0xff] %vm1901, 0.0
        %1905 = vst.msk [vmem:[#allocation2 + $0x58] sm:$0xff] %vm1901, 0.0
        %v1906 = vld [vmem:[#allocation2] sm:$0xff]
        %v1907 = vld [vmem:[#allocation2 + $0x8] sm:$0xff]
        %v1908 = vld [vmem:[#allocation2 + $0x10] sm:$0xff]
        %v1909 = vld [vmem:[#allocation2 + $0x18] sm:$0xff]
        %v1910 = vld [vmem:[#allocation2 + $0x20] sm:$0xff]
        %v1911 = vld [vmem:[#allocation2 + $0x28] sm:$0xff]
        %v1912 = vld [vmem:[#allocation2 + $0x30] sm:$0xff]
        %v1913 = vld [vmem:[#allocation2 + $0x38] sm:$0xff]
        %v1914 = vld [vmem:[#allocation2 + $0x40] sm:$0xff]
        %v1915 = vld [vmem:[#allocation2 + $0x48] sm:$0xff]
        %v1916 = vld [vmem:[#allocation2 + $0x50] sm:$0xff]
        %v1917 = vld [vmem:[#allocation2 + $0x58] sm:$0xff]
        %v1919 = vsel %vm510, %v1835, 0
        %v1922 = vsel %vm510, %v1836, 0
        %v1925 = vsel %vm510, %v1837, 0
        %v1928 = vsel %vm510, %v1838, 0
        %1930 = vmatprep.subr.mxu0 0.0
        %1931 = vmatpush1.msra.mxu0 0.0
        %1932 = vmatprep.subr.mxu0 0.0
        %1933 = vmatpush1.msra.mxu0 0.0
        %1934 = vmatprep.subr.mxu0 0.0
        %1935 = vmatpush1.msra.mxu0 0.0
        %1936 = vmatprep.subr.mxu0 0.0
        %1937 = vmatpush1.msra.mxu0 0.0
        %1938 = vmatprep.subr.mxu0 0.0
        %1939 = vmatpush1.msra.mxu0 %v1917
        %1940 = vmatprep.subr.mxu0 0.0
        %1941 = vmatpush1.msra.mxu0 %v1916
        %1942 = vmatprep.subr.mxu0 0.0
        %1943 = vmatpush1.msra.mxu0 %v1915
        %1944 = vmatprep.subr.mxu0 0.0
        %1945 = vmatpush1.msra.mxu0 %v1914
        %1946 = vmatprep.subr.mxu0 0.0
        %1947 = vmatpush1.msra.mxu0 %v1913
        %1948 = vmatprep.subr.mxu0 0.0
        %1949 = vmatpush1.msra.mxu0 %v1912
        %1950 = vmatprep.subr.mxu0 0.0
        %1951 = vmatpush1.msra.mxu0 %v1911
        %1952 = vmatprep.subr.mxu0 0.0
        %1953 = vmatpush1.msra.mxu0 %v1910
        %1954 = vmatprep.subr.mxu0 0.0
        %1955 = vmatpush1.msra.mxu0 %v1909
        %1956 = vmatprep.subr.mxu0 0.0
        %1957 = vmatpush1.msra.mxu0 %v1908
        %1958 = vmatprep.subr.mxu0 0.0
        %1959 = vmatpush1.msra.mxu0 %v1907
        %1960 = vmatprep.subr.mxu0 0.0
        %1961 = vmatpush1.msra.mxu0 %v1906
        %1962 = vmatprep.subr.mxu0 0.0
        %1963 = vmatpush2.msra.mxu0 0.0
        %1964 = vmatprep.subr.mxu0 0.0
        %1965 = vmatpush2.msra.mxu0 0.0
        %1966 = vmatprep.subr.mxu0 0.0
        %1967 = vmatpush2.msra.mxu0 0.0
        %1968 = vmatprep.subr.mxu0 0.0
        %1969 = vmatpush2.msra.mxu0 0.0
        %1970 = vmatprep.subr.mxu0 0.0
        %1971 = vmatpush2.msra.mxu0 0.0
        %1972 = vmatprep.subr.mxu0 0.0
        %1973 = vmatpush2.msra.mxu0 0.0
        %1974 = vmatprep.subr.mxu0 0.0
        %1975 = vmatpush2.msra.mxu0 0.0
        %1976 = vmatprep.subr.mxu0 0.0
        %1977 = vmatpush2.msra.mxu0 0.0
        %1978 = vmatprep.subr.mxu0 0.0
        %1979 = vmatpush2.msra.mxu0 0.0
        %1980 = vmatprep.subr.mxu0 0.0
        %1981 = vmatpush2.msra.mxu0 0.0
        %1982 = vmatprep.subr.mxu0 0.0
        %1983 = vmatpush2.msra.mxu0 0.0
        %1984 = vmatprep.subr.mxu0 0.0
        %1985 = vmatpush2.msra.mxu0 0.0
        %1986 = vmatprep.subr.mxu0 0.0
        %1987 = vmatpush2.msra.mxu0 0.0
        %1988 = vmatprep.subr.mxu0 0.0
        %1989 = vmatpush2.msra.mxu0 0.0
        %1990 = vmatprep.subr.mxu0 0.0
        %1991 = vmatpush2.msra.mxu0 0.0
        %1992 = vmatprep.subr.mxu0 0.0
        %1993 = vmatpush2.msra.mxu0 0.0
        %1994 = vmatprep.mubr.f32.mxu0 0.0
        %1995 = vmatmul.mubr.f32.gmra.mxu0 %v1919
        %v1996 = vpop.f32.mrf.mxu0
        %v1997 = vadd.f32 0.0, %v1996
        %v1998 = vpop.f32.mrf.mxu0
        %1999 = vmatprep.mubr.f32.mxu0 0.0
        %2000 = vmatmul.mubr.f32.gmra.mxu0 %v1922
        %v2001 = vpop.f32.mrf.mxu0
        %v2002 = vadd.f32 0.0, %v2001
        %v2003 = vpop.f32.mrf.mxu0
        %2004 = vmatprep.mubr.f32.mxu0 0.0
        %2005 = vmatmul.mubr.f32.gmra.mxu0 %v1925
        %v2006 = vpop.f32.mrf.mxu0
        %v2007 = vadd.f32 0.0, %v2006
        %v2008 = vpop.f32.mrf.mxu0
        %2009 = vmatprep.mubr.f32.mxu0 0.0
        %2010 = vmatmul.mubr.f32.gmra.mxu0 %v1928
        %v2011 = vpop.f32.mrf.mxu0
        %v2012 = vadd.f32 0.0, %v2011
        %v2013 = vpop.f32.mrf.mxu0
        %2014 = vdwg.mxu0
        %v2015 = vadd.f32 %v1830, %v1997
        %v2016 = vadd.f32 %v1831, %v2002
        %v2017 = vadd.f32 %v1832, %v2007
        %v2018 = vadd.f32 %v1833, %v2012
        %vm2019 = vcmp.ge.f32.partialorder %v2015, 0.0
        %vm2020 = vcmp.ge.f32.partialorder %v2016, 0.0
        %vm2021 = vcmp.ge.f32.partialorder %v2017, 0.0
        %vm2022 = vcmp.ge.f32.partialorder %v2018, 0.0
        %v2023 = vmul.f32 %v2015, 0.2
        %v2024 = vmul.f32 %v2016, 0.2
        %v2025 = vmul.f32 %v2017, 0.2
        %v2026 = vmul.f32 %v2018, 0.2
        %v2027 = vsel %vm2019, %v2015, %v2023
        %v2028 = vsel %vm2020, %v2016, %v2024
        %v2029 = vsel %vm2021, %v2017, %v2025
        %v2030 = vsel %vm2022, %v2018, %v2026
        %s2031 = scalar_lea.vmem [#allocation8], 64
        %v2032 = vld [vmem:[%s2031] sm:$0xff]
        %v2033 = vld [vmem:[%s2031 + $0x8] sm:$0xff]
        %v2034 = vld [vmem:[%s2031 + $0x10] sm:$0xff]
        %v2035 = vld [vmem:[%s2031 + $0x18] sm:$0xff]
        %2036 = vst.msk [vmem:[#allocation2] sm:$0xff] %vm827, 0.0
        %2037 = vst.msk [vmem:[#allocation2 + $0x8] sm:$0xff] %vm827, 0.0
        %2038 = vst.msk [vmem:[#allocation2 + $0x10] sm:$0xff] %vm827, 0.0
        %2039 = vst.msk [vmem:[#allocation2 + $0x18] sm:$0xff] %vm827, 0.0
        %2044 = vrot.lane.b32.xlu0 %v2027, 13
        %v2045 = vpop.permute.xlu0 %2044
        %2046 = vrot.lane.b32.xlu0 %v2028, 13
        %v2047 = vpop.permute.xlu0 %2046
        %2048 = vrot.lane.b32.xlu0 %v2029, 13
        %v2049 = vpop.permute.xlu0 %2048
        %2050 = vrot.lane.b32.xlu0 %v2030, 13
        %v2051 = vpop.permute.xlu0 %2050
        %vm2056 = vcmask 523368
        %2057 = vst.msk [vmem:[#allocation2] sm:$0xff] %vm2056, %v2045
        %2058 = vst.msk [vmem:[#allocation2 + $0x8] sm:$0xff] %vm2056, %v2047
        %2059 = vst.msk [vmem:[#allocation2 + $0x10] sm:$0xff] %vm2056, %v2049
        %2060 = vst.msk [vmem:[#allocation2 + $0x18] sm:$0xff] %vm2056, %v2051
        %2061 = vst.msk [vmem:[#allocation2 + $0x20] sm:$0xff] %vm629, 0.0
        %2062 = vst.msk [vmem:[#allocation2 + $0x28] sm:$0xff] %vm629, 0.0
        %2063 = vst.msk [vmem:[#allocation2 + $0x30] sm:$0xff] %vm629, 0.0
        %2064 = vst.msk [vmem:[#allocation2 + $0x38] sm:$0xff] %vm629, 0.0
        %2065 = vrot.lane.b32.xlu0 %v2027, 4
        %v2066 = vpop.permute.xlu0 %2065
        %2067 = vrot.lane.b32.xlu0 %v2028, 4
        %v2068 = vpop.permute.xlu0 %2067
        %2069 = vrot.lane.b32.xlu0 %v2029, 4
        %v2070 = vpop.permute.xlu0 %2069
        %2071 = vrot.lane.b32.xlu0 %v2030, 4
        %v2072 = vpop.permute.xlu0 %2071
        %2077 = vst.msk [vmem:[#allocation2 + $0x20] sm:$0xff] %vm1859, %v2066
        %2078 = vst.msk [vmem:[#allocation2 + $0x28] sm:$0xff] %vm1859, %v2068
        %2079 = vst.msk [vmem:[#allocation2 + $0x30] sm:$0xff] %vm1859, %v2070
        %2080 = vst.msk [vmem:[#allocation2 + $0x38] sm:$0xff] %vm1859, %v2072
        %2081 = vrot.lane.b32.xlu0 %v2027, 123
        %v2082 = vpop.permute.xlu0 %2081
        %2083 = vrot.lane.b32.xlu0 %v2028, 123
        %v2084 = vpop.permute.xlu0 %2083
        %2085 = vrot.lane.b32.xlu0 %v2029, 123
        %v2086 = vpop.permute.xlu0 %2085
        %2087 = vrot.lane.b32.xlu0 %v2030, 123
        %v2088 = vpop.permute.xlu0 %2087
        %vm2093 = vcmask 482304
        %2094 = vst.msk [vmem:[#allocation2 + $0x40] sm:$0xff] %vm2093, %v2082
        %2095 = vst.msk [vmem:[#allocation2 + $0x48] sm:$0xff] %vm2093, %v2084
        %2096 = vst.msk [vmem:[#allocation2 + $0x50] sm:$0xff] %vm2093, %v2086
        %2097 = vst.msk [vmem:[#allocation2 + $0x58] sm:$0xff] %vm2093, %v2088
        %vm2098 = vcmask 523736
        %2099 = vst.msk [vmem:[#allocation2 + $0x40] sm:$0xff] %vm2098, 0.0
        %2100 = vst.msk [vmem:[#allocation2 + $0x48] sm:$0xff] %vm2098, 0.0
        %2101 = vst.msk [vmem:[#allocation2 + $0x50] sm:$0xff] %vm2098, 0.0
        %2102 = vst.msk [vmem:[#allocation2 + $0x58] sm:$0xff] %vm2098, 0.0
        %v2103 = vld [vmem:[#allocation2] sm:$0xff]
        %v2104 = vld [vmem:[#allocation2 + $0x8] sm:$0xff]
        %v2105 = vld [vmem:[#allocation2 + $0x10] sm:$0xff]
        %v2106 = vld [vmem:[#allocation2 + $0x18] sm:$0xff]
        %v2107 = vld [vmem:[#allocation2 + $0x20] sm:$0xff]
        %v2108 = vld [vmem:[#allocation2 + $0x28] sm:$0xff]
        %v2109 = vld [vmem:[#allocation2 + $0x30] sm:$0xff]
        %v2110 = vld [vmem:[#allocation2 + $0x38] sm:$0xff]
        %v2111 = vld [vmem:[#allocation2 + $0x40] sm:$0xff]
        %v2112 = vld [vmem:[#allocation2 + $0x48] sm:$0xff]
        %v2113 = vld [vmem:[#allocation2 + $0x50] sm:$0xff]
        %v2114 = vld [vmem:[#allocation2 + $0x58] sm:$0xff]
        %v2116 = vsel %vm510, %v2032, 0
        %v2119 = vsel %vm510, %v2033, 0
        %v2122 = vsel %vm510, %v2034, 0
        %v2125 = vsel %vm510, %v2035, 0
        %2127 = vmatprep.subr.mxu0 0.0
        %2128 = vmatpush1.msra.mxu0 0.0
        %2129 = vmatprep.subr.mxu0 0.0
        %2130 = vmatpush1.msra.mxu0 0.0
        %2131 = vmatprep.subr.mxu0 0.0
        %2132 = vmatpush1.msra.mxu0 0.0
        %2133 = vmatprep.subr.mxu0 0.0
        %2134 = vmatpush1.msra.mxu0 0.0
        %2135 = vmatprep.subr.mxu0 0.0
        %2136 = vmatpush1.msra.mxu0 %v2114
        %2137 = vmatprep.subr.mxu0 0.0
        %2138 = vmatpush1.msra.mxu0 %v2113
        %2139 = vmatprep.subr.mxu0 0.0
        %2140 = vmatpush1.msra.mxu0 %v2112
        %2141 = vmatprep.subr.mxu0 0.0
        %2142 = vmatpush1.msra.mxu0 %v2111
        %2143 = vmatprep.subr.mxu0 0.0
        %2144 = vmatpush1.msra.mxu0 %v2110
        %2145 = vmatprep.subr.mxu0 0.0
        %2146 = vmatpush1.msra.mxu0 %v2109
        %2147 = vmatprep.subr.mxu0 0.0
        %2148 = vmatpush1.msra.mxu0 %v2108
        %2149 = vmatprep.subr.mxu0 0.0
        %2150 = vmatpush1.msra.mxu0 %v2107
        %2151 = vmatprep.subr.mxu0 0.0
        %2152 = vmatpush1.msra.mxu0 %v2106
        %2153 = vmatprep.subr.mxu0 0.0
        %2154 = vmatpush1.msra.mxu0 %v2105
        %2155 = vmatprep.subr.mxu0 0.0
        %2156 = vmatpush1.msra.mxu0 %v2104
        %2157 = vmatprep.subr.mxu0 0.0
        %2158 = vmatpush1.msra.mxu0 %v2103
        %2159 = vmatprep.subr.mxu0 0.0
        %2160 = vmatpush2.msra.mxu0 0.0
        %2161 = vmatprep.subr.mxu0 0.0
        %2162 = vmatpush2.msra.mxu0 0.0
        %2163 = vmatprep.subr.mxu0 0.0
        %2164 = vmatpush2.msra.mxu0 0.0
        %2165 = vmatprep.subr.mxu0 0.0
        %2166 = vmatpush2.msra.mxu0 0.0
        %2167 = vmatprep.subr.mxu0 0.0
        %2168 = vmatpush2.msra.mxu0 0.0
        %2169 = vmatprep.subr.mxu0 0.0
        %2170 = vmatpush2.msra.mxu0 0.0
        %2171 = vmatprep.subr.mxu0 0.0
        %2172 = vmatpush2.msra.mxu0 0.0
        %2173 = vmatprep.subr.mxu0 0.0
        %2174 = vmatpush2.msra.mxu0 0.0
        %2175 = vmatprep.subr.mxu0 0.0
        %2176 = vmatpush2.msra.mxu0 0.0
        %2177 = vmatprep.subr.mxu0 0.0
        %2178 = vmatpush2.msra.mxu0 0.0
        %2179 = vmatprep.subr.mxu0 0.0
        %2180 = vmatpush2.msra.mxu0 0.0
        %2181 = vmatprep.subr.mxu0 0.0
        %2182 = vmatpush2.msra.mxu0 0.0
        %2183 = vmatprep.subr.mxu0 0.0
        %2184 = vmatpush2.msra.mxu0 0.0
        %2185 = vmatprep.subr.mxu0 0.0
        %2186 = vmatpush2.msra.mxu0 0.0
        %2187 = vmatprep.subr.mxu0 0.0
        %2188 = vmatpush2.msra.mxu0 0.0
        %2189 = vmatprep.subr.mxu0 0.0
        %2190 = vmatpush2.msra.mxu0 0.0
        %2191 = vmatprep.mubr.f32.mxu0 0.0
        %2192 = vmatmul.mubr.f32.gmra.mxu0 %v2116
        %v2193 = vpop.f32.mrf.mxu0
        %v2194 = vadd.f32 0.0, %v2193
        %v2195 = vpop.f32.mrf.mxu0
        %2196 = vmatprep.mubr.f32.mxu0 0.0
        %2197 = vmatmul.mubr.f32.gmra.mxu0 %v2119
        %v2198 = vpop.f32.mrf.mxu0
        %v2199 = vadd.f32 0.0, %v2198
        %v2200 = vpop.f32.mrf.mxu0
        %2201 = vmatprep.mubr.f32.mxu0 0.0
        %2202 = vmatmul.mubr.f32.gmra.mxu0 %v2122
        %v2203 = vpop.f32.mrf.mxu0
        %v2204 = vadd.f32 0.0, %v2203
        %v2205 = vpop.f32.mrf.mxu0
        %2206 = vmatprep.mubr.f32.mxu0 0.0
        %2207 = vmatmul.mubr.f32.gmra.mxu0 %v2125
        %v2208 = vpop.f32.mrf.mxu0
        %v2209 = vadd.f32 0.0, %v2208
        %v2210 = vpop.f32.mrf.mxu0
        %2211 = vdwg.mxu0
        %v2212 = vadd.f32 %v2027, %v2194
        %v2213 = vadd.f32 %v2028, %v2199
        %v2214 = vadd.f32 %v2029, %v2204
        %v2215 = vadd.f32 %v2030, %v2209
        %vm2216 = vcmp.ge.f32.partialorder %v2212, 0.0
        %vm2217 = vcmp.ge.f32.partialorder %v2213, 0.0
        %vm2218 = vcmp.ge.f32.partialorder %v2214, 0.0
        %vm2219 = vcmp.ge.f32.partialorder %v2215, 0.0
        %v2220 = vmul.f32 %v2212, 0.2
        %v2221 = vmul.f32 %v2213, 0.2
        %v2222 = vmul.f32 %v2214, 0.2
        %v2223 = vmul.f32 %v2215, 0.2
        %v2224 = vsel %vm2216, %v2212, %v2220
        %v2225 = vsel %vm2217, %v2213, %v2221
        %v2226 = vsel %vm2218, %v2214, %v2222
        %v2227 = vsel %vm2219, %v2215, %v2223
        %s2228 = scalar_lea.vmem [#allocation8], 96
        %v2229 = vld [vmem:[%s2228] sm:$0xff]
        %v2230 = vld [vmem:[%s2228 + $0x8] sm:$0xff]
        %v2231 = vld [vmem:[%s2228 + $0x10] sm:$0xff]
        %v2232 = vld [vmem:[%s2228 + $0x18] sm:$0xff]
        %2233 = vst.msk [vmem:[#allocation2] sm:$0xff] %vm445, 0.0
        %2234 = vst.msk [vmem:[#allocation2 + $0x8] sm:$0xff] %vm445, 0.0
        %2235 = vst.msk [vmem:[#allocation2 + $0x10] sm:$0xff] %vm445, 0.0
        %2236 = vst.msk [vmem:[#allocation2 + $0x18] sm:$0xff] %vm445, 0.0
        %2241 = vrot.lane.b32.xlu0 %v2224, 1
        %v2242 = vpop.permute.xlu0 %2241
        %2243 = vrot.lane.b32.xlu0 %v2225, 1
        %v2244 = vpop.permute.xlu0 %2243
        %2245 = vrot.lane.b32.xlu0 %v2226, 1
        %v2246 = vpop.permute.xlu0 %2245
        %2247 = vrot.lane.b32.xlu0 %v2227, 1
        %v2248 = vpop.permute.xlu0 %2247
        %2253 = vst.msk [vmem:[#allocation2] sm:$0xff] %vm1677, %v2242
        %2254 = vst.msk [vmem:[#allocation2 + $0x8] sm:$0xff] %vm1677, %v2244
        %2255 = vst.msk [vmem:[#allocation2 + $0x10] sm:$0xff] %vm1677, %v2246
        %2256 = vst.msk [vmem:[#allocation2 + $0x18] sm:$0xff] %vm1677, %v2248
        %2257 = vst.msk [vmem:[#allocation2 + $0x20] sm:$0xff] %vm1682, %v2224
        %2258 = vst.msk [vmem:[#allocation2 + $0x28] sm:$0xff] %vm1682, %v2225
        %2259 = vst.msk [vmem:[#allocation2 + $0x30] sm:$0xff] %vm1682, %v2226
        %2260 = vst.msk [vmem:[#allocation2 + $0x38] sm:$0xff] %vm1682, %v2227
        %2261 = vrot.lane.b32.xlu0 %v2224, 127
        %v2262 = vpop.permute.xlu0 %2261
        %2263 = vrot.lane.b32.xlu0 %v2225, 127
        %v2264 = vpop.permute.xlu0 %2263
        %2265 = vrot.lane.b32.xlu0 %v2226, 127
        %v2266 = vpop.permute.xlu0 %2265
        %2267 = vrot.lane.b32.xlu0 %v2227, 127
        %v2268 = vpop.permute.xlu0 %2267
        %2273 = vst.msk [vmem:[#allocation2 + $0x40] sm:$0xff] %vm1699, %v2262
        %2274 = vst.msk [vmem:[#allocation2 + $0x48] sm:$0xff] %vm1699, %v2264
        %2275 = vst.msk [vmem:[#allocation2 + $0x50] sm:$0xff] %vm1699, %v2266
        %2276 = vst.msk [vmem:[#allocation2 + $0x58] sm:$0xff] %vm1699, %v2268
        %2277 = vst.msk [vmem:[#allocation2 + $0x40] sm:$0xff] %vm1704, 0.0
        %2278 = vst.msk [vmem:[#allocation2 + $0x48] sm:$0xff] %vm1704, 0.0
        %2279 = vst.msk [vmem:[#allocation2 + $0x50] sm:$0xff] %vm1704, 0.0
        %2280 = vst.msk [vmem:[#allocation2 + $0x58] sm:$0xff] %vm1704, 0.0
        %v2281 = vld [vmem:[#allocation2] sm:$0xff]
        %v2282 = vld [vmem:[#allocation2 + $0x8] sm:$0xff]
        %v2283 = vld [vmem:[#allocation2 + $0x10] sm:$0xff]
        %v2284 = vld [vmem:[#allocation2 + $0x18] sm:$0xff]
        %v2285 = vld [vmem:[#allocation2 + $0x20] sm:$0xff]
        %v2286 = vld [vmem:[#allocation2 + $0x28] sm:$0xff]
        %v2287 = vld [vmem:[#allocation2 + $0x30] sm:$0xff]
        %v2288 = vld [vmem:[#allocation2 + $0x38] sm:$0xff]
        %v2289 = vld [vmem:[#allocation2 + $0x40] sm:$0xff]
        %v2290 = vld [vmem:[#allocation2 + $0x48] sm:$0xff]
        %v2291 = vld [vmem:[#allocation2 + $0x50] sm:$0xff]
        %v2292 = vld [vmem:[#allocation2 + $0x58] sm:$0xff]
        %v2294 = vsel %vm510, %v2229, 0
        %v2297 = vsel %vm510, %v2230, 0
        %v2300 = vsel %vm510, %v2231, 0
        %v2303 = vsel %vm510, %v2232, 0
        %2305 = vmatprep.subr.mxu0 0.0
        %2306 = vmatpush1.msra.mxu0 0.0
        %2307 = vmatprep.subr.mxu0 0.0
        %2308 = vmatpush1.msra.mxu0 0.0
        %2309 = vmatprep.subr.mxu0 0.0
        %2310 = vmatpush1.msra.mxu0 0.0
        %2311 = vmatprep.subr.mxu0 0.0
        %2312 = vmatpush1.msra.mxu0 0.0
        %2313 = vmatprep.subr.mxu0 0.0
        %2314 = vmatpush1.msra.mxu0 %v2292
        %2315 = vmatprep.subr.mxu0 0.0
        %2316 = vmatpush1.msra.mxu0 %v2291
        %2317 = vmatprep.subr.mxu0 0.0
        %2318 = vmatpush1.msra.mxu0 %v2290
        %2319 = vmatprep.subr.mxu0 0.0
        %2320 = vmatpush1.msra.mxu0 %v2289
        %2321 = vmatprep.subr.mxu0 0.0
        %2322 = vmatpush1.msra.mxu0 %v2288
        %2323 = vmatprep.subr.mxu0 0.0
        %2324 = vmatpush1.msra.mxu0 %v2287
        %2325 = vmatprep.subr.mxu0 0.0
        %2326 = vmatpush1.msra.mxu0 %v2286
        %2327 = vmatprep.subr.mxu0 0.0
        %2328 = vmatpush1.msra.mxu0 %v2285
        %2329 = vmatprep.subr.mxu0 0.0
        %2330 = vmatpush1.msra.mxu0 %v2284
        %2331 = vmatprep.subr.mxu0 0.0
        %2332 = vmatpush1.msra.mxu0 %v2283
        %2333 = vmatprep.subr.mxu0 0.0
        %2334 = vmatpush1.msra.mxu0 %v2282
        %2335 = vmatprep.subr.mxu0 0.0
        %2336 = vmatpush1.msra.mxu0 %v2281
        %2337 = vmatprep.subr.mxu0 0.0
        %2338 = vmatpush2.msra.mxu0 0.0
        %2339 = vmatprep.subr.mxu0 0.0
        %2340 = vmatpush2.msra.mxu0 0.0
        %2341 = vmatprep.subr.mxu0 0.0
        %2342 = vmatpush2.msra.mxu0 0.0
        %2343 = vmatprep.subr.mxu0 0.0
        %2344 = vmatpush2.msra.mxu0 0.0
        %2345 = vmatprep.subr.mxu0 0.0
        %2346 = vmatpush2.msra.mxu0 0.0
        %2347 = vmatprep.subr.mxu0 0.0
        %2348 = vmatpush2.msra.mxu0 0.0
        %2349 = vmatprep.subr.mxu0 0.0
        %2350 = vmatpush2.msra.mxu0 0.0
        %2351 = vmatprep.subr.mxu0 0.0
        %2352 = vmatpush2.msra.mxu0 0.0
        %2353 = vmatprep.subr.mxu0 0.0
        %2354 = vmatpush2.msra.mxu0 0.0
        %2355 = vmatprep.subr.mxu0 0.0
        %2356 = vmatpush2.msra.mxu0 0.0
        %2357 = vmatprep.subr.mxu0 0.0
        %2358 = vmatpush2.msra.mxu0 0.0
        %2359 = vmatprep.subr.mxu0 0.0
        %2360 = vmatpush2.msra.mxu0 0.0
        %2361 = vmatprep.subr.mxu0 0.0
        %2362 = vmatpush2.msra.mxu0 0.0
        %2363 = vmatprep.subr.mxu0 0.0
        %2364 = vmatpush2.msra.mxu0 0.0
        %2365 = vmatprep.subr.mxu0 0.0
        %2366 = vmatpush2.msra.mxu0 0.0
        %2367 = vmatprep.subr.mxu0 0.0
        %2368 = vmatpush2.msra.mxu0 0.0
        %2369 = vmatprep.mubr.f32.mxu0 0.0
        %2370 = vmatmul.mubr.f32.gmra.mxu0 %v2294
        %v2371 = vpop.f32.mrf.mxu0
        %v2372 = vadd.f32 0.0, %v2371
        %v2373 = vpop.f32.mrf.mxu0
        %2374 = vmatprep.mubr.f32.mxu0 0.0
        %2375 = vmatmul.mubr.f32.gmra.mxu0 %v2297
        %v2376 = vpop.f32.mrf.mxu0
        %v2377 = vadd.f32 0.0, %v2376
        %v2378 = vpop.f32.mrf.mxu0
        %2379 = vmatprep.mubr.f32.mxu0 0.0
        %2380 = vmatmul.mubr.f32.gmra.mxu0 %v2300
        %v2381 = vpop.f32.mrf.mxu0
        %v2382 = vadd.f32 0.0, %v2381
        %v2383 = vpop.f32.mrf.mxu0
        %2384 = vmatprep.mubr.f32.mxu0 0.0
        %2385 = vmatmul.mubr.f32.gmra.mxu0 %v2303
        %v2386 = vpop.f32.mrf.mxu0
        %v2387 = vadd.f32 0.0, %v2386
        %v2388 = vpop.f32.mrf.mxu0
        %2389 = vdwg.mxu0
        %v2390 = vadd.f32 %v2224, %v2372
        %v2391 = vadd.f32 %v2225, %v2377
        %v2392 = vadd.f32 %v2226, %v2382
        %v2393 = vadd.f32 %v2227, %v2387
        %vm2394 = vcmp.ge.f32.partialorder %v2390, 0.0
        %vm2395 = vcmp.ge.f32.partialorder %v2391, 0.0
        %vm2396 = vcmp.ge.f32.partialorder %v2392, 0.0
        %vm2397 = vcmp.ge.f32.partialorder %v2393, 0.0
        %v2398 = vmul.f32 %v2390, 0.2
        %v2399 = vmul.f32 %v2391, 0.2
        %v2400 = vmul.f32 %v2392, 0.2
        %v2401 = vmul.f32 %v2393, 0.2
        %v2402 = vsel %vm2394, %v2390, %v2398
        %v2403 = vsel %vm2395, %v2391, %v2399
        %v2404 = vsel %vm2396, %v2392, %v2400
        %v2405 = vsel %vm2397, %v2393, %v2401
        %s2406 = scalar_lea.vmem [#allocation8], 128
        %v2407 = vld [vmem:[%s2406] sm:$0xff]
        %v2408 = vld [vmem:[%s2406 + $0x8] sm:$0xff]
        %v2409 = vld [vmem:[%s2406 + $0x10] sm:$0xff]
        %v2410 = vld [vmem:[%s2406 + $0x18] sm:$0xff]
        %2411 = vst.msk [vmem:[#allocation2] sm:$0xff] %vm629, 0.0
        %2412 = vst.msk [vmem:[#allocation2 + $0x8] sm:$0xff] %vm629, 0.0
        %2413 = vst.msk [vmem:[#allocation2 + $0x10] sm:$0xff] %vm629, 0.0
        %2414 = vst.msk [vmem:[#allocation2 + $0x18] sm:$0xff] %vm629, 0.0
        %2419 = vrot.lane.b32.xlu0 %v2402, 4
        %v2420 = vpop.permute.xlu0 %2419
        %2421 = vrot.lane.b32.xlu0 %v2403, 4
        %v2422 = vpop.permute.xlu0 %2421
        %2423 = vrot.lane.b32.xlu0 %v2404, 4
        %v2424 = vpop.permute.xlu0 %2423
        %2425 = vrot.lane.b32.xlu0 %v2405, 4
        %v2426 = vpop.permute.xlu0 %2425
        %2431 = vst.msk [vmem:[#allocation2] sm:$0xff] %vm1859, %v2420
        %2432 = vst.msk [vmem:[#allocation2 + $0x8] sm:$0xff] %vm1859, %v2422
        %2433 = vst.msk [vmem:[#allocation2 + $0x10] sm:$0xff] %vm1859, %v2424
        %2434 = vst.msk [vmem:[#allocation2 + $0x18] sm:$0xff] %vm1859, %v2426
        %2435 = vst.msk [vmem:[#allocation2 + $0x20] sm:$0xff] %vm445, 0.0
        %2436 = vst.msk [vmem:[#allocation2 + $0x28] sm:$0xff] %vm445, 0.0
        %2437 = vst.msk [vmem:[#allocation2 + $0x30] sm:$0xff] %vm445, 0.0
        %2438 = vst.msk [vmem:[#allocation2 + $0x38] sm:$0xff] %vm445, 0.0
        %2439 = vrot.lane.b32.xlu0 %v2402, 1
        %v2440 = vpop.permute.xlu0 %2439
        %2441 = vrot.lane.b32.xlu0 %v2403, 1
        %v2442 = vpop.permute.xlu0 %2441
        %2443 = vrot.lane.b32.xlu0 %v2404, 1
        %v2444 = vpop.permute.xlu0 %2443
        %2445 = vrot.lane.b32.xlu0 %v2405, 1
        %v2446 = vpop.permute.xlu0 %2445
        %2451 = vst.msk [vmem:[#allocation2 + $0x20] sm:$0xff] %vm1677, %v2440
        %2452 = vst.msk [vmem:[#allocation2 + $0x28] sm:$0xff] %vm1677, %v2442
        %2453 = vst.msk [vmem:[#allocation2 + $0x30] sm:$0xff] %vm1677, %v2444
        %2454 = vst.msk [vmem:[#allocation2 + $0x38] sm:$0xff] %vm1677, %v2446
        %2455 = vrot.lane.b32.xlu0 %v2402, 126
        %v2456 = vpop.permute.xlu0 %2455
        %2457 = vrot.lane.b32.xlu0 %v2403, 126
        %v2458 = vpop.permute.xlu0 %2457
        %2459 = vrot.lane.b32.xlu0 %v2404, 126
        %v2460 = vpop.permute.xlu0 %2459
        %2461 = vrot.lane.b32.xlu0 %v2405, 126
        %v2462 = vpop.permute.xlu0 %2461
        %2467 = vst.msk [vmem:[#allocation2 + $0x40] sm:$0xff] %vm1896, %v2456
        %2468 = vst.msk [vmem:[#allocation2 + $0x48] sm:$0xff] %vm1896, %v2458
        %2469 = vst.msk [vmem:[#allocation2 + $0x50] sm:$0xff] %vm1896, %v2460
        %2470 = vst.msk [vmem:[#allocation2 + $0x58] sm:$0xff] %vm1896, %v2462
        %2471 = vst.msk [vmem:[#allocation2 + $0x40] sm:$0xff] %vm1901, 0.0
        %2472 = vst.msk [vmem:[#allocation2 + $0x48] sm:$0xff] %vm1901, 0.0
        %2473 = vst.msk [vmem:[#allocation2 + $0x50] sm:$0xff] %vm1901, 0.0
        %2474 = vst.msk [vmem:[#allocation2 + $0x58] sm:$0xff] %vm1901, 0.0
        %v2475 = vld [vmem:[#allocation2] sm:$0xff]
        %v2476 = vld [vmem:[#allocation2 + $0x8] sm:$0xff]
        %v2477 = vld [vmem:[#allocation2 + $0x10] sm:$0xff]
        %v2478 = vld [vmem:[#allocation2 + $0x18] sm:$0xff]
        %v2479 = vld [vmem:[#allocation2 + $0x20] sm:$0xff]
        %v2480 = vld [vmem:[#allocation2 + $0x28] sm:$0xff]
        %v2481 = vld [vmem:[#allocation2 + $0x30] sm:$0xff]
        %v2482 = vld [vmem:[#allocation2 + $0x38] sm:$0xff]
        %v2483 = vld [vmem:[#allocation2 + $0x40] sm:$0xff]
        %v2484 = vld [vmem:[#allocation2 + $0x48] sm:$0xff]
        %v2485 = vld [vmem:[#allocation2 + $0x50] sm:$0xff]
        %v2486 = vld [vmem:[#allocation2 + $0x58] sm:$0xff]
        %v2488 = vsel %vm510, %v2407, 0
        %v2491 = vsel %vm510, %v2408, 0
        %v2494 = vsel %vm510, %v2409, 0
        %v2497 = vsel %vm510, %v2410, 0
        %2499 = vmatprep.subr.mxu0 0.0
        %2500 = vmatpush1.msra.mxu0 0.0
        %2501 = vmatprep.subr.mxu0 0.0
        %2502 = vmatpush1.msra.mxu0 0.0
        %2503 = vmatprep.subr.mxu0 0.0
        %2504 = vmatpush1.msra.mxu0 0.0
        %2505 = vmatprep.subr.mxu0 0.0
        %2506 = vmatpush1.msra.mxu0 0.0
        %2507 = vmatprep.subr.mxu0 0.0
        %2508 = vmatpush1.msra.mxu0 %v2486
        %2509 = vmatprep.subr.mxu0 0.0
        %2510 = vmatpush1.msra.mxu0 %v2485
        %2511 = vmatprep.subr.mxu0 0.0
        %2512 = vmatpush1.msra.mxu0 %v2484
        %2513 = vmatprep.subr.mxu0 0.0
        %2514 = vmatpush1.msra.mxu0 %v2483
        %2515 = vmatprep.subr.mxu0 0.0
        %2516 = vmatpush1.msra.mxu0 %v2482
        %2517 = vmatprep.subr.mxu0 0.0
        %2518 = vmatpush1.msra.mxu0 %v2481
        %2519 = vmatprep.subr.mxu0 0.0
        %2520 = vmatpush1.msra.mxu0 %v2480
        %2521 = vmatprep.subr.mxu0 0.0
        %2522 = vmatpush1.msra.mxu0 %v2479
        %2523 = vmatprep.subr.mxu0 0.0
        %2524 = vmatpush1.msra.mxu0 %v2478
        %2525 = vmatprep.subr.mxu0 0.0
        %2526 = vmatpush1.msra.mxu0 %v2477
        %2527 = vmatprep.subr.mxu0 0.0
        %2528 = vmatpush1.msra.mxu0 %v2476
        %2529 = vmatprep.subr.mxu0 0.0
        %2530 = vmatpush1.msra.mxu0 %v2475
        %2531 = vmatprep.subr.mxu0 0.0
        %2532 = vmatpush2.msra.mxu0 0.0
        %2533 = vmatprep.subr.mxu0 0.0
        %2534 = vmatpush2.msra.mxu0 0.0
        %2535 = vmatprep.subr.mxu0 0.0
        %2536 = vmatpush2.msra.mxu0 0.0
        %2537 = vmatprep.subr.mxu0 0.0
        %2538 = vmatpush2.msra.mxu0 0.0
        %2539 = vmatprep.subr.mxu0 0.0
        %2540 = vmatpush2.msra.mxu0 0.0
        %2541 = vmatprep.subr.mxu0 0.0
        %2542 = vmatpush2.msra.mxu0 0.0
        %2543 = vmatprep.subr.mxu0 0.0
        %2544 = vmatpush2.msra.mxu0 0.0
        %2545 = vmatprep.subr.mxu0 0.0
        %2546 = vmatpush2.msra.mxu0 0.0
        %2547 = vmatprep.subr.mxu0 0.0
        %2548 = vmatpush2.msra.mxu0 0.0
        %2549 = vmatprep.subr.mxu0 0.0
        %2550 = vmatpush2.msra.mxu0 0.0
        %2551 = vmatprep.subr.mxu0 0.0
        %2552 = vmatpush2.msra.mxu0 0.0
        %2553 = vmatprep.subr.mxu0 0.0
        %2554 = vmatpush2.msra.mxu0 0.0
        %2555 = vmatprep.subr.mxu0 0.0
        %2556 = vmatpush2.msra.mxu0 0.0
        %2557 = vmatprep.subr.mxu0 0.0
        %2558 = vmatpush2.msra.mxu0 0.0
        %2559 = vmatprep.subr.mxu0 0.0
        %2560 = vmatpush2.msra.mxu0 0.0
        %2561 = vmatprep.subr.mxu0 0.0
        %2562 = vmatpush2.msra.mxu0 0.0
        %2563 = vmatprep.mubr.f32.mxu0 0.0
        %2564 = vmatmul.mubr.f32.gmra.mxu0 %v2488
        %v2565 = vpop.f32.mrf.mxu0
        %v2566 = vadd.f32 0.0, %v2565
        %v2567 = vpop.f32.mrf.mxu0
        %2568 = vmatprep.mubr.f32.mxu0 0.0
        %2569 = vmatmul.mubr.f32.gmra.mxu0 %v2491
        %v2570 = vpop.f32.mrf.mxu0
        %v2571 = vadd.f32 0.0, %v2570
        %v2572 = vpop.f32.mrf.mxu0
        %2573 = vmatprep.mubr.f32.mxu0 0.0
        %2574 = vmatmul.mubr.f32.gmra.mxu0 %v2494
        %v2575 = vpop.f32.mrf.mxu0
        %v2576 = vadd.f32 0.0, %v2575
        %v2577 = vpop.f32.mrf.mxu0
        %2578 = vmatprep.mubr.f32.mxu0 0.0
        %2579 = vmatmul.mubr.f32.gmra.mxu0 %v2497
        %v2580 = vpop.f32.mrf.mxu0
        %v2581 = vadd.f32 0.0, %v2580
        %v2582 = vpop.f32.mrf.mxu0
        %2583 = vdwg.mxu0
        %v2584 = vadd.f32 %v2402, %v2566
        %v2585 = vadd.f32 %v2403, %v2571
        %v2586 = vadd.f32 %v2404, %v2576
        %v2587 = vadd.f32 %v2405, %v2581
        %vm2588 = vcmp.ge.f32.partialorder %v2584, 0.0
        %vm2589 = vcmp.ge.f32.partialorder %v2585, 0.0
        %vm2590 = vcmp.ge.f32.partialorder %v2586, 0.0
        %vm2591 = vcmp.ge.f32.partialorder %v2587, 0.0
        %v2592 = vmul.f32 %v2584, 0.2
        %v2593 = vmul.f32 %v2585, 0.2
        %v2594 = vmul.f32 %v2586, 0.2
        %v2595 = vmul.f32 %v2587, 0.2
        %v2596 = vsel %vm2588, %v2584, %v2592
        %v2597 = vsel %vm2589, %v2585, %v2593
        %v2598 = vsel %vm2590, %v2586, %v2594
        %v2599 = vsel %vm2591, %v2587, %v2595
        %s2600 = scalar_lea.vmem [#allocation8], 160
        %v2601 = vld [vmem:[%s2600] sm:$0xff]
        %v2602 = vld [vmem:[%s2600 + $0x8] sm:$0xff]
        %v2603 = vld [vmem:[%s2600 + $0x10] sm:$0xff]
        %v2604 = vld [vmem:[%s2600 + $0x18] sm:$0xff]
        %2605 = vst.msk [vmem:[#allocation2] sm:$0xff] %vm827, 0.0
        %2606 = vst.msk [vmem:[#allocation2 + $0x8] sm:$0xff] %vm827, 0.0
        %2607 = vst.msk [vmem:[#allocation2 + $0x10] sm:$0xff] %vm827, 0.0
        %2608 = vst.msk [vmem:[#allocation2 + $0x18] sm:$0xff] %vm827, 0.0
        %2613 = vrot.lane.b32.xlu0 %v2596, 13
        %v2614 = vpop.permute.xlu0 %2613
        %2615 = vrot.lane.b32.xlu0 %v2597, 13
        %v2616 = vpop.permute.xlu0 %2615
        %2617 = vrot.lane.b32.xlu0 %v2598, 13
        %v2618 = vpop.permute.xlu0 %2617
        %2619 = vrot.lane.b32.xlu0 %v2599, 13
        %v2620 = vpop.permute.xlu0 %2619
        %2625 = vst.msk [vmem:[#allocation2] sm:$0xff] %vm2056, %v2614
        %2626 = vst.msk [vmem:[#allocation2 + $0x8] sm:$0xff] %vm2056, %v2616
        %2627 = vst.msk [vmem:[#allocation2 + $0x10] sm:$0xff] %vm2056, %v2618
        %2628 = vst.msk [vmem:[#allocation2 + $0x18] sm:$0xff] %vm2056, %v2620
        %2629 = vst.msk [vmem:[#allocation2 + $0x20] sm:$0xff] %vm629, 0.0
        %2630 = vst.msk [vmem:[#allocation2 + $0x28] sm:$0xff] %vm629, 0.0
        %2631 = vst.msk [vmem:[#allocation2 + $0x30] sm:$0xff] %vm629, 0.0
        %2632 = vst.msk [vmem:[#allocation2 + $0x38] sm:$0xff] %vm629, 0.0
        %2633 = vrot.lane.b32.xlu0 %v2596, 4
        %v2634 = vpop.permute.xlu0 %2633
        %2635 = vrot.lane.b32.xlu0 %v2597, 4
        %v2636 = vpop.permute.xlu0 %2635
        %2637 = vrot.lane.b32.xlu0 %v2598, 4
        %v2638 = vpop.permute.xlu0 %2637
        %2639 = vrot.lane.b32.xlu0 %v2599, 4
        %v2640 = vpop.permute.xlu0 %2639
        %2645 = vst.msk [vmem:[#allocation2 + $0x20] sm:$0xff] %vm1859, %v2634
        %2646 = vst.msk [vmem:[#allocation2 + $0x28] sm:$0xff] %vm1859, %v2636
        %2647 = vst.msk [vmem:[#allocation2 + $0x30] sm:$0xff] %vm1859, %v2638
        %2648 = vst.msk [vmem:[#allocation2 + $0x38] sm:$0xff] %vm1859, %v2640
        %2649 = vrot.lane.b32.xlu0 %v2596, 123
        %v2650 = vpop.permute.xlu0 %2649
        %2651 = vrot.lane.b32.xlu0 %v2597, 123
        %v2652 = vpop.permute.xlu0 %2651
        %2653 = vrot.lane.b32.xlu0 %v2598, 123
        %v2654 = vpop.permute.xlu0 %2653
        %2655 = vrot.lane.b32.xlu0 %v2599, 123
        %v2656 = vpop.permute.xlu0 %2655
        %2661 = vst.msk [vmem:[#allocation2 + $0x40] sm:$0xff] %vm2093, %v2650
        %2662 = vst.msk [vmem:[#allocation2 + $0x48] sm:$0xff] %vm2093, %v2652
        %2663 = vst.msk [vmem:[#allocation2 + $0x50] sm:$0xff] %vm2093, %v2654
        %2664 = vst.msk [vmem:[#allocation2 + $0x58] sm:$0xff] %vm2093, %v2656
        %2665 = vst.msk [vmem:[#allocation2 + $0x40] sm:$0xff] %vm2098, 0.0
        %2666 = vst.msk [vmem:[#allocation2 + $0x48] sm:$0xff] %vm2098, 0.0
        %2667 = vst.msk [vmem:[#allocation2 + $0x50] sm:$0xff] %vm2098, 0.0
        %2668 = vst.msk [vmem:[#allocation2 + $0x58] sm:$0xff] %vm2098, 0.0
        %v2669 = vld [vmem:[#allocation2] sm:$0xff]
        %v2670 = vld [vmem:[#allocation2 + $0x8] sm:$0xff]
        %v2671 = vld [vmem:[#allocation2 + $0x10] sm:$0xff]
        %v2672 = vld [vmem:[#allocation2 + $0x18] sm:$0xff]
        %v2673 = vld [vmem:[#allocation2 + $0x20] sm:$0xff]
        %v2674 = vld [vmem:[#allocation2 + $0x28] sm:$0xff]
        %v2675 = vld [vmem:[#allocation2 + $0x30] sm:$0xff]
        %v2676 = vld [vmem:[#allocation2 + $0x38] sm:$0xff]
        %v2677 = vld [vmem:[#allocation2 + $0x40] sm:$0xff]
        %v2678 = vld [vmem:[#allocation2 + $0x48] sm:$0xff]
        %v2679 = vld [vmem:[#allocation2 + $0x50] sm:$0xff]
        %v2680 = vld [vmem:[#allocation2 + $0x58] sm:$0xff]
        %v2682 = vsel %vm510, %v2601, 0
        %v2685 = vsel %vm510, %v2602, 0
        %v2688 = vsel %vm510, %v2603, 0
        %v2691 = vsel %vm510, %v2604, 0
        %2693 = vmatprep.subr.mxu0 0.0
        %2694 = vmatpush1.msra.mxu0 0.0
        %2695 = vmatprep.subr.mxu0 0.0
        %2696 = vmatpush1.msra.mxu0 0.0
        %2697 = vmatprep.subr.mxu0 0.0
        %2698 = vmatpush1.msra.mxu0 0.0
        %2699 = vmatprep.subr.mxu0 0.0
        %2700 = vmatpush1.msra.mxu0 0.0
        %2701 = vmatprep.subr.mxu0 0.0
        %2702 = vmatpush1.msra.mxu0 %v2680
        %2703 = vmatprep.subr.mxu0 0.0
        %2704 = vmatpush1.msra.mxu0 %v2679
        %2705 = vmatprep.subr.mxu0 0.0
        %2706 = vmatpush1.msra.mxu0 %v2678
        %2707 = vmatprep.subr.mxu0 0.0
        %2708 = vmatpush1.msra.mxu0 %v2677
        %2709 = vmatprep.subr.mxu0 0.0
        %2710 = vmatpush1.msra.mxu0 %v2676
        %2711 = vmatprep.subr.mxu0 0.0
        %2712 = vmatpush1.msra.mxu0 %v2675
        %2713 = vmatprep.subr.mxu0 0.0
        %2714 = vmatpush1.msra.mxu0 %v2674
        %2715 = vmatprep.subr.mxu0 0.0
        %2716 = vmatpush1.msra.mxu0 %v2673
        %2717 = vmatprep.subr.mxu0 0.0
        %2718 = vmatpush1.msra.mxu0 %v2672
        %2719 = vmatprep.subr.mxu0 0.0
        %2720 = vmatpush1.msra.mxu0 %v2671
        %2721 = vmatprep.subr.mxu0 0.0
        %2722 = vmatpush1.msra.mxu0 %v2670
        %2723 = vmatprep.subr.mxu0 0.0
        %2724 = vmatpush1.msra.mxu0 %v2669
        %2725 = vmatprep.subr.mxu0 0.0
        %2726 = vmatpush2.msra.mxu0 0.0
        %2727 = vmatprep.subr.mxu0 0.0
        %2728 = vmatpush2.msra.mxu0 0.0
        %2729 = vmatprep.subr.mxu0 0.0
        %2730 = vmatpush2.msra.mxu0 0.0
        %2731 = vmatprep.subr.mxu0 0.0
        %2732 = vmatpush2.msra.mxu0 0.0
        %2733 = vmatprep.subr.mxu0 0.0
        %2734 = vmatpush2.msra.mxu0 0.0
        %2735 = vmatprep.subr.mxu0 0.0
        %2736 = vmatpush2.msra.mxu0 0.0
        %2737 = vmatprep.subr.mxu0 0.0
        %2738 = vmatpush2.msra.mxu0 0.0
        %2739 = vmatprep.subr.mxu0 0.0
        %2740 = vmatpush2.msra.mxu0 0.0
        %2741 = vmatprep.subr.mxu0 0.0
        %2742 = vmatpush2.msra.mxu0 0.0
        %2743 = vmatprep.subr.mxu0 0.0
        %2744 = vmatpush2.msra.mxu0 0.0
        %2745 = vmatprep.subr.mxu0 0.0
        %2746 = vmatpush2.msra.mxu0 0.0
        %2747 = vmatprep.subr.mxu0 0.0
        %2748 = vmatpush2.msra.mxu0 0.0
        %2749 = vmatprep.subr.mxu0 0.0
        %2750 = vmatpush2.msra.mxu0 0.0
        %2751 = vmatprep.subr.mxu0 0.0
        %2752 = vmatpush2.msra.mxu0 0.0
        %2753 = vmatprep.subr.mxu0 0.0
        %2754 = vmatpush2.msra.mxu0 0.0
        %2755 = vmatprep.subr.mxu0 0.0
        %2756 = vmatpush2.msra.mxu0 0.0
        %2757 = vmatprep.mubr.f32.mxu0 0.0
        %2758 = vmatmul.mubr.f32.gmra.mxu0 %v2682
        %v2759 = vpop.f32.mrf.mxu0
        %v2760 = vadd.f32 0.0, %v2759
        %v2761 = vpop.f32.mrf.mxu0
        %2762 = vmatprep.mubr.f32.mxu0 0.0
        %2763 = vmatmul.mubr.f32.gmra.mxu0 %v2685
        %v2764 = vpop.f32.mrf.mxu0
        %v2765 = vadd.f32 0.0, %v2764
        %v2766 = vpop.f32.mrf.mxu0
        %2767 = vmatprep.mubr.f32.mxu0 0.0
        %2768 = vmatmul.mubr.f32.gmra.mxu0 %v2688
        %v2769 = vpop.f32.mrf.mxu0
        %v2770 = vadd.f32 0.0, %v2769
        %v2771 = vpop.f32.mrf.mxu0
        %2772 = vmatprep.mubr.f32.mxu0 0.0
        %2773 = vmatmul.mubr.f32.gmra.mxu0 %v2691
        %v2774 = vpop.f32.mrf.mxu0
        %v2775 = vadd.f32 0.0, %v2774
        %v2776 = vpop.f32.mrf.mxu0
        %2777 = vdwg.mxu0
        %v2778 = vadd.f32 %v2596, %v2760
        %v2779 = vadd.f32 %v2597, %v2765
        %v2780 = vadd.f32 %v2598, %v2770
        %v2781 = vadd.f32 %v2599, %v2775
        %vm2782 = vcmp.ge.f32.partialorder %v2778, 0.0
        %vm2783 = vcmp.ge.f32.partialorder %v2779, 0.0
        %vm2784 = vcmp.ge.f32.partialorder %v2780, 0.0
        %vm2785 = vcmp.ge.f32.partialorder %v2781, 0.0
        %v2786 = vmul.f32 %v2778, 0.2
        %v2787 = vmul.f32 %v2779, 0.2
        %v2788 = vmul.f32 %v2780, 0.2
        %v2789 = vmul.f32 %v2781, 0.2
        %v2790 = vsel %vm2782, %v2778, %v2786
        %v2791 = vsel %vm2783, %v2779, %v2787
        %v2792 = vsel %vm2784, %v2780, %v2788
        %v2793 = vsel %vm2785, %v2781, %v2789
        %s2794 = scalar_lea.vmem [#allocation8], 192
        %v2795 = vld [vmem:[%s2794] sm:$0xff]
        %v2796 = vld [vmem:[%s2794 + $0x8] sm:$0xff]
        %v2797 = vld [vmem:[%s2794 + $0x10] sm:$0xff]
        %v2798 = vld [vmem:[%s2794 + $0x18] sm:$0xff]
        %2799 = vst.msk [vmem:[#allocation2] sm:$0xff] %vm445, 0.0
        %2800 = vst.msk [vmem:[#allocation2 + $0x8] sm:$0xff] %vm445, 0.0
        %2801 = vst.msk [vmem:[#allocation2 + $0x10] sm:$0xff] %vm445, 0.0
        %2802 = vst.msk [vmem:[#allocation2 + $0x18] sm:$0xff] %vm445, 0.0
        %2807 = vrot.lane.b32.xlu0 %v2790, 1
        %v2808 = vpop.permute.xlu0 %2807
        %2809 = vrot.lane.b32.xlu0 %v2791, 1
        %v2810 = vpop.permute.xlu0 %2809
        %2811 = vrot.lane.b32.xlu0 %v2792, 1
        %v2812 = vpop.permute.xlu0 %2811
        %2813 = vrot.lane.b32.xlu0 %v2793, 1
        %v2814 = vpop.permute.xlu0 %2813
        %2819 = vst.msk [vmem:[#allocation2] sm:$0xff] %vm1677, %v2808
        %2820 = vst.msk [vmem:[#allocation2 + $0x8] sm:$0xff] %vm1677, %v2810
        %2821 = vst.msk [vmem:[#allocation2 + $0x10] sm:$0xff] %vm1677, %v2812
        %2822 = vst.msk [vmem:[#allocation2 + $0x18] sm:$0xff] %vm1677, %v2814
        %2823 = vst.msk [vmem:[#allocation2 + $0x20] sm:$0xff] %vm1682, %v2790
        %2824 = vst.msk [vmem:[#allocation2 + $0x28] sm:$0xff] %vm1682, %v2791
        %2825 = vst.msk [vmem:[#allocation2 + $0x30] sm:$0xff] %vm1682, %v2792
        %2826 = vst.msk [vmem:[#allocation2 + $0x38] sm:$0xff] %vm1682, %v2793
        %2827 = vrot.lane.b32.xlu0 %v2790, 127
        %v2828 = vpop.permute.xlu0 %2827
        %2829 = vrot.lane.b32.xlu0 %v2791, 127
        %v2830 = vpop.permute.xlu0 %2829
        %2831 = vrot.lane.b32.xlu0 %v2792, 127
        %v2832 = vpop.permute.xlu0 %2831
        %2833 = vrot.lane.b32.xlu0 %v2793, 127
        %v2834 = vpop.permute.xlu0 %2833
        %2839 = vst.msk [vmem:[#allocation2 + $0x40] sm:$0xff] %vm1699, %v2828
        %2840 = vst.msk [vmem:[#allocation2 + $0x48] sm:$0xff] %vm1699, %v2830
        %2841 = vst.msk [vmem:[#allocation2 + $0x50] sm:$0xff] %vm1699, %v2832
        %2842 = vst.msk [vmem:[#allocation2 + $0x58] sm:$0xff] %vm1699, %v2834
        %2843 = vst.msk [vmem:[#allocation2 + $0x40] sm:$0xff] %vm1704, 0.0
        %2844 = vst.msk [vmem:[#allocation2 + $0x48] sm:$0xff] %vm1704, 0.0
        %2845 = vst.msk [vmem:[#allocation2 + $0x50] sm:$0xff] %vm1704, 0.0
        %2846 = vst.msk [vmem:[#allocation2 + $0x58] sm:$0xff] %vm1704, 0.0
        %v2847 = vld [vmem:[#allocation2] sm:$0xff]
        %v2848 = vld [vmem:[#allocation2 + $0x8] sm:$0xff]
        %v2849 = vld [vmem:[#allocation2 + $0x10] sm:$0xff]
        %v2850 = vld [vmem:[#allocation2 + $0x18] sm:$0xff]
        %v2851 = vld [vmem:[#allocation2 + $0x20] sm:$0xff]
        %v2852 = vld [vmem:[#allocation2 + $0x28] sm:$0xff]
        %v2853 = vld [vmem:[#allocation2 + $0x30] sm:$0xff]
        %v2854 = vld [vmem:[#allocation2 + $0x38] sm:$0xff]
        %v2855 = vld [vmem:[#allocation2 + $0x40] sm:$0xff]
        %v2856 = vld [vmem:[#allocation2 + $0x48] sm:$0xff]
        %v2857 = vld [vmem:[#allocation2 + $0x50] sm:$0xff]
        %v2858 = vld [vmem:[#allocation2 + $0x58] sm:$0xff]
        %v2860 = vsel %vm510, %v2795, 0
        %v2863 = vsel %vm510, %v2796, 0
        %v2866 = vsel %vm510, %v2797, 0
        %v2869 = vsel %vm510, %v2798, 0
        %2871 = vmatprep.subr.mxu0 0.0
        %2872 = vmatpush1.msra.mxu0 0.0
        %2873 = vmatprep.subr.mxu0 0.0
        %2874 = vmatpush1.msra.mxu0 0.0
        %2875 = vmatprep.subr.mxu0 0.0
        %2876 = vmatpush1.msra.mxu0 0.0
        %2877 = vmatprep.subr.mxu0 0.0
        %2878 = vmatpush1.msra.mxu0 0.0
        %2879 = vmatprep.subr.mxu0 0.0
        %2880 = vmatpush1.msra.mxu0 %v2858
        %2881 = vmatprep.subr.mxu0 0.0
        %2882 = vmatpush1.msra.mxu0 %v2857
        %2883 = vmatprep.subr.mxu0 0.0
        %2884 = vmatpush1.msra.mxu0 %v2856
        %2885 = vmatprep.subr.mxu0 0.0
        %2886 = vmatpush1.msra.mxu0 %v2855
        %2887 = vmatprep.subr.mxu0 0.0
        %2888 = vmatpush1.msra.mxu0 %v2854
        %2889 = vmatprep.subr.mxu0 0.0
        %2890 = vmatpush1.msra.mxu0 %v2853
        %2891 = vmatprep.subr.mxu0 0.0
        %2892 = vmatpush1.msra.mxu0 %v2852
        %2893 = vmatprep.subr.mxu0 0.0
        %2894 = vmatpush1.msra.mxu0 %v2851
        %2895 = vmatprep.subr.mxu0 0.0
        %2896 = vmatpush1.msra.mxu0 %v2850
        %2897 = vmatprep.subr.mxu0 0.0
        %2898 = vmatpush1.msra.mxu0 %v2849
        %2899 = vmatprep.subr.mxu0 0.0
        %2900 = vmatpush1.msra.mxu0 %v2848
        %2901 = vmatprep.subr.mxu0 0.0
        %2902 = vmatpush1.msra.mxu0 %v2847
        %2903 = vmatprep.subr.mxu0 0.0
        %2904 = vmatpush2.msra.mxu0 0.0
        %2905 = vmatprep.subr.mxu0 0.0
        %2906 = vmatpush2.msra.mxu0 0.0
        %2907 = vmatprep.subr.mxu0 0.0
        %2908 = vmatpush2.msra.mxu0 0.0
        %2909 = vmatprep.subr.mxu0 0.0
        %2910 = vmatpush2.msra.mxu0 0.0
        %2911 = vmatprep.subr.mxu0 0.0
        %2912 = vmatpush2.msra.mxu0 0.0
        %2913 = vmatprep.subr.mxu0 0.0
        %2914 = vmatpush2.msra.mxu0 0.0
        %2915 = vmatprep.subr.mxu0 0.0
        %2916 = vmatpush2.msra.mxu0 0.0
        %2917 = vmatprep.subr.mxu0 0.0
        %2918 = vmatpush2.msra.mxu0 0.0
        %2919 = vmatprep.subr.mxu0 0.0
        %2920 = vmatpush2.msra.mxu0 0.0
        %2921 = vmatprep.subr.mxu0 0.0
        %2922 = vmatpush2.msra.mxu0 0.0
        %2923 = vmatprep.subr.mxu0 0.0
        %2924 = vmatpush2.msra.mxu0 0.0
        %2925 = vmatprep.subr.mxu0 0.0
        %2926 = vmatpush2.msra.mxu0 0.0
        %2927 = vmatprep.subr.mxu0 0.0
        %2928 = vmatpush2.msra.mxu0 0.0
        %2929 = vmatprep.subr.mxu0 0.0
        %2930 = vmatpush2.msra.mxu0 0.0
        %2931 = vmatprep.subr.mxu0 0.0
        %2932 = vmatpush2.msra.mxu0 0.0
        %2933 = vmatprep.subr.mxu0 0.0
        %2934 = vmatpush2.msra.mxu0 0.0
        %2935 = vmatprep.mubr.f32.mxu0 0.0
        %2936 = vmatmul.mubr.f32.gmra.mxu0 %v2860
        %v2937 = vpop.f32.mrf.mxu0
        %v2938 = vadd.f32 0.0, %v2937
        %v2939 = vpop.f32.mrf.mxu0
        %2940 = vmatprep.mubr.f32.mxu0 0.0
        %2941 = vmatmul.mubr.f32.gmra.mxu0 %v2863
        %v2942 = vpop.f32.mrf.mxu0
        %v2943 = vadd.f32 0.0, %v2942
        %v2944 = vpop.f32.mrf.mxu0
        %2945 = vmatprep.mubr.f32.mxu0 0.0
        %2946 = vmatmul.mubr.f32.gmra.mxu0 %v2866
        %v2947 = vpop.f32.mrf.mxu0
        %v2948 = vadd.f32 0.0, %v2947
        %v2949 = vpop.f32.mrf.mxu0
        %2950 = vmatprep.mubr.f32.mxu0 0.0
        %2951 = vmatmul.mubr.f32.gmra.mxu0 %v2869
        %v2952 = vpop.f32.mrf.mxu0
        %v2953 = vadd.f32 0.0, %v2952
        %v2954 = vpop.f32.mrf.mxu0
        %2955 = vdwg.mxu0
        %v2956 = vadd.f32 %v2790, %v2938
        %v2957 = vadd.f32 %v2791, %v2943
        %v2958 = vadd.f32 %v2792, %v2948
        %v2959 = vadd.f32 %v2793, %v2953
        %vm2960 = vcmp.ge.f32.partialorder %v2956, 0.0
        %vm2961 = vcmp.ge.f32.partialorder %v2957, 0.0
        %vm2962 = vcmp.ge.f32.partialorder %v2958, 0.0
        %vm2963 = vcmp.ge.f32.partialorder %v2959, 0.0
        %v2964 = vmul.f32 %v2956, 0.2
        %v2965 = vmul.f32 %v2957, 0.2
        %v2966 = vmul.f32 %v2958, 0.2
        %v2967 = vmul.f32 %v2959, 0.2
        %v2968 = vsel %vm2960, %v2956, %v2964
        %v2969 = vsel %vm2961, %v2957, %v2965
        %v2970 = vsel %vm2962, %v2958, %v2966
        %v2971 = vsel %vm2963, %v2959, %v2967
        %s2972 = scalar_lea.vmem [#allocation8], 224
        %v2973 = vld [vmem:[%s2972] sm:$0xff]
        %v2974 = vld [vmem:[%s2972 + $0x8] sm:$0xff]
        %v2975 = vld [vmem:[%s2972 + $0x10] sm:$0xff]
        %v2976 = vld [vmem:[%s2972 + $0x18] sm:$0xff]
        %2977 = vst.msk [vmem:[#allocation2] sm:$0xff] %vm445, 0.0
        %2978 = vst.msk [vmem:[#allocation2 + $0x8] sm:$0xff] %vm445, 0.0
        %2979 = vst.msk [vmem:[#allocation2 + $0x10] sm:$0xff] %vm445, 0.0
        %2980 = vst.msk [vmem:[#allocation2 + $0x18] sm:$0xff] %vm445, 0.0
        %2985 = vrot.lane.b32.xlu0 %v2968, 1
        %v2986 = vpop.permute.xlu0 %2985
        %2987 = vrot.lane.b32.xlu0 %v2969, 1
        %v2988 = vpop.permute.xlu0 %2987
        %2989 = vrot.lane.b32.xlu0 %v2970, 1
        %v2990 = vpop.permute.xlu0 %2989
        %2991 = vrot.lane.b32.xlu0 %v2971, 1
        %v2992 = vpop.permute.xlu0 %2991
        %2997 = vst.msk [vmem:[#allocation2] sm:$0xff] %vm1677, %v2986
        %2998 = vst.msk [vmem:[#allocation2 + $0x8] sm:$0xff] %vm1677, %v2988
        %2999 = vst.msk [vmem:[#allocation2 + $0x10] sm:$0xff] %vm1677, %v2990
        %3000 = vst.msk [vmem:[#allocation2 + $0x18] sm:$0xff] %vm1677, %v2992
        %3001 = vst.msk [vmem:[#allocation2 + $0x20] sm:$0xff] %vm1682, %v2968
        %3002 = vst.msk [vmem:[#allocation2 + $0x28] sm:$0xff] %vm1682, %v2969
        %3003 = vst.msk [vmem:[#allocation2 + $0x30] sm:$0xff] %vm1682, %v2970
        %3004 = vst.msk [vmem:[#allocation2 + $0x38] sm:$0xff] %vm1682, %v2971
        %3005 = vrot.lane.b32.xlu0 %v2968, 127
        %v3006 = vpop.permute.xlu0 %3005
        %3007 = vrot.lane.b32.xlu0 %v2969, 127
        %v3008 = vpop.permute.xlu0 %3007
        %3009 = vrot.lane.b32.xlu0 %v2970, 127
        %v3010 = vpop.permute.xlu0 %3009
        %3011 = vrot.lane.b32.xlu0 %v2971, 127
        %v3012 = vpop.permute.xlu0 %3011
        %3017 = vst.msk [vmem:[#allocation2 + $0x40] sm:$0xff] %vm1699, %v3006
        %3018 = vst.msk [vmem:[#allocation2 + $0x48] sm:$0xff] %vm1699, %v3008
        %3019 = vst.msk [vmem:[#allocation2 + $0x50] sm:$0xff] %vm1699, %v3010
        %3020 = vst.msk [vmem:[#allocation2 + $0x58] sm:$0xff] %vm1699, %v3012
        %3021 = vst.msk [vmem:[#allocation2 + $0x40] sm:$0xff] %vm1704, 0.0
        %3022 = vst.msk [vmem:[#allocation2 + $0x48] sm:$0xff] %vm1704, 0.0
        %3023 = vst.msk [vmem:[#allocation2 + $0x50] sm:$0xff] %vm1704, 0.0
        %3024 = vst.msk [vmem:[#allocation2 + $0x58] sm:$0xff] %vm1704, 0.0
        %v3025 = vld [vmem:[#allocation2] sm:$0xff]
        %v3026 = vld [vmem:[#allocation2 + $0x8] sm:$0xff]
        %v3027 = vld [vmem:[#allocation2 + $0x10] sm:$0xff]
        %v3028 = vld [vmem:[#allocation2 + $0x18] sm:$0xff]
        %v3029 = vld [vmem:[#allocation2 + $0x20] sm:$0xff]
        %v3030 = vld [vmem:[#allocation2 + $0x28] sm:$0xff]
        %v3031 = vld [vmem:[#allocation2 + $0x30] sm:$0xff]
        %v3032 = vld [vmem:[#allocation2 + $0x38] sm:$0xff]
        %v3033 = vld [vmem:[#allocation2 + $0x40] sm:$0xff]
        %v3034 = vld [vmem:[#allocation2 + $0x48] sm:$0xff]
        %v3035 = vld [vmem:[#allocation2 + $0x50] sm:$0xff]
        %v3036 = vld [vmem:[#allocation2 + $0x58] sm:$0xff]
        %v3038 = vsel %vm510, %v2973, 0
        %v3041 = vsel %vm510, %v2974, 0
        %v3044 = vsel %vm510, %v2975, 0
        %v3047 = vsel %vm510, %v2976, 0
        %3049 = vmatprep.subr.mxu0 0.0
        %3050 = vmatpush1.msra.mxu0 0.0
        %3051 = vmatprep.subr.mxu0 0.0
        %3052 = vmatpush1.msra.mxu0 0.0
        %3053 = vmatprep.subr.mxu0 0.0
        %3054 = vmatpush1.msra.mxu0 0.0
        %3055 = vmatprep.subr.mxu0 0.0
        %3056 = vmatpush1.msra.mxu0 0.0
        %3057 = vmatprep.subr.mxu0 0.0
        %3058 = vmatpush1.msra.mxu0 %v3036
        %3059 = vmatprep.subr.mxu0 0.0
        %3060 = vmatpush1.msra.mxu0 %v3035
        %3061 = vmatprep.subr.mxu0 0.0
        %3062 = vmatpush1.msra.mxu0 %v3034
        %3063 = vmatprep.subr.mxu0 0.0
        %3064 = vmatpush1.msra.mxu0 %v3033
        %3065 = vmatprep.subr.mxu0 0.0
        %3066 = vmatpush1.msra.mxu0 %v3032
        %3067 = vmatprep.subr.mxu0 0.0
        %3068 = vmatpush1.msra.mxu0 %v3031
        %3069 = vmatprep.subr.mxu0 0.0
        %3070 = vmatpush1.msra.mxu0 %v3030
        %3071 = vmatprep.subr.mxu0 0.0
        %3072 = vmatpush1.msra.mxu0 %v3029
        %3073 = vmatprep.subr.mxu0 0.0
        %3074 = vmatpush1.msra.mxu0 %v3028
        %3075 = vmatprep.subr.mxu0 0.0
        %3076 = vmatpush1.msra.mxu0 %v3027
        %3077 = vmatprep.subr.mxu0 0.0
        %3078 = vmatpush1.msra.mxu0 %v3026
        %3079 = vmatprep.subr.mxu0 0.0
        %3080 = vmatpush1.msra.mxu0 %v3025
        %3081 = vmatprep.subr.mxu0 0.0
        %3082 = vmatpush2.msra.mxu0 0.0
        %3083 = vmatprep.subr.mxu0 0.0
        %3084 = vmatpush2.msra.mxu0 0.0
        %3085 = vmatprep.subr.mxu0 0.0
        %3086 = vmatpush2.msra.mxu0 0.0
        %3087 = vmatprep.subr.mxu0 0.0
        %3088 = vmatpush2.msra.mxu0 0.0
        %3089 = vmatprep.subr.mxu0 0.0
        %3090 = vmatpush2.msra.mxu0 0.0
        %3091 = vmatprep.subr.mxu0 0.0
        %3092 = vmatpush2.msra.mxu0 0.0
        %3093 = vmatprep.subr.mxu0 0.0
        %3094 = vmatpush2.msra.mxu0 0.0
        %3095 = vmatprep.subr.mxu0 0.0
        %3096 = vmatpush2.msra.mxu0 0.0
        %3097 = vmatprep.subr.mxu0 0.0
        %3098 = vmatpush2.msra.mxu0 0.0
        %3099 = vmatprep.subr.mxu0 0.0
        %3100 = vmatpush2.msra.mxu0 0.0
        %3101 = vmatprep.subr.mxu0 0.0
        %3102 = vmatpush2.msra.mxu0 0.0
        %3103 = vmatprep.subr.mxu0 0.0
        %3104 = vmatpush2.msra.mxu0 0.0
        %3105 = vmatprep.subr.mxu0 0.0
        %3106 = vmatpush2.msra.mxu0 0.0
        %3107 = vmatprep.subr.mxu0 0.0
        %3108 = vmatpush2.msra.mxu0 0.0
        %3109 = vmatprep.subr.mxu0 0.0
        %3110 = vmatpush2.msra.mxu0 0.0
        %3111 = vmatprep.subr.mxu0 0.0
        %3112 = vmatpush2.msra.mxu0 0.0
        %3113 = vmatprep.mubr.f32.mxu0 0.0
        %3114 = vmatmul.mubr.f32.gmra.mxu0 %v3038
        %v3115 = vpop.f32.mrf.mxu0
        %v3116 = vadd.f32 0.0, %v3115
        %v3117 = vpop.f32.mrf.mxu0
        %3118 = vmatprep.mubr.f32.mxu0 0.0
        %3119 = vmatmul.mubr.f32.gmra.mxu0 %v3041
        %v3120 = vpop.f32.mrf.mxu0
        %v3121 = vadd.f32 0.0, %v3120
        %v3122 = vpop.f32.mrf.mxu0
        %3123 = vmatprep.mubr.f32.mxu0 0.0
        %3124 = vmatmul.mubr.f32.gmra.mxu0 %v3044
        %v3125 = vpop.f32.mrf.mxu0
        %v3126 = vadd.f32 0.0, %v3125
        %v3127 = vpop.f32.mrf.mxu0
        %3128 = vmatprep.mubr.f32.mxu0 0.0
        %3129 = vmatmul.mubr.f32.gmra.mxu0 %v3047
        %v3130 = vpop.f32.mrf.mxu0
        %v3131 = vadd.f32 0.0, %v3130
        %v3132 = vpop.f32.mrf.mxu0
        %3133 = vdwg.mxu0
        %v3134 = vadd.f32 %v2968, %v3116
        %v3135 = vadd.f32 %v2969, %v3121
        %v3136 = vadd.f32 %v2970, %v3126
        %v3137 = vadd.f32 %v2971, %v3131
        %vm3138 = vcmp.ge.f32.partialorder %v3134, 0.0
        %vm3139 = vcmp.ge.f32.partialorder %v3135, 0.0
        %vm3140 = vcmp.ge.f32.partialorder %v3136, 0.0
        %vm3141 = vcmp.ge.f32.partialorder %v3137, 0.0
        %v3142 = vmul.f32 %v3134, 0.2
        %v3143 = vmul.f32 %v3135, 0.2
        %v3144 = vmul.f32 %v3136, 0.2
        %v3145 = vmul.f32 %v3137, 0.2
        %v3146 = vsel %vm3138, %v3134, %v3142
        %v3147 = vsel %vm3139, %v3135, %v3143
        %v3148 = vsel %vm3140, %v3136, %v3144
        %v3149 = vsel %vm3141, %v3137, %v3145
        %3154 = vrot.lane.b32.xlu0 %v3146, 4
        %v3155 = vpop.permute.xlu0 %3154
        %3156 = vrot.lane.b32.xlu0 %v3147, 4
        %v3157 = vpop.permute.xlu0 %3156
        %3158 = vrot.lane.b32.xlu0 %v3148, 4
        %v3159 = vpop.permute.xlu0 %3158
        %3160 = vrot.lane.b32.xlu0 %v3149, 4
        %v3161 = vpop.permute.xlu0 %3160
        %vm3166 = vcmask 556064
        %3167 = vst.msk [vmem:[#allocation3] sm:$0xff] %vm3166, %v3155
        %3168 = vst.msk [vmem:[#allocation3 + $0x10] sm:$0xff] %vm3166, %v3157
        %3169 = vst.msk [vmem:[#allocation3 + $0x20] sm:$0xff] %vm3166, %v3159
        %3170 = vst.msk [vmem:[#allocation3 + $0x30] sm:$0xff] %vm3166, %v3161
        %v3171 = vld [vmem:[%s5] sm:$0xff]
        %v3172 = vld [vmem:[#allocation3] sm:$0xff]
        %v3173 = vld [vmem:[#allocation3 + $0x8] sm:$0xff]
        %v3174 = vld [vmem:[#allocation3 + $0x10] sm:$0xff]
        %v3175 = vld [vmem:[#allocation3 + $0x18] sm:$0xff]
        %v3176 = vld [vmem:[#allocation3 + $0x20] sm:$0xff]
        %v3177 = vld [vmem:[#allocation3 + $0x28] sm:$0xff]
        %v3178 = vld [vmem:[#allocation3 + $0x30] sm:$0xff]
        %v3179 = vld [vmem:[#allocation3 + $0x38] sm:$0xff]
        %vm3180 = vcmask 261120
        %v3182 = vsel %vm3180, %v3171, 0
        %3184 = vmatprep.subr.mxu0 0.0
        %3185 = vmatpush1.msra.mxu0 0.0
        %3186 = vmatprep.subr.mxu0 0.0
        %3187 = vmatpush1.msra.mxu0 0.0
        %3188 = vmatprep.subr.mxu0 0.0
        %3189 = vmatpush1.msra.mxu0 0.0
        %3190 = vmatprep.subr.mxu0 0.0
        %3191 = vmatpush1.msra.mxu0 0.0
        %3192 = vmatprep.subr.mxu0 0.0
        %3193 = vmatpush1.msra.mxu0 0.0
        %3194 = vmatprep.subr.mxu0 0.0
        %3195 = vmatpush1.msra.mxu0 0.0
        %3196 = vmatprep.subr.mxu0 0.0
        %3197 = vmatpush1.msra.mxu0 0.0
        %3198 = vmatprep.subr.mxu0 0.0
        %3199 = vmatpush1.msra.mxu0 0.0
        %3200 = vmatprep.subr.mxu0 0.0
        %3201 = vmatpush1.msra.mxu0 0.0
        %3202 = vmatprep.subr.mxu0 0.0
        %3203 = vmatpush1.msra.mxu0 0.0
        %3204 = vmatprep.subr.mxu0 0.0
        %3205 = vmatpush1.msra.mxu0 0.0
        %3206 = vmatprep.subr.mxu0 0.0
        %3207 = vmatpush1.msra.mxu0 0.0
        %3208 = vmatprep.subr.mxu0 %v3179
        %3209 = vmatpush1.msra.mxu0 %v3178
        %3210 = vmatprep.subr.mxu0 %v3177
        %3211 = vmatpush1.msra.mxu0 %v3176
        %3212 = vmatprep.subr.mxu0 %v3175
        %3213 = vmatpush1.msra.mxu0 %v3174
        %3214 = vmatprep.subr.mxu0 %v3173
        %3215 = vmatpush1.msra.mxu0 %v3172
        %3216 = vmatprep.subr.mxu0 0.0
        %3217 = vmatpush2.msra.mxu0 0.0
        %3218 = vmatprep.subr.mxu0 0.0
        %3219 = vmatpush2.msra.mxu0 0.0
        %3220 = vmatprep.subr.mxu0 0.0
        %3221 = vmatpush2.msra.mxu0 0.0
        %3222 = vmatprep.subr.mxu0 0.0
        %3223 = vmatpush2.msra.mxu0 0.0
        %3224 = vmatprep.subr.mxu0 0.0
        %3225 = vmatpush2.msra.mxu0 0.0
        %3226 = vmatprep.subr.mxu0 0.0
        %3227 = vmatpush2.msra.mxu0 0.0
        %3228 = vmatprep.subr.mxu0 0.0
        %3229 = vmatpush2.msra.mxu0 0.0
        %3230 = vmatprep.subr.mxu0 0.0
        %3231 = vmatpush2.msra.mxu0 0.0
        %3232 = vmatprep.subr.mxu0 0.0
        %3233 = vmatpush2.msra.mxu0 0.0
        %3234 = vmatprep.subr.mxu0 0.0
        %3235 = vmatpush2.msra.mxu0 0.0
        %3236 = vmatprep.subr.mxu0 0.0
        %3237 = vmatpush2.msra.mxu0 0.0
        %3238 = vmatprep.subr.mxu0 0.0
        %3239 = vmatpush2.msra.mxu0 0.0
        %3240 = vmatprep.subr.mxu0 0.0
        %3241 = vmatpush2.msra.mxu0 0.0
        %3242 = vmatprep.subr.mxu0 0.0
        %3243 = vmatpush2.msra.mxu0 0.0
        %3244 = vmatprep.subr.mxu0 0.0
        %3245 = vmatpush2.msra.mxu0 0.0
        %3246 = vmatprep.subr.mxu0 0.0
        %3247 = vmatpush2.msra.mxu0 0.0
        %3248 = vmatprep.mubr.f32.mxu0 0.0
        %3249 = vmatmul.mubr.f32.gmra.mxu0 %v3182
        %v3250 = vpop.f32.mrf.mxu0
        %v3251 = vadd.f32 0.0, %v3250
        %v3252 = vpop.f32.mrf.mxu0
        %v3253 = vadd.f32 0.0, %v3252
        %3254 = vdwg.mxu0
        %v3257 = vrot.slane %v3251, 1
        %v3258 = vrot.slane %v3253, 1
        %3259 = vrot.lane.b32.xlu0 %v3257, 127
        %v3260 = vpop.permute.xlu0 %3259
        %3261 = vrot.lane.b32.xlu0 %v3258, 127
        %v3262 = vpop.permute.xlu0 %3261
        %vm3263 = vcmask 1039360
        %v3264 = vsel %vm3263, %v3260, %v3262
        %v3266 = vadd.f32 %v3251, %v3264
        %v3267 = vrot.slane %v3251, 2
        %v3268 = vrot.slane %v3253, 2
        %3269 = vrot.lane.b32.xlu0 %v3267, 126
        %v3270 = vpop.permute.xlu0 %3269
        %3271 = vrot.lane.b32.xlu0 %v3268, 126
        %v3272 = vpop.permute.xlu0 %3271
        %vm3273 = vcmask 1031168
        %v3274 = vsel %vm3273, %v3270, %v3272
        %v3276 = vadd.f32 %v3266, %v3274
        %v3277 = vrot.slane %v3251, 3
        %v3278 = vrot.slane %v3253, 3
        %3279 = vrot.lane.b32.xlu0 %v3277, 125
        %v3280 = vpop.permute.xlu0 %3279
        %3281 = vrot.lane.b32.xlu0 %v3278, 125
        %v3282 = vpop.permute.xlu0 %3281
        %vm3283 = vcmask 1022976
        %v3284 = vsel %vm3283, %v3280, %v3282
        %v3286 = vadd.f32 %v3276, %v3284
        %v3287 = vrot.slane %v3251, 4
        %v3288 = vrot.slane %v3253, 4
        %3289 = vrot.lane.b32.xlu0 %v3287, 124
        %v3290 = vpop.permute.xlu0 %3289
        %3291 = vrot.lane.b32.xlu0 %v3288, 124
        %v3292 = vpop.permute.xlu0 %3291
        %vm3293 = vcmask 1014784
        %v3294 = vsel %vm3293, %v3290, %v3292
        %v3296 = vadd.f32 %v3286, %v3294
        %v3297 = vrot.slane %v3251, 5
        %v3298 = vrot.slane %v3253, 5
        %3299 = vrot.lane.b32.xlu0 %v3297, 123
        %v3300 = vpop.permute.xlu0 %3299
        %3301 = vrot.lane.b32.xlu0 %v3298, 123
        %v3302 = vpop.permute.xlu0 %3301
        %vm3303 = vcmask 1006592
        %v3304 = vsel %vm3303, %v3300, %v3302
        %v3306 = vadd.f32 %v3296, %v3304
        %v3307 = vrot.slane %v3251, 6
        %v3308 = vrot.slane %v3253, 6
        %3309 = vrot.lane.b32.xlu0 %v3307, 122
        %v3310 = vpop.permute.xlu0 %3309
        %3311 = vrot.lane.b32.xlu0 %v3308, 122
        %v3312 = vpop.permute.xlu0 %3311
        %vm3313 = vcmask 998400
        %v3314 = vsel %vm3313, %v3310, %v3312
        %v3316 = vadd.f32 %v3306, %v3314
        %v3317 = vrot.slane %v3251, 7
        %v3318 = vrot.slane %v3253, 7
        %3319 = vrot.lane.b32.xlu0 %v3317, 121
        %v3320 = vpop.permute.xlu0 %3319
        %3321 = vrot.lane.b32.xlu0 %v3318, 121
        %v3322 = vpop.permute.xlu0 %3321
        %vm3323 = vcmask 990208
        %v3324 = vsel %vm3323, %v3320, %v3322
        %v3326 = vadd.f32 %v3316, %v3324
        %s3327 = sld [smem:[#allocation4]]
        %s3328 = sand.u32 2147483647, %s3327
        %v3329 = vstv %s3328
        %v3330 = vmul.f32 %v3326, %v3329
        %3331 = vst [vmem:[%s299] sm:$0x1] %v3330
        %s3332 = sand.u32 %s184, 1
        %s3333 = scalar_lea.sflag [#allocation7], %s3332
        %s3334 = sand.u32 %s184, 1
        %s3335 = scalar_lea.vmem [#allocation10], %s3334
        // Predicated region
        $region61: #{tpu_custom_call.1} parent=47 // pred_check
          %p3336 = pneg %p194
        $region62: #{tpu_custom_call.1} parent=47 // pred_check_branch
          %3338 = sbr.rel (%p3336) target = $region64
        $region63: #{tpu_custom_call.1} parent=47 // pred_region
          %s3340 = ssub.s32 16, 16
          %3341 = vsyncadd %s3333, %s3340
          %s3342 = smul.addr %s24, 16
          %s3343 = scalar_lea.hbm %s7, %s3342
          %s3345 = sshll.u32 %s3335, 4
          %s3346 = int_to_ptr.vmem [resolvable:$true] %s3345
          %3348 = dma.vmem_to_hbm [thread:$0]  %s3346, 16, %s3343, %s3333
        $region64: #{tpu_custom_call.1} parent=47 // pred_fallthru
          _
      $region48: #{tpu_custom_call.1} parent=5 // pred_fallthru
        _
      %p3349 = scmp.le.s32.totalorder 2, %s19
      // Predicated region
      $region65: #{tpu_custom_call.1} parent=5 // pred_check
        %p3350 = pneg %p3349
      $region66: #{tpu_custom_call.1} parent=5 // pred_check_branch
        %3352 = sbr.rel (%p3350) target = $region68
      $region67: #{tpu_custom_call.1} parent=5 // pred_region
        %s3353 = ssub.s32 %s19, 2
        // Predicated region
        $region69: #{tpu_custom_call.1} parent=67 // pred_check
          %p3354 = pneg %p200
        $region70: #{tpu_custom_call.1} parent=67 // pred_check_branch
          %3356 = sbr.rel (%p3354) target = $region72
        $region71: #{tpu_custom_call.1} parent=67 // pred_region
          %s3357 = sand.u32 %s185, 1
          %s3358 = scalar_lea.sflag [#allocation7], %s3357
          %s3359 = sand.u32 %s185, 1
          %s3360 = scalar_lea.vmem [#allocation10], %s3359
          %3361 = dma.done %s3358, 16
        $region72: #{tpu_custom_call.1} parent=67 // pred_fallthru
          _
      $region68: #{tpu_custom_call.1} parent=5 // pred_fallthru
        _
    $region6: #{tpu_custom_call.1} parent=1 // loop_footer
      %s23 = sadd.s32 1, %s19
    $region7: #{tpu_custom_call.1} parent=1 // loop_footer_branch
      %18 = sbr.rel target = $region3
    $region8: #{tpu_custom_call.1} parent=1 // loop_exit
      _
    %3362 = vsyncpa [#allocation6], 1
    %s3363 = scalar_lea.sflag [#allocation6], 1
    %3364 = vsyncpa %s3363, 1
    %3365 = vsyncpa [#allocation9], 1
    %3366 = vsyncpa [#allocation7], 1
    %s3367 = scalar_lea.sflag [#allocation7], 1
    %3368 = vsyncpa %s3367, 1

</llo_original>
